<compile_context>
chip_gen: v6e
topology: v6e:2x2x1
jax: 0.10.0
libtpu: 0.0.40
codegen_flags: <defaults>
</compile_context>

<pallas_src>
import jax
import jax.numpy as jnp
from jax.experimental import pallas as pl
from jax.experimental.pallas import tpu as pltpu


def _round_up(a, b):
    return (a + b - 1) // b * b


def _attention_block_kernel(scalars_ref,          # SMEM (2,): [prelu_alpha, psi_shift]
                            g_ref,                # (F_g, TR)      stream dtype
                            x_ref,                # (D, F_l, TR)   stream dtype
                            wg_ref, bg_ref,       # (F_int, F_g) stream, (F_int, 1) f32
                            wx_ref, bx_ref,       # (F_int, F_l) stream, (F_int, 1) f32
                            wpsi_ref,             # (1, F_int) f32
                            wout_ref, bout_ref,   # (F_l, F_l) stream, (F_l, 1) f32
                            o_ref):               # (D, F_l, TR)   stream dtype
    alpha = scalars_ref[0]
    psi_shift = scalars_ref[1]

    # g1 depends only on the row tile: computed ONCE, reused for all D depth slices.
    g1 = jnp.dot(wg_ref[...], g_ref[...],
                 preferred_element_type=jnp.float32) + bg_ref[...]        # (F_int, TR) f32

    depth = x_ref.shape[0]
    for d in range(depth):                        # static unroll; D is small & known
        x_d = x_ref[d]                                                    # (F_l, TR)
        x1 = jnp.dot(wx_ref[...], x_d,
                     preferred_element_type=jnp.float32) + bx_ref[...]    # (F_int, TR)
        p = g1 + x1
        p = jnp.where(p >= 0.0, p, alpha * p)                             # PReLU (shared alpha)
        # psi: 1-channel 1x1 conv as an MXU dot (frees VPU/XLU); fused BN shift from SMEM.
        z = jnp.dot(wpsi_ref[...], p,
                    preferred_element_type=jnp.float32) + psi_shift       # (1, TR)
        s = jax.nn.sigmoid(z)                                             # attention map
        xs = x_d.astype(jnp.float32) * s                                  # gate in f32
        out = jnp.dot(wout_ref[...], xs.astype(wout_ref.dtype),
                      preferred_element_type=jnp.float32) + bout_ref[...]
        o_ref[d] = out.astype(o_ref.dtype)


def _fold_conv_bn(p, eps):
    """Fold eval-mode BatchNorm into the 1x1 conv weight/bias (f32)."""
    c_out = p["w"].shape[0]
    w2 = p["w"].reshape(c_out, -1).astype(jnp.float32)        # (C_out, C_in)
    scale = p["gamma"] / jnp.sqrt(p["var"] + eps)              # (C_out,)
    w_f = w2 * scale[:, None]
    b_f = scale * (p["b"] - p["mean"]) + p["beta"]
    return w_f, b_f.astype(jnp.float32)


def _pick_tile_r(R, D, F_g, F_l, F_int, stream_bytes,
                 vmem_budget_bytes=16 << 20, tile_r_cap=16384):
    """Largest lane tile whose double-buffered streams + f32 temps fit the VMEM budget."""
    # Streamed, double-buffered bytes per lane column: g + x + out tiles.
    per_lane_stream = 2 * stream_bytes * (F_g + 2 * D * F_l)
    # Rough upper bound on f32 in-kernel temporaries (g1 + per-depth intermediates).
    per_lane_temp = 4 * (2 * F_int + 4 * F_l + 4)
    t = vmem_budget_bytes // (per_lane_stream + per_lane_temp)
    t = max(512, (t // 512) * 512)                 # multiple of 512 (MXU / lane friendly)
    t = min(t, tile_r_cap)
    r_ceil = _round_up(R, 128)
    t = min(t, r_ceil)
    # v7x megacore: keep >= 2 parallel row tiles when the row axis allows it
    # (no effect on single-TC v5e/v6e beyond one extra cheap grid step).
    if t >= r_ceil and r_ceil >= 256:
        t = _round_up(r_ceil // 2, 128)
    return t


def attention_block_hybrid_forward(g, x, params, *, eps=1e-5,
                                   stream_dtype=jnp.bfloat16):
    """g: (N, F_g, H, W), x: (N, F_l, H, W, D). Returns (N, F_l, H, W, D) in x.dtype."""
    N, F_g, H, W = g.shape
    Nx, F_l, Hx, Wx, D = x.shape
    assert (N, H, W) == (Nx, Hx, Wx), "g and x spatial/batch dims must match"

    # --- constant-fold BN (eval, running stats) into every 1x1 conv ---
    wg_f, bg_f = _fold_conv_bn(params["W_g"], eps)      # (F_int, F_g), (F_int,)
    wx_f, bx_f = _fold_conv_bn(params["W_x"], eps)      # (F_int, F_l), (F_int,)
    wpsi_f, bpsi_f = _fold_conv_bn(params["psi"], eps)  # (1, F_int), (1,)
    wout_f, bout_f = _fold_conv_bn(params["out"], eps)  # (F_l, F_l), (F_l,)
    F_int = wg_f.shape[0]

    # --- glue: lane-dense slabs (channels on sublanes, voxels on lanes) ---
    # TODO(synk): the NCHW(D) -> slab transposes (and the inverse at the end) remain
    # XLA glue; in a full network the slab layout should persist between layers (or be
    # folded into the consumer) so the kernel's HBM traffic is the only traffic.
    R = N * H * W
    g_slab = jnp.transpose(g, (1, 0, 2, 3)).reshape(F_g, R).astype(stream_dtype)
    x_slab = jnp.transpose(x, (4, 1, 0, 2, 3)).reshape(D, F_l, R).astype(stream_dtype)

    stream_bytes = jnp.dtype(stream_dtype).itemsize
    tile_r = _pick_tile_r(R, D, F_g, F_l, F_int, stream_bytes)
    R_pad = _round_up(R, tile_r)
    if R_pad != R:
        g_slab = jnp.pad(g_slab, ((0, 0), (0, R_pad - R)))
        x_slab = jnp.pad(x_slab, ((0, 0), (0, 0), (0, R_pad - R)))
    num_r = R_pad // tile_r

    scalars = jnp.stack([
        jnp.asarray(params["prelu_alpha"], jnp.float32).reshape(()),
        bpsi_f.reshape(()),
    ]).astype(jnp.float32)                               # SMEM: [alpha, psi_shift]

    # Weights feeding bf16 activations are cast to the stream dtype (single MXU pass);
    # biases and the tiny psi row stay f32 (added to / applied on f32 accumulators).
    wg_s = wg_f.astype(stream_dtype)
    wx_s = wx_f.astype(stream_dtype)
    wout_s = wout_f.astype(stream_dtype)
    bg_col = bg_f.reshape(F_int, 1)
    bx_col = bx_f.reshape(F_int, 1)
    bout_col = bout_f.reshape(F_l, 1)
    wpsi_row = wpsi_f.reshape(1, F_int)

    const = lambda r: (0, 0)   # weights/biases: constant block
    out_slab = pl.pallas_call(
        _attention_block_kernel,
        out_shape=jax.ShapeDtypeStruct((D, F_l, R_pad), stream_dtype),
        grid_spec=pltpu.PrefetchScalarGridSpec(
            num_scalar_prefetch=0,
            grid=(num_r,),      # depth folded into the block -> D x fewer grid steps
            in_specs=[
                pl.BlockSpec(memory_space=pltpu.MemorySpace.SMEM),      # scalars
                pl.BlockSpec((F_g, tile_r), lambda r: (0, r)),          # g slab
                pl.BlockSpec((D, F_l, tile_r), lambda r: (0, 0, r)),    # x slab (full depth)
                pl.BlockSpec((F_int, F_g), const),                      # W_g fused
                pl.BlockSpec((F_int, 1), const),                        # b_g fused
                pl.BlockSpec((F_int, F_l), const),                      # W_x fused
                pl.BlockSpec((F_int, 1), const),                        # b_x fused
                pl.BlockSpec((1, F_int), const),                        # w_psi fused
                pl.BlockSpec((F_l, F_l), const),                        # W_out fused
                pl.BlockSpec((F_l, 1), const),                          # b_out fused
            ],
            out_specs=pl.BlockSpec((D, F_l, tile_r), lambda r: (0, 0, r)),
        ),
        compiler_params=pltpu.CompilerParams(
            dimension_semantics=("parallel",),
            vmem_limit_bytes=32 << 20,   # > v5e's 16 MiB scoped default; safe on v6e/v7x
        ),
    )(scalars, g_slab, x_slab, wg_s, bg_col, wx_s, bx_col, wpsi_row, wout_s, bout_col)

    # glue: back to (N, F_l, H, W, D) in the caller's dtype
    out_slab = out_slab[:, :, :R].astype(x.dtype)
    out = out_slab.reshape(D, F_l, N, H, W)
    return jnp.transpose(out, (2, 1, 3, 4, 0))


def _reference(g, x, params, eps=1e-5):
    hp = jax.lax.Precision.HIGHEST

    def conv_bn_2d(y, p):
        c_out = p["w"].shape[0]
        w2 = p["w"].reshape(c_out, -1)
        y = jnp.einsum("nchw,oc->nohw", y, w2, precision=hp) + p["b"][None, :, None, None]
        inv = p["gamma"] / jnp.sqrt(p["var"] + eps)
        return (y - p["mean"][None, :, None, None]) * inv[None, :, None, None] \
            + p["beta"][None, :, None, None]

    def conv_bn_3d(y, p):
        c_out = p["w"].shape[0]
        w2 = p["w"].reshape(c_out, -1)
        y = jnp.einsum("nchwd,oc->nohwd", y, w2, precision=hp) + p["b"][None, :, None, None, None]
        inv = p["gamma"] / jnp.sqrt(p["var"] + eps)
        return (y - p["mean"][None, :, None, None, None]) * inv[None, :, None, None, None] \
            + p["beta"][None, :, None, None, None]

    g1 = conv_bn_2d(g, params["W_g"])               # (N, F_int, H, W)
    x1 = conv_bn_3d(x, params["W_x"])               # (N, F_int, H, W, D)
    a = jnp.asarray(params["prelu_alpha"], jnp.float32)
    p = g1[..., None] + x1
    p = jnp.where(p >= 0, p, a * p)                 # PReLU
    s = jax.nn.sigmoid(conv_bn_3d(p, params["psi"]))
    return conv_bn_3d(x * s, params["out"])


if __name__ == "__main__":
    key = jax.random.PRNGKey(0)
    N, F_g, F_l, F_int = 2, 4, 4, 8
    H, W, D = 16, 16, 8
    keys = jax.random.split(key, 26)

    g = jax.random.normal(keys[0], (N, F_g, H, W), jnp.float32)
    x = jax.random.normal(keys[1], (N, F_l, H, W, D), jnp.float32)

    def make_conv_bn(ks, c_out, c_in, kdims):
        kw, kb, kg, kbe, km, kv = ks
        w_shape = (c_out, c_in) + (1,) * kdims        # PyTorch Conv2d/Conv3d weight shape
        return dict(
            w=jax.random.normal(kw, w_shape, jnp.float32) * 0.2,
            b=jax.random.normal(kb, (c_out,), jnp.float32) * 0.05,
            gamma=1.0 + 0.1 * jax.random.normal(kg, (c_out,), jnp.float32),
            beta=0.05 * jax.random.normal(kbe, (c_out,), jnp.float32),
            mean=0.1 * jax.random.normal(km, (c_out,), jnp.float32),
            var=jnp.abs(1.0 + 0.1 * jax.random.normal(kv, (c_out,), jnp.float32)),
        )

    params = dict(
        W_g=make_conv_bn(keys[2:8], F_int, F_g, 2),    # Conv2d + BN2d (+Dropout2d eval)
        W_x=make_conv_bn(keys[8:14], F_int, F_l, 3),   # Conv3d + BN3d (+Dropout3d eval)
        psi=make_conv_bn(keys[14:20], 1, F_int, 3),    # Conv3d + BN3d (+Dropout3d eval)
        out=make_conv_bn(keys[20:26], F_l, F_l, 3),    # Conv3d + BN3d (+Dropout3d eval)
        prelu_alpha=jnp.float32(0.25),                 # nn.PReLU() default: single shared alpha
    )

    # TODO(synk): training-mode Dropout*d / batch-stat BatchNorm not implemented (eval semantics).
    # TODO(synk): activation_type='softmax' not implemented (softmax over the single psi channel
    #             is degenerate == 1); this kernel implements the default 'sigmoid' path.

    ref = _reference(g, x, params)

    # 1) f32 streaming path: exact correctness check against the reference.
    out_f32 = attention_block_hybrid_forward(g, x, params, stream_dtype=jnp.float32)
    jax.block_until_ready(out_f32)
    assert out_f32.shape == (N, F_l, H, W, D)
    err_f32 = float(jnp.max(jnp.abs(out_f32 - ref)))
    assert jnp.allclose(out_f32, ref, atol=1e-4, rtol=1e-4), f"f32 max abs err {err_f32}"

    # 2) bf16 streaming path (default, halves HBM traffic for this memory-bound op):
    #    validate against the reference fed the same bf16-quantized activations.
    out_bf16 = attention_block_hybrid_forward(g, x, params, stream_dtype=jnp.bfloat16)
    jax.block_until_ready(out_bf16)
    assert out_bf16.shape == (N, F_l, H, W, D)
    g_q = g.astype(jnp.bfloat16).astype(jnp.float32)
    x_q = x.astype(jnp.bfloat16).astype(jnp.float32)
    ref_q = _reference(g_q, x_q, params)
    err_bf16 = float(jnp.max(jnp.abs(out_bf16 - ref_q)))
    assert jnp.allclose(out_bf16, ref_q, atol=5e-2, rtol=5e-2), f"bf16 max abs err {err_bf16}"

    print("KERNEL_OK")
</pallas_src>

<mosaic_0001>
module attributes {stable_mosaic.version = 11 : i64} {
  func.func @_attention_block_kernel(%arg0: i32, %arg1: memref<2xf32, #tpu.memory_space<smem>>, %arg2: memref<4x256xf32, #tpu.memory_space<vmem>>, %arg3: memref<8x4x256xf32, #tpu.memory_space<vmem>>, %arg4: memref<8x4xf32, #tpu.memory_space<vmem>>, %arg5: memref<8x1xf32, #tpu.memory_space<vmem>>, %arg6: memref<8x4xf32, #tpu.memory_space<vmem>>, %arg7: memref<8x1xf32, #tpu.memory_space<vmem>>, %arg8: memref<1x8xf32, #tpu.memory_space<vmem>>, %arg9: memref<4x4xf32, #tpu.memory_space<vmem>>, %arg10: memref<4x1xf32, #tpu.memory_space<vmem>>, %arg11: memref<8x4x256xf32, #tpu.memory_space<vmem>>) attributes {dimension_semantics = [#tpu.dimension_semantics<parallel>], iteration_bounds = array<i64: 2>, scalar_prefetch = 0 : i64, scratch_operands = 0 : i64, tpu.core_type = #tpu.core_type<tc>, window_params = [{transform_indices = @transform_0, window_bounds = array<i64: 2>}, {transform_indices = @transform_1, window_bounds = array<i64: 4, 256>}, {transform_indices = @transform_2, window_bounds = array<i64: 8, 4, 256>}, {pipeline_mode = #tpu.pipeline_mode<synchronous>, transform_indices = @transform_3, window_bounds = array<i64: 8, 4>}, {pipeline_mode = #tpu.pipeline_mode<synchronous>, transform_indices = @transform_4, window_bounds = array<i64: 8, 1>}, {pipeline_mode = #tpu.pipeline_mode<synchronous>, transform_indices = @transform_5, window_bounds = array<i64: 8, 4>}, {pipeline_mode = #tpu.pipeline_mode<synchronous>, transform_indices = @transform_6, window_bounds = array<i64: 8, 1>}, {pipeline_mode = #tpu.pipeline_mode<synchronous>, transform_indices = @transform_7, window_bounds = array<i64: 1, 8>}, {pipeline_mode = #tpu.pipeline_mode<synchronous>, transform_indices = @transform_8, window_bounds = array<i64: 4, 4>}, {pipeline_mode = #tpu.pipeline_mode<synchronous>, transform_indices = @transform_9, window_bounds = array<i64: 4, 1>}, {transform_indices = @transform_10, window_bounds = array<i64: 8, 4, 256>}]} {
    %c0 = arith.constant 0 : index
    %0 = memref.load %arg1[%c0] : memref<2xf32, #tpu.memory_space<smem>>
    %c1 = arith.constant 1 : index
    %1 = memref.load %arg1[%c1] : memref<2xf32, #tpu.memory_space<smem>>
    %c0_0 = arith.constant 0 : index
    %c0_1 = arith.constant 0 : index
    %2 = vector.load %arg4[%c0_0, %c0_1] : memref<8x4xf32, #tpu.memory_space<vmem>>, vector<8x4xf32>
    %c0_2 = arith.constant 0 : index
    %c0_3 = arith.constant 0 : index
    %3 = vector.load %arg2[%c0_2, %c0_3] : memref<4x256xf32, #tpu.memory_space<vmem>>, vector<4x256xf32>
    %cst = arith.constant dense<0.000000e+00> : vector<8x256xf32>
    %4 = tpu.matmul %2, %3, %cst {dimension_numbers = #tpu.dot_dimension_numbers<[1], [0], [0], [1], [0, 0, 1, 1], [], []>} : vector<8x4xf32>, vector<4x256xf32>, vector<8x256xf32> -> vector<8x256xf32>
    %c0_4 = arith.constant 0 : index
    %c0_5 = arith.constant 0 : index
    %5 = vector.load %arg5[%c0_4, %c0_5] : memref<8x1xf32, #tpu.memory_space<vmem>>, vector<8x1xf32>
    %6 = vector.broadcast %5 : vector<8x1xf32> to vector<8x256xf32>
    %7 = arith.addf %4, %6 : vector<8x256xf32>
    %c0_6 = arith.constant 0 : index
    %c0_7 = arith.constant 0 : index
    %c0_8 = arith.constant 0 : index
    %8 = vector.load %arg3[%c0_6, %c0_7, %c0_8] : memref<8x4x256xf32, #tpu.memory_space<vmem>>, vector<1x4x256xf32>
    %9 = vector.shape_cast %8 : vector<1x4x256xf32> to vector<4x256xf32>
    %c0_9 = arith.constant 0 : index
    %c0_10 = arith.constant 0 : index
    %10 = vector.load %arg6[%c0_9, %c0_10] : memref<8x4xf32, #tpu.memory_space<vmem>>, vector<8x4xf32>
    %cst_11 = arith.constant dense<0.000000e+00> : vector<8x256xf32>
    %11 = tpu.matmul %10, %9, %cst_11 {dimension_numbers = #tpu.dot_dimension_numbers<[1], [0], [0], [1], [0, 0, 1, 1], [], []>} : vector<8x4xf32>, vector<4x256xf32>, vector<8x256xf32> -> vector<8x256xf32>
    %c0_12 = arith.constant 0 : index
    %c0_13 = arith.constant 0 : index
    %12 = vector.load %arg7[%c0_12, %c0_13] : memref<8x1xf32, #tpu.memory_space<vmem>>, vector<8x1xf32>
    %13 = vector.broadcast %12 : vector<8x1xf32> to vector<8x256xf32>
    %14 = arith.addf %11, %13 : vector<8x256xf32>
    %15 = arith.addf %7, %14 : vector<8x256xf32>
    %cst_14 = arith.constant 0.000000e+00 : f32
    %16 = vector.broadcast %cst_14 : f32 to vector<8x256xf32>
    %17 = arith.cmpf oge, %15, %16 : vector<8x256xf32>
    %18 = vector.broadcast %0 : f32 to vector<8x256xf32>
    %19 = arith.mulf %18, %15 : vector<8x256xf32>
    %20 = arith.select %17, %15, %19 : vector<8x256xi1>, vector<8x256xf32>
    %c0_15 = arith.constant 0 : index
    %c0_16 = arith.constant 0 : index
    %21 = vector.load %arg8[%c0_15, %c0_16] : memref<1x8xf32, #tpu.memory_space<vmem>>, vector<1x8xf32>
    %cst_17 = arith.constant dense<0.000000e+00> : vector<1x256xf32>
    %22 = tpu.matmul %21, %20, %cst_17 {dimension_numbers = #tpu.dot_dimension_numbers<[1], [0], [0], [1], [0, 0, 1, 1], [], []>} : vector<1x8xf32>, vector<8x256xf32>, vector<1x256xf32> -> vector<1x256xf32>
    %23 = vector.broadcast %1 : f32 to vector<1x256xf32>
    %24 = arith.addf %22, %23 : vector<1x256xf32>
    %25 = arith.negf %24 : vector<1x256xf32>
    %26 = math.exp %25 : vector<1x256xf32>
    %cst_18 = arith.constant 1.000000e+00 : f32
    %27 = vector.broadcast %cst_18 : f32 to vector<1x256xf32>
    %28 = arith.addf %27, %26 : vector<1x256xf32>
    %29 = arith.divf %27, %28 : vector<1x256xf32>
    %30 = vector.broadcast %29 : vector<1x256xf32> to vector<4x256xf32>
    %31 = arith.mulf %9, %30 : vector<4x256xf32>
    %c0_19 = arith.constant 0 : index
    %c0_20 = arith.constant 0 : index
    %32 = vector.load %arg9[%c0_19, %c0_20] : memref<4x4xf32, #tpu.memory_space<vmem>>, vector<4x4xf32>
    %cst_21 = arith.constant dense<0.000000e+00> : vector<4x256xf32>
    %33 = tpu.matmul %32, %31, %cst_21 {dimension_numbers = #tpu.dot_dimension_numbers<[1], [0], [0], [1], [0, 0, 1, 1], [], []>} : vector<4x4xf32>, vector<4x256xf32>, vector<4x256xf32> -> vector<4x256xf32>
    %c0_22 = arith.constant 0 : index
    %c0_23 = arith.constant 0 : index
    %34 = vector.load %arg10[%c0_22, %c0_23] : memref<4x1xf32, #tpu.memory_space<vmem>>, vector<4x1xf32>
    %35 = vector.broadcast %34 : vector<4x1xf32> to vector<4x256xf32>
    %36 = arith.addf %33, %35 : vector<4x256xf32>
    %c0_24 = arith.constant 0 : index
    %c0_25 = arith.constant 0 : index
    %c0_26 = arith.constant 0 : index
    %37 = vector.load %arg11[%c0_24, %c0_25, %c0_26] : memref<8x4x256xf32, #tpu.memory_space<vmem>>, vector<1x4x256xf32>
    %38 = vector.shape_cast %37 : vector<1x4x256xf32> to vector<4x256xf32>
    %39 = vector.shape_cast %36 : vector<4x256xf32> to vector<1x4x256xf32>
    tpu.vector_store %arg11[%c0_24, %c0_25, %c0_26], %39 {strides = array<i32>} : memref<8x4x256xf32, #tpu.memory_space<vmem>>, vector<1x4x256xf32>,
    %c1_27 = arith.constant 1 : index
    %c0_28 = arith.constant 0 : index
    %c0_29 = arith.constant 0 : index
    %40 = vector.load %arg3[%c1_27, %c0_28, %c0_29] : memref<8x4x256xf32, #tpu.memory_space<vmem>>, vector<1x4x256xf32>
    %41 = vector.shape_cast %40 : vector<1x4x256xf32> to vector<4x256xf32>
    %c0_30 = arith.constant 0 : index
    %c0_31 = arith.constant 0 : index
    %42 = vector.load %arg6[%c0_30, %c0_31] : memref<8x4xf32, #tpu.memory_space<vmem>>, vector<8x4xf32>
    %cst_32 = arith.constant dense<0.000000e+00> : vector<8x256xf32>
    %43 = tpu.matmul %42, %41, %cst_32 {dimension_numbers = #tpu.dot_dimension_numbers<[1], [0], [0], [1], [0, 0, 1, 1], [], []>} : vector<8x4xf32>, vector<4x256xf32>, vector<8x256xf32> -> vector<8x256xf32>
    %c0_33 = arith.constant 0 : index
    %c0_34 = arith.constant 0 : index
    %44 = vector.load %arg7[%c0_33, %c0_34] : memref<8x1xf32, #tpu.memory_space<vmem>>, vector<8x1xf32>
    %45 = vector.broadcast %44 : vector<8x1xf32> to vector<8x256xf32>
    %46 = arith.addf %43, %45 : vector<8x256xf32>
    %47 = arith.addf %7, %46 : vector<8x256xf32>
    %cst_35 = arith.constant 0.000000e+00 : f32
    %48 = vector.broadcast %cst_35 : f32 to vector<8x256xf32>
    %49 = arith.cmpf oge, %47, %48 : vector<8x256xf32>
    %50 = vector.broadcast %0 : f32 to vector<8x256xf32>
    %51 = arith.mulf %50, %47 : vector<8x256xf32>
    %52 = arith.select %49, %47, %51 : vector<8x256xi1>, vector<8x256xf32>
    %c0_36 = arith.constant 0 : index
    %c0_37 = arith.constant 0 : index
    %53 = vector.load %arg8[%c0_36, %c0_37] : memref<1x8xf32, #tpu.memory_space<vmem>>, vector<1x8xf32>
    %cst_38 = arith.constant dense<0.000000e+00> : vector<1x256xf32>
    %54 = tpu.matmul %53, %52, %cst_38 {dimension_numbers = #tpu.dot_dimension_numbers<[1], [0], [0], [1], [0, 0, 1, 1], [], []>} : vector<1x8xf32>, vector<8x256xf32>, vector<1x256xf32> -> vector<1x256xf32>
    %55 = vector.broadcast %1 : f32 to vector<1x256xf32>
    %56 = arith.addf %54, %55 : vector<1x256xf32>
    %57 = arith.negf %56 : vector<1x256xf32>
    %58 = math.exp %57 : vector<1x256xf32>
    %cst_39 = arith.constant 1.000000e+00 : f32
    %59 = vector.broadcast %cst_39 : f32 to vector<1x256xf32>
    %60 = arith.addf %59, %58 : vector<1x256xf32>
    %61 = arith.divf %59, %60 : vector<1x256xf32>
    %62 = vector.broadcast %61 : vector<1x256xf32> to vector<4x256xf32>
    %63 = arith.mulf %41, %62 : vector<4x256xf32>
    %c0_40 = arith.constant 0 : index
    %c0_41 = arith.constant 0 : index
    %64 = vector.load %arg9[%c0_40, %c0_41] : memref<4x4xf32, #tpu.memory_space<vmem>>, vector<4x4xf32>
    %cst_42 = arith.constant dense<0.000000e+00> : vector<4x256xf32>
    %65 = tpu.matmul %64, %63, %cst_42 {dimension_numbers = #tpu.dot_dimension_numbers<[1], [0], [0], [1], [0, 0, 1, 1], [], []>} : vector<4x4xf32>, vector<4x256xf32>, vector<4x256xf32> -> vector<4x256xf32>
    %c0_43 = arith.constant 0 : index
    %c0_44 = arith.constant 0 : index
    %66 = vector.load %arg10[%c0_43, %c0_44] : memref<4x1xf32, #tpu.memory_space<vmem>>, vector<4x1xf32>
    %67 = vector.broadcast %66 : vector<4x1xf32> to vector<4x256xf32>
    %68 = arith.addf %65, %67 : vector<4x256xf32>
    %c1_45 = arith.constant 1 : index
    %c0_46 = arith.constant 0 : index
    %c0_47 = arith.constant 0 : index
    %69 = vector.load %arg11[%c1_45, %c0_46, %c0_47] : memref<8x4x256xf32, #tpu.memory_space<vmem>>, vector<1x4x256xf32>
    %70 = vector.shape_cast %69 : vector<1x4x256xf32> to vector<4x256xf32>
    %71 = vector.shape_cast %68 : vector<4x256xf32> to vector<1x4x256xf32>
    tpu.vector_store %arg11[%c1_45, %c0_46, %c0_47], %71 {strides = array<i32>} : memref<8x4x256xf32, #tpu.memory_space<vmem>>, vector<1x4x256xf32>,
    %c2 = arith.constant 2 : index
    %c0_48 = arith.constant 0 : index
    %c0_49 = arith.constant 0 : index
    %72 = vector.load %arg3[%c2, %c0_48, %c0_49] : memref<8x4x256xf32, #tpu.memory_space<vmem>>, vector<1x4x256xf32>
    %73 = vector.shape_cast %72 : vector<1x4x256xf32> to vector<4x256xf32>
    %c0_50 = arith.constant 0 : index
    %c0_51 = arith.constant 0 : index
    %74 = vector.load %arg6[%c0_50, %c0_51] : memref<8x4xf32, #tpu.memory_space<vmem>>, vector<8x4xf32>
    %cst_52 = arith.constant dense<0.000000e+00> : vector<8x256xf32>
    %75 = tpu.matmul %74, %73, %cst_52 {dimension_numbers = #tpu.dot_dimension_numbers<[1], [0], [0], [1], [0, 0, 1, 1], [], []>} : vector<8x4xf32>, vector<4x256xf32>, vector<8x256xf32> -> vector<8x256xf32>
    %c0_53 = arith.constant 0 : index
    %c0_54 = arith.constant 0 : index
    %76 = vector.load %arg7[%c0_53, %c0_54] : memref<8x1xf32, #tpu.memory_space<vmem>>, vector<8x1xf32>
    %77 = vector.broadcast %76 : vector<8x1xf32> to vector<8x256xf32>
    %78 = arith.addf %75, %77 : vector<8x256xf32>
    %79 = arith.addf %7, %78 : vector<8x256xf32>
    %cst_55 = arith.constant 0.000000e+00 : f32
    %80 = vector.broadcast %cst_55 : f32 to vector<8x256xf32>
    %81 = arith.cmpf oge, %79, %80 : vector<8x256xf32>
    %82 = vector.broadcast %0 : f32 to vector<8x256xf32>
    %83 = arith.mulf %82, %79 : vector<8x256xf32>
    %84 = arith.select %81, %79, %83 : vector<8x256xi1>, vector<8x256xf32>
    %c0_56 = arith.constant 0 : index
    %c0_57 = arith.constant 0 : index
    %85 = vector.load %arg8[%c0_56, %c0_57] : memref<1x8xf32, #tpu.memory_space<vmem>>, vector<1x8xf32>
    %cst_58 = arith.constant dense<0.000000e+00> : vector<1x256xf32>
    %86 = tpu.matmul %85, %84, %cst_58 {dimension_numbers = #tpu.dot_dimension_numbers<[1], [0], [0], [1], [0, 0, 1, 1], [], []>} : vector<1x8xf32>, vector<8x256xf32>, vector<1x256xf32> -> vector<1x256xf32>
    %87 = vector.broadcast %1 : f32 to vector<1x256xf32>
    %88 = arith.addf %86, %87 : vector<1x256xf32>
    %89 = arith.negf %88 : vector<1x256xf32>
    %90 = math.exp %89 : vector<1x256xf32>
    %cst_59 = arith.constant 1.000000e+00 : f32
    %91 = vector.broadcast %cst_59 : f32 to vector<1x256xf32>
    %92 = arith.addf %91, %90 : vector<1x256xf32>
    %93 = arith.divf %91, %92 : vector<1x256xf32>
    %94 = vector.broadcast %93 : vector<1x256xf32> to vector<4x256xf32>
    %95 = arith.mulf %73, %94 : vector<4x256xf32>
    %c0_60 = arith.constant 0 : index
    %c0_61 = arith.constant 0 : index
    %96 = vector.load %arg9[%c0_60, %c0_61] : memref<4x4xf32, #tpu.memory_space<vmem>>, vector<4x4xf32>
    %cst_62 = arith.constant dense<0.000000e+00> : vector<4x256xf32>
    %97 = tpu.matmul %96, %95, %cst_62 {dimension_numbers = #tpu.dot_dimension_numbers<[1], [0], [0], [1], [0, 0, 1, 1], [], []>} : vector<4x4xf32>, vector<4x256xf32>, vector<4x256xf32> -> vector<4x256xf32>
    %c0_63 = arith.constant 0 : index
    %c0_64 = arith.constant 0 : index
    %98 = vector.load %arg10[%c0_63, %c0_64] : memref<4x1xf32, #tpu.memory_space<vmem>>, vector<4x1xf32>
    %99 = vector.broadcast %98 : vector<4x1xf32> to vector<4x256xf32>
    %100 = arith.addf %97, %99 : vector<4x256xf32>
    %c2_65 = arith.constant 2 : index
    %c0_66 = arith.constant 0 : index
    %c0_67 = arith.constant 0 : index
    %101 = vector.load %arg11[%c2_65, %c0_66, %c0_67] : memref<8x4x256xf32, #tpu.memory_space<vmem>>, vector<1x4x256xf32>
    %102 = vector.shape_cast %101 : vector<1x4x256xf32> to vector<4x256xf32>
    %103 = vector.shape_cast %100 : vector<4x256xf32> to vector<1x4x256xf32>
    tpu.vector_store %arg11[%c2_65, %c0_66, %c0_67], %103 {strides = array<i32>} : memref<8x4x256xf32, #tpu.memory_space<vmem>>, vector<1x4x256xf32>,
    %c3 = arith.constant 3 : index
    %c0_68 = arith.constant 0 : index
    %c0_69 = arith.constant 0 : index
    %104 = vector.load %arg3[%c3, %c0_68, %c0_69] : memref<8x4x256xf32, #tpu.memory_space<vmem>>, vector<1x4x256xf32>
    %105 = vector.shape_cast %104 : vector<1x4x256xf32> to vector<4x256xf32>
    %c0_70 = arith.constant 0 : index
    %c0_71 = arith.constant 0 : index
    %106 = vector.load %arg6[%c0_70, %c0_71] : memref<8x4xf32, #tpu.memory_space<vmem>>, vector<8x4xf32>
    %cst_72 = arith.constant dense<0.000000e+00> : vector<8x256xf32>
    %107 = tpu.matmul %106, %105, %cst_72 {dimension_numbers = #tpu.dot_dimension_numbers<[1], [0], [0], [1], [0, 0, 1, 1], [], []>} : vector<8x4xf32>, vector<4x256xf32>, vector<8x256xf32> -> vector<8x256xf32>
    %c0_73 = arith.constant 0 : index
    %c0_74 = arith.constant 0 : index
    %108 = vector.load %arg7[%c0_73, %c0_74] : memref<8x1xf32, #tpu.memory_space<vmem>>, vector<8x1xf32>
    %109 = vector.broadcast %108 : vector<8x1xf32> to vector<8x256xf32>
    %110 = arith.addf %107, %109 : vector<8x256xf32>
    %111 = arith.addf %7, %110 : vector<8x256xf32>
    %cst_75 = arith.constant 0.000000e+00 : f32
    %112 = vector.broadcast %cst_75 : f32 to vector<8x256xf32>
    %113 = arith.cmpf oge, %111, %112 : vector<8x256xf32>
    %114 = vector.broadcast %0 : f32 to vector<8x256xf32>
    %115 = arith.mulf %114, %111 : vector<8x256xf32>
    %116 = arith.select %113, %111, %115 : vector<8x256xi1>, vector<8x256xf32>
    %c0_76 = arith.constant 0 : index
    %c0_77 = arith.constant 0 : index
    %117 = vector.load %arg8[%c0_76, %c0_77] : memref<1x8xf32, #tpu.memory_space<vmem>>, vector<1x8xf32>
    %cst_78 = arith.constant dense<0.000000e+00> : vector<1x256xf32>
    %118 = tpu.matmul %117, %116, %cst_78 {dimension_numbers = #tpu.dot_dimension_numbers<[1], [0], [0], [1], [0, 0, 1, 1], [], []>} : vector<1x8xf32>, vector<8x256xf32>, vector<1x256xf32> -> vector<1x256xf32>
    %119 = vector.broadcast %1 : f32 to vector<1x256xf32>
    %120 = arith.addf %118, %119 : vector<1x256xf32>
    %121 = arith.negf %120 : vector<1x256xf32>
    %122 = math.exp %121 : vector<1x256xf32>
    %cst_79 = arith.constant 1.000000e+00 : f32
    %123 = vector.broadcast %cst_79 : f32 to vector<1x256xf32>
    %124 = arith.addf %123, %122 : vector<1x256xf32>
    %125 = arith.divf %123, %124 : vector<1x256xf32>
    %126 = vector.broadcast %125 : vector<1x256xf32> to vector<4x256xf32>
    %127 = arith.mulf %105, %126 : vector<4x256xf32>
    %c0_80 = arith.constant 0 : index
    %c0_81 = arith.constant 0 : index
    %128 = vector.load %arg9[%c0_80, %c0_81] : memref<4x4xf32, #tpu.memory_space<vmem>>, vector<4x4xf32>
    %cst_82 = arith.constant dense<0.000000e+00> : vector<4x256xf32>
    %129 = tpu.matmul %128, %127, %cst_82 {dimension_numbers = #tpu.dot_dimension_numbers<[1], [0], [0], [1], [0, 0, 1, 1], [], []>} : vector<4x4xf32>, vector<4x256xf32>, vector<4x256xf32> -> vector<4x256xf32>
    %c0_83 = arith.constant 0 : index
    %c0_84 = arith.constant 0 : index
    %130 = vector.load %arg10[%c0_83, %c0_84] : memref<4x1xf32, #tpu.memory_space<vmem>>, vector<4x1xf32>
    %131 = vector.broadcast %130 : vector<4x1xf32> to vector<4x256xf32>
    %132 = arith.addf %129, %131 : vector<4x256xf32>
    %c3_85 = arith.constant 3 : index
    %c0_86 = arith.constant 0 : index
    %c0_87 = arith.constant 0 : index
    %133 = vector.load %arg11[%c3_85, %c0_86, %c0_87] : memref<8x4x256xf32, #tpu.memory_space<vmem>>, vector<1x4x256xf32>
    %134 = vector.shape_cast %133 : vector<1x4x256xf32> to vector<4x256xf32>
    %135 = vector.shape_cast %132 : vector<4x256xf32> to vector<1x4x256xf32>
    tpu.vector_store %arg11[%c3_85, %c0_86, %c0_87], %135 {strides = array<i32>} : memref<8x4x256xf32, #tpu.memory_space<vmem>>, vector<1x4x256xf32>,
    %c4 = arith.constant 4 : index
    %c0_88 = arith.constant 0 : index
    %c0_89 = arith.constant 0 : index
    %136 = vector.load %arg3[%c4, %c0_88, %c0_89] : memref<8x4x256xf32, #tpu.memory_space<vmem>>, vector<1x4x256xf32>
    %137 = vector.shape_cast %136 : vector<1x4x256xf32> to vector<4x256xf32>
    %c0_90 = arith.constant 0 : index
    %c0_91 = arith.constant 0 : index
    %138 = vector.load %arg6[%c0_90, %c0_91] : memref<8x4xf32, #tpu.memory_space<vmem>>, vector<8x4xf32>
    %cst_92 = arith.constant dense<0.000000e+00> : vector<8x256xf32>
    %139 = tpu.matmul %138, %137, %cst_92 {dimension_numbers = #tpu.dot_dimension_numbers<[1], [0], [0], [1], [0, 0, 1, 1], [], []>} : vector<8x4xf32>, vector<4x256xf32>, vector<8x256xf32> -> vector<8x256xf32>
    %c0_93 = arith.constant 0 : index
    %c0_94 = arith.constant 0 : index
    %140 = vector.load %arg7[%c0_93, %c0_94] : memref<8x1xf32, #tpu.memory_space<vmem>>, vector<8x1xf32>
    %141 = vector.broadcast %140 : vector<8x1xf32> to vector<8x256xf32>
    %142 = arith.addf %139, %141 : vector<8x256xf32>
    %143 = arith.addf %7, %142 : vector<8x256xf32>
    %cst_95 = arith.constant 0.000000e+00 : f32
    %144 = vector.broadcast %cst_95 : f32 to vector<8x256xf32>
    %145 = arith.cmpf oge, %143, %144 : vector<8x256xf32>
    %146 = vector.broadcast %0 : f32 to vector<8x256xf32>
    %147 = arith.mulf %146, %143 : vector<8x256xf32>
    %148 = arith.select %145, %143, %147 : vector<8x256xi1>, vector<8x256xf32>
    %c0_96 = arith.constant 0 : index
    %c0_97 = arith.constant 0 : index
    %149 = vector.load %arg8[%c0_96, %c0_97] : memref<1x8xf32, #tpu.memory_space<vmem>>, vector<1x8xf32>
    %cst_98 = arith.constant dense<0.000000e+00> : vector<1x256xf32>
    %150 = tpu.matmul %149, %148, %cst_98 {dimension_numbers = #tpu.dot_dimension_numbers<[1], [0], [0], [1], [0, 0, 1, 1], [], []>} : vector<1x8xf32>, vector<8x256xf32>, vector<1x256xf32> -> vector<1x256xf32>
    %151 = vector.broadcast %1 : f32 to vector<1x256xf32>
    %152 = arith.addf %150, %151 : vector<1x256xf32>
    %153 = arith.negf %152 : vector<1x256xf32>
    %154 = math.exp %153 : vector<1x256xf32>
    %cst_99 = arith.constant 1.000000e+00 : f32
    %155 = vector.broadcast %cst_99 : f32 to vector<1x256xf32>
    %156 = arith.addf %155, %154 : vector<1x256xf32>
    %157 = arith.divf %155, %156 : vector<1x256xf32>
    %158 = vector.broadcast %157 : vector<1x256xf32> to vector<4x256xf32>
    %159 = arith.mulf %137, %158 : vector<4x256xf32>
    %c0_100 = arith.constant 0 : index
    %c0_101 = arith.constant 0 : index
    %160 = vector.load %arg9[%c0_100, %c0_101] : memref<4x4xf32, #tpu.memory_space<vmem>>, vector<4x4xf32>
    %cst_102 = arith.constant dense<0.000000e+00> : vector<4x256xf32>
    %161 = tpu.matmul %160, %159, %cst_102 {dimension_numbers = #tpu.dot_dimension_numbers<[1], [0], [0], [1], [0, 0, 1, 1], [], []>} : vector<4x4xf32>, vector<4x256xf32>, vector<4x256xf32> -> vector<4x256xf32>
    %c0_103 = arith.constant 0 : index
    %c0_104 = arith.constant 0 : index
    %162 = vector.load %arg10[%c0_103, %c0_104] : memref<4x1xf32, #tpu.memory_space<vmem>>, vector<4x1xf32>
    %163 = vector.broadcast %162 : vector<4x1xf32> to vector<4x256xf32>
    %164 = arith.addf %161, %163 : vector<4x256xf32>
    %c4_105 = arith.constant 4 : index
    %c0_106 = arith.constant 0 : index
    %c0_107 = arith.constant 0 : index
    %165 = vector.load %arg11[%c4_105, %c0_106, %c0_107] : memref<8x4x256xf32, #tpu.memory_space<vmem>>, vector<1x4x256xf32>
    %166 = vector.shape_cast %165 : vector<1x4x256xf32> to vector<4x256xf32>
    %167 = vector.shape_cast %164 : vector<4x256xf32> to vector<1x4x256xf32>
    tpu.vector_store %arg11[%c4_105, %c0_106, %c0_107], %167 {strides = array<i32>} : memref<8x4x256xf32, #tpu.memory_space<vmem>>, vector<1x4x256xf32>,
    %c5 = arith.constant 5 : index
    %c0_108 = arith.constant 0 : index
    %c0_109 = arith.constant 0 : index
    %168 = vector.load %arg3[%c5, %c0_108, %c0_109] : memref<8x4x256xf32, #tpu.memory_space<vmem>>, vector<1x4x256xf32>
    %169 = vector.shape_cast %168 : vector<1x4x256xf32> to vector<4x256xf32>
    %c0_110 = arith.constant 0 : index
    %c0_111 = arith.constant 0 : index
    %170 = vector.load %arg6[%c0_110, %c0_111] : memref<8x4xf32, #tpu.memory_space<vmem>>, vector<8x4xf32>
    %cst_112 = arith.constant dense<0.000000e+00> : vector<8x256xf32>
    %171 = tpu.matmul %170, %169, %cst_112 {dimension_numbers = #tpu.dot_dimension_numbers<[1], [0], [0], [1], [0, 0, 1, 1], [], []>} : vector<8x4xf32>, vector<4x256xf32>, vector<8x256xf32> -> vector<8x256xf32>
    %c0_113 = arith.constant 0 : index
    %c0_114 = arith.constant 0 : index
    %172 = vector.load %arg7[%c0_113, %c0_114] : memref<8x1xf32, #tpu.memory_space<vmem>>, vector<8x1xf32>
    %173 = vector.broadcast %172 : vector<8x1xf32> to vector<8x256xf32>
    %174 = arith.addf %171, %173 : vector<8x256xf32>
    %175 = arith.addf %7, %174 : vector<8x256xf32>
    %cst_115 = arith.constant 0.000000e+00 : f32
    %176 = vector.broadcast %cst_115 : f32 to vector<8x256xf32>
    %177 = arith.cmpf oge, %175, %176 : vector<8x256xf32>
    %178 = vector.broadcast %0 : f32 to vector<8x256xf32>
    %179 = arith.mulf %178, %175 : vector<8x256xf32>
    %180 = arith.select %177, %175, %179 : vector<8x256xi1>, vector<8x256xf32>
    %c0_116 = arith.constant 0 : index
    %c0_117 = arith.constant 0 : index
    %181 = vector.load %arg8[%c0_116, %c0_117] : memref<1x8xf32, #tpu.memory_space<vmem>>, vector<1x8xf32>
    %cst_118 = arith.constant dense<0.000000e+00> : vector<1x256xf32>
    %182 = tpu.matmul %181, %180, %cst_118 {dimension_numbers = #tpu.dot_dimension_numbers<[1], [0], [0], [1], [0, 0, 1, 1], [], []>} : vector<1x8xf32>, vector<8x256xf32>, vector<1x256xf32> -> vector<1x256xf32>
    %183 = vector.broadcast %1 : f32 to vector<1x256xf32>
    %184 = arith.addf %182, %183 : vector<1x256xf32>
    %185 = arith.negf %184 : vector<1x256xf32>
    %186 = math.exp %185 : vector<1x256xf32>
    %cst_119 = arith.constant 1.000000e+00 : f32
    %187 = vector.broadcast %cst_119 : f32 to vector<1x256xf32>
    %188 = arith.addf %187, %186 : vector<1x256xf32>
    %189 = arith.divf %187, %188 : vector<1x256xf32>
    %190 = vector.broadcast %189 : vector<1x256xf32> to vector<4x256xf32>
    %191 = arith.mulf %169, %190 : vector<4x256xf32>
    %c0_120 = arith.constant 0 : index
    %c0_121 = arith.constant 0 : index
    %192 = vector.load %arg9[%c0_120, %c0_121] : memref<4x4xf32, #tpu.memory_space<vmem>>, vector<4x4xf32>
    %cst_122 = arith.constant dense<0.000000e+00> : vector<4x256xf32>
    %193 = tpu.matmul %192, %191, %cst_122 {dimension_numbers = #tpu.dot_dimension_numbers<[1], [0], [0], [1], [0, 0, 1, 1], [], []>} : vector<4x4xf32>, vector<4x256xf32>, vector<4x256xf32> -> vector<4x256xf32>
    %c0_123 = arith.constant 0 : index
    %c0_124 = arith.constant 0 : index
    %194 = vector.load %arg10[%c0_123, %c0_124] : memref<4x1xf32, #tpu.memory_space<vmem>>, vector<4x1xf32>
    %195 = vector.broadcast %194 : vector<4x1xf32> to vector<4x256xf32>
    %196 = arith.addf %193, %195 : vector<4x256xf32>
    %c5_125 = arith.constant 5 : index
    %c0_126 = arith.constant 0 : index
    %c0_127 = arith.constant 0 : index
    %197 = vector.load %arg11[%c5_125, %c0_126, %c0_127] : memref<8x4x256xf32, #tpu.memory_space<vmem>>, vector<1x4x256xf32>
    %198 = vector.shape_cast %197 : vector<1x4x256xf32> to vector<4x256xf32>
    %199 = vector.shape_cast %196 : vector<4x256xf32> to vector<1x4x256xf32>
    tpu.vector_store %arg11[%c5_125, %c0_126, %c0_127], %199 {strides = array<i32>} : memref<8x4x256xf32, #tpu.memory_space<vmem>>, vector<1x4x256xf32>,
    %c6 = arith.constant 6 : index
    %c0_128 = arith.constant 0 : index
    %c0_129 = arith.constant 0 : index
    %200 = vector.load %arg3[%c6, %c0_128, %c0_129] : memref<8x4x256xf32, #tpu.memory_space<vmem>>, vector<1x4x256xf32>
    %201 = vector.shape_cast %200 : vector<1x4x256xf32> to vector<4x256xf32>
    %c0_130 = arith.constant 0 : index
    %c0_131 = arith.constant 0 : index
    %202 = vector.load %arg6[%c0_130, %c0_131] : memref<8x4xf32, #tpu.memory_space<vmem>>, vector<8x4xf32>
    %cst_132 = arith.constant dense<0.000000e+00> : vector<8x256xf32>
    %203 = tpu.matmul %202, %201, %cst_132 {dimension_numbers = #tpu.dot_dimension_numbers<[1], [0], [0], [1], [0, 0, 1, 1], [], []>} : vector<8x4xf32>, vector<4x256xf32>, vector<8x256xf32> -> vector<8x256xf32>
    %c0_133 = arith.constant 0 : index
    %c0_134 = arith.constant 0 : index
    %204 = vector.load %arg7[%c0_133, %c0_134] : memref<8x1xf32, #tpu.memory_space<vmem>>, vector<8x1xf32>
    %205 = vector.broadcast %204 : vector<8x1xf32> to vector<8x256xf32>
    %206 = arith.addf %203, %205 : vector<8x256xf32>
    %207 = arith.addf %7, %206 : vector<8x256xf32>
    %cst_135 = arith.constant 0.000000e+00 : f32
    %208 = vector.broadcast %cst_135 : f32 to vector<8x256xf32>
    %209 = arith.cmpf oge, %207, %208 : vector<8x256xf32>
    %210 = vector.broadcast %0 : f32 to vector<8x256xf32>
    %211 = arith.mulf %210, %207 : vector<8x256xf32>
    %212 = arith.select %209, %207, %211 : vector<8x256xi1>, vector<8x256xf32>
    %c0_136 = arith.constant 0 : index
    %c0_137 = arith.constant 0 : index
    %213 = vector.load %arg8[%c0_136, %c0_137] : memref<1x8xf32, #tpu.memory_space<vmem>>, vector<1x8xf32>
    %cst_138 = arith.constant dense<0.000000e+00> : vector<1x256xf32>
    %214 = tpu.matmul %213, %212, %cst_138 {dimension_numbers = #tpu.dot_dimension_numbers<[1], [0], [0], [1], [0, 0, 1, 1], [], []>} : vector<1x8xf32>, vector<8x256xf32>, vector<1x256xf32> -> vector<1x256xf32>
    %215 = vector.broadcast %1 : f32 to vector<1x256xf32>
    %216 = arith.addf %214, %215 : vector<1x256xf32>
    %217 = arith.negf %216 : vector<1x256xf32>
    %218 = math.exp %217 : vector<1x256xf32>
    %cst_139 = arith.constant 1.000000e+00 : f32
    %219 = vector.broadcast %cst_139 : f32 to vector<1x256xf32>
    %220 = arith.addf %219, %218 : vector<1x256xf32>
    %221 = arith.divf %219, %220 : vector<1x256xf32>
    %222 = vector.broadcast %221 : vector<1x256xf32> to vector<4x256xf32>
    %223 = arith.mulf %201, %222 : vector<4x256xf32>
    %c0_140 = arith.constant 0 : index
    %c0_141 = arith.constant 0 : index
    %224 = vector.load %arg9[%c0_140, %c0_141] : memref<4x4xf32, #tpu.memory_space<vmem>>, vector<4x4xf32>
    %cst_142 = arith.constant dense<0.000000e+00> : vector<4x256xf32>
    %225 = tpu.matmul %224, %223, %cst_142 {dimension_numbers = #tpu.dot_dimension_numbers<[1], [0], [0], [1], [0, 0, 1, 1], [], []>} : vector<4x4xf32>, vector<4x256xf32>, vector<4x256xf32> -> vector<4x256xf32>
    %c0_143 = arith.constant 0 : index
    %c0_144 = arith.constant 0 : index
    %226 = vector.load %arg10[%c0_143, %c0_144] : memref<4x1xf32, #tpu.memory_space<vmem>>, vector<4x1xf32>
    %227 = vector.broadcast %226 : vector<4x1xf32> to vector<4x256xf32>
    %228 = arith.addf %225, %227 : vector<4x256xf32>
    %c6_145 = arith.constant 6 : index
    %c0_146 = arith.constant 0 : index
    %c0_147 = arith.constant 0 : index
    %229 = vector.load %arg11[%c6_145, %c0_146, %c0_147] : memref<8x4x256xf32, #tpu.memory_space<vmem>>, vector<1x4x256xf32>
    %230 = vector.shape_cast %229 : vector<1x4x256xf32> to vector<4x256xf32>
    %231 = vector.shape_cast %228 : vector<4x256xf32> to vector<1x4x256xf32>
    tpu.vector_store %arg11[%c6_145, %c0_146, %c0_147], %231 {strides = array<i32>} : memref<8x4x256xf32, #tpu.memory_space<vmem>>, vector<1x4x256xf32>,
    %c7 = arith.constant 7 : index
    %c0_148 = arith.constant 0 : index
    %c0_149 = arith.constant 0 : index
    %232 = vector.load %arg3[%c7, %c0_148, %c0_149] : memref<8x4x256xf32, #tpu.memory_space<vmem>>, vector<1x4x256xf32>
    %233 = vector.shape_cast %232 : vector<1x4x256xf32> to vector<4x256xf32>
    %c0_150 = arith.constant 0 : index
    %c0_151 = arith.constant 0 : index
    %234 = vector.load %arg6[%c0_150, %c0_151] : memref<8x4xf32, #tpu.memory_space<vmem>>, vector<8x4xf32>
    %cst_152 = arith.constant dense<0.000000e+00> : vector<8x256xf32>
    %235 = tpu.matmul %234, %233, %cst_152 {dimension_numbers = #tpu.dot_dimension_numbers<[1], [0], [0], [1], [0, 0, 1, 1], [], []>} : vector<8x4xf32>, vector<4x256xf32>, vector<8x256xf32> -> vector<8x256xf32>
    %c0_153 = arith.constant 0 : index
    %c0_154 = arith.constant 0 : index
    %236 = vector.load %arg7[%c0_153, %c0_154] : memref<8x1xf32, #tpu.memory_space<vmem>>, vector<8x1xf32>
    %237 = vector.broadcast %236 : vector<8x1xf32> to vector<8x256xf32>
    %238 = arith.addf %235, %237 : vector<8x256xf32>
    %239 = arith.addf %7, %238 : vector<8x256xf32>
    %cst_155 = arith.constant 0.000000e+00 : f32
    %240 = vector.broadcast %cst_155 : f32 to vector<8x256xf32>
    %241 = arith.cmpf oge, %239, %240 : vector<8x256xf32>
    %242 = vector.broadcast %0 : f32 to vector<8x256xf32>
    %243 = arith.mulf %242, %239 : vector<8x256xf32>
    %244 = arith.select %241, %239, %243 : vector<8x256xi1>, vector<8x256xf32>
    %c0_156 = arith.constant 0 : index
    %c0_157 = arith.constant 0 : index
    %245 = vector.load %arg8[%c0_156, %c0_157] : memref<1x8xf32, #tpu.memory_space<vmem>>, vector<1x8xf32>
    %cst_158 = arith.constant dense<0.000000e+00> : vector<1x256xf32>
    %246 = tpu.matmul %245, %244, %cst_158 {dimension_numbers = #tpu.dot_dimension_numbers<[1], [0], [0], [1], [0, 0, 1, 1], [], []>} : vector<1x8xf32>, vector<8x256xf32>, vector<1x256xf32> -> vector<1x256xf32>
    %247 = vector.broadcast %1 : f32 to vector<1x256xf32>
    %248 = arith.addf %246, %247 : vector<1x256xf32>
    %249 = arith.negf %248 : vector<1x256xf32>
    %250 = math.exp %249 : vector<1x256xf32>
    %cst_159 = arith.constant 1.000000e+00 : f32
    %251 = vector.broadcast %cst_159 : f32 to vector<1x256xf32>
    %252 = arith.addf %251, %250 : vector<1x256xf32>
    %253 = arith.divf %251, %252 : vector<1x256xf32>
    %254 = vector.broadcast %253 : vector<1x256xf32> to vector<4x256xf32>
    %255 = arith.mulf %233, %254 : vector<4x256xf32>
    %c0_160 = arith.constant 0 : index
    %c0_161 = arith.constant 0 : index
    %256 = vector.load %arg9[%c0_160, %c0_161] : memref<4x4xf32, #tpu.memory_space<vmem>>, vector<4x4xf32>
    %cst_162 = arith.constant dense<0.000000e+00> : vector<4x256xf32>
    %257 = tpu.matmul %256, %255, %cst_162 {dimension_numbers = #tpu.dot_dimension_numbers<[1], [0], [0], [1], [0, 0, 1, 1], [], []>} : vector<4x4xf32>, vector<4x256xf32>, vector<4x256xf32> -> vector<4x256xf32>
    %c0_163 = arith.constant 0 : index
    %c0_164 = arith.constant 0 : index
    %258 = vector.load %arg10[%c0_163, %c0_164] : memref<4x1xf32, #tpu.memory_space<vmem>>, vector<4x1xf32>
    %259 = vector.broadcast %258 : vector<4x1xf32> to vector<4x256xf32>
    %260 = arith.addf %257, %259 : vector<4x256xf32>
    %c7_165 = arith.constant 7 : index
    %c0_166 = arith.constant 0 : index
    %c0_167 = arith.constant 0 : index
    %261 = vector.load %arg11[%c7_165, %c0_166, %c0_167] : memref<8x4x256xf32, #tpu.memory_space<vmem>>, vector<1x4x256xf32>
    %262 = vector.shape_cast %261 : vector<1x4x256xf32> to vector<4x256xf32>
    %263 = vector.shape_cast %260 : vector<4x256xf32> to vector<1x4x256xf32>
    tpu.vector_store %arg11[%c7_165, %c0_166, %c0_167], %263 {strides = array<i32>} : memref<8x4x256xf32, #tpu.memory_space<vmem>>, vector<1x4x256xf32>,
    return
  }
  func.func @transform_0(%arg0: i32) -> i32 {
    %c0_i32 = arith.constant 0 : i32
    %c0_i32_0 = arith.constant 0 : i32
    return %c0_i32 : i32
  }
  func.func @transform_1(%arg0: i32) -> (i32, i32) {
    %c0_i32 = arith.constant 0 : i32
    %c0_i32_0 = arith.constant 0 : i32
    return %c0_i32, %arg0 : i32, i32
  }
  func.func @transform_2(%arg0: i32) -> (i32, i32, i32) {
    %c0_i32 = arith.constant 0 : i32
    %c0_i32_0 = arith.constant 0 : i32
    %c0_i32_1 = arith.constant 0 : i32
    return %c0_i32, %c0_i32_0, %arg0 : i32, i32, i32
  }
  func.func @transform_3(%arg0: i32) -> (i32, i32) {
    %c0_i32 = arith.constant 0 : i32
    %c0_i32_0 = arith.constant 0 : i32
    %c0_i32_1 = arith.constant 0 : i32
    return %c0_i32, %c0_i32_0 : i32, i32
  }
  func.func @transform_4(%arg0: i32) -> (i32, i32) {
    %c0_i32 = arith.constant 0 : i32
    %c0_i32_0 = arith.constant 0 : i32
    %c0_i32_1 = arith.constant 0 : i32
    return %c0_i32, %c0_i32_0 : i32, i32
  }
  func.func @transform_5(%arg0: i32) -> (i32, i32) {
    %c0_i32 = arith.constant 0 : i32
    %c0_i32_0 = arith.constant 0 : i32
    %c0_i32_1 = arith.constant 0 : i32
    return %c0_i32, %c0_i32_0 : i32, i32
  }
  func.func @transform_6(%arg0: i32) -> (i32, i32) {
    %c0_i32 = arith.constant 0 : i32
    %c0_i32_0 = arith.constant 0 : i32
    %c0_i32_1 = arith.constant 0 : i32
    return %c0_i32, %c0_i32_0 : i32, i32
  }
  func.func @transform_7(%arg0: i32) -> (i32, i32) {
    %c0_i32 = arith.constant 0 : i32
    %c0_i32_0 = arith.constant 0 : i32
    %c0_i32_1 = arith.constant 0 : i32
    return %c0_i32, %c0_i32_0 : i32, i32
  }
  func.func @transform_8(%arg0: i32) -> (i32, i32) {
    %c0_i32 = arith.constant 0 : i32
    %c0_i32_0 = arith.constant 0 : i32
    %c0_i32_1 = arith.constant 0 : i32
    return %c0_i32, %c0_i32_0 : i32, i32
  }
  func.func @transform_9(%arg0: i32) -> (i32, i32) {
    %c0_i32 = arith.constant 0 : i32
    %c0_i32_0 = arith.constant 0 : i32
    %c0_i32_1 = arith.constant 0 : i32
    return %c0_i32, %c0_i32_0 : i32, i32
  }
  func.func @transform_10(%arg0: i32) -> (i32, i32, i32) {
    %c0_i32 = arith.constant 0 : i32
    %c0_i32_0 = arith.constant 0 : i32
    %c0_i32_1 = arith.constant 0 : i32
    return %c0_i32, %c0_i32_0, %arg0 : i32, i32, i32
  }
}

</mosaic_0001>

<llo_original>
// kernel: tpu_custom_call.1
$region0: #{tpu_custom_call.1}
  #allocation0 [shape = 'u32[]', space=smem, size = 0x4, offset = 0x4, fixed_abs, tag = 'smem constant byte address 0x4 - core index']
  #allocation1 [shape = 'u32[144,128]{1,0:T(1,128)}', space=vmem, size = 0x12000, scoped, tag = 'internal scratch']
  %s0 = inlined_call_operand.vmem [shape: f32[2], index: 0, kind: input, shape index: {}]
  %s1 = inlined_call_operand.vmem [shape: f32[4,512], index: 1, kind: input, shape index: {}]
  %s2 = inlined_call_operand.hbm [shape: f32[8,4,512], index: 2, kind: input, shape index: {}]
  %s3 = inlined_call_operand.vmem [shape: f32[8,4], index: 3, kind: input, shape index: {}]
  %s4 = inlined_call_operand.vmem [shape: f32[8,1], index: 4, kind: input, shape index: {}]
  %s5 = inlined_call_operand.vmem [shape: f32[8,4], index: 5, kind: input, shape index: {}]
  %s6 = inlined_call_operand.vmem [shape: f32[8,1], index: 6, kind: input, shape index: {}]
  %s7 = inlined_call_operand.vmem [shape: f32[1,8], index: 7, kind: input, shape index: {}]
  %s8 = inlined_call_operand.vmem [shape: f32[4,4], index: 8, kind: input, shape index: {}]
  %s9 = inlined_call_operand.vmem [shape: f32[4,1], index: 9, kind: input, shape index: {}]
  %s10 = inlined_call_operand.hbm [shape: f32[8,4,512], index: 10, kind: output, shape index: {}]
  %s11 = sld [smem:[#allocation0]]
  $region81: #{tpu_custom_call.1} parent=0
    _
  %s13 = ssub.s32 1, %s11
  %s14 = scalar_select 0, %s13, %s11
  $region1: #{tpu_custom_call.1} parent=0
    #allocation2 [shape = 'u8[512]{0}', space=smem, size = 0x200, scoped, tag = 'input window, operand 0, single buffered']
    #allocation3 [shape = 's32[2]{0}', space=sflag, size = 0x8, scoped, tag = 'scoped memory for tpu_custom_call.1']
    #allocation4 [shape = 's32[2]{0}', space=sflag, size = 0x8, scoped, tag = 'scoped memory for tpu_custom_call.1']
    #allocation5 [shape = 's32[2]{0}', space=sflag, size = 0x8, scoped, tag = 'scoped memory for tpu_custom_call.1']
    #allocation6 [shape = 'u8[65536]{0}', space=vmem, size = 0x10000, scoped, tag = 'input window, operand 2']
    #allocation7 [shape = 'u8[65536]{0}', space=vmem, size = 0x10000, scoped, tag = 'output window, operand 0']
    %15 = vsyncpa [#allocation5], 0
    %16 = vsyncpa [#allocation3], 0
    %s17 = scalar_lea.sflag [#allocation3], 1
    %18 = vsyncpa %s17, 0
    %19 = vsyncpa [#allocation4], 0
    %s20 = scalar_lea.sflag [#allocation4], 1
    %21 = vsyncpa %s20, 0
    loop: start=0, step=1, limit=4
    $region2: #{tpu_custom_call.1} parent=1 // loop_pre_header
      _
    $region3: #{tpu_custom_call.1} parent=1 // loop_header
      %s23 = sphi 0, %s27
      %p24 = scmp.ge.s32.totalorder %s23, 4
      %s31 = sphi 0, %s31
      %s33 = sphi 0, %s31
      %s34 = sphi 0, %s33
      %s48 = sphi 0, %s34
      %s54 = sphi 0, %s56
      %s57 = sphi 0, %s54
      %s58 = sphi 0, %s57
      %s74 = sphi 0, %s58
      %s80 = sphi 0, %s82
      %s83 = sphi 0, %s80
      %s84 = sphi 0, %s83
      %s100 = sphi 0, %s84
      %s104 = sphi 0, %s104
      %s106 = sphi 0, %s104
      %s107 = sphi 0, %s106
      %s121 = sphi 0, %s107
      %s125 = sphi 0, %s125
      %s127 = sphi 0, %s125
      %s128 = sphi 0, %s127
      %s142 = sphi 0, %s128
      %s146 = sphi 0, %s146
      %s148 = sphi 0, %s146
      %s149 = sphi 0, %s148
      %s163 = sphi 0, %s149
      %s167 = sphi 0, %s167
      %s169 = sphi 0, %s167
      %s170 = sphi 0, %s169
      %s184 = sphi 0, %s170
      %s188 = sphi 0, %s188
      %s190 = sphi 0, %s188
      %s191 = sphi 0, %s190
      %s205 = sphi 0, %s191
      %s209 = sphi 0, %s209
      %s211 = sphi 0, %s209
      %s212 = sphi 0, %s211
      %s226 = sphi 0, %s212
      %s230 = sphi 0, %s230
      %s232 = sphi 0, %s230
      %s233 = sphi 0, %s232
      %s247 = sphi 0, %s233
      %s253 = sphi 0, %s255
      %s256 = sphi 0, %s253
      %s257 = sphi 0, %s256
      %s273 = sphi 0, %s257
    $region4: #{tpu_custom_call.1} parent=1 // loop_header_branch
      %26 = sbr.rel (%p24) target = $region8
    $region5: #{tpu_custom_call.1} parent=1 // loop_body
      %s28 = ssub.s32 %s23, 1
      %s29 = ssub.s32 %s23, 2
      %s30 = sadd.s32 %s23, 1
      %s32 = sadd.s32 %s31, 1
      %p35 = scmp.eq.s32.totalorder %s23, 1
      %p36 = scmp.ne.s32.totalorder %s31, %s33
      %p37 = scmp.eq.s32.totalorder %s23, 0
      %p38 = por %p36, %p37
      %p39 = scmp.ne.s32.totalorder %s31, %s33
      %p40 = scmp.eq.s32.totalorder %s28, 1
      %p41 = por %p39, %p40
      %p42 = scmp.ne.s32.totalorder %s33, %s34
      %p43 = scmp.eq.s32.totalorder %s28, 0
      %p44 = por %p42, %p43
      %p45 = scmp.ne.s32.totalorder %s33, %s34
      %p46 = scmp.eq.s32.totalorder %s29, 1
      %p47 = por %p45, %p46
      %p49 = scmp.ne.s32.totalorder %s34, %s48
      %p50 = scmp.eq.s32.totalorder %s29, 0
      %p51 = por %p49, %p50
      %s52 = ssub.s32 %s23, %s30
      %p53 = scmp.eq.s32.totalorder %s52, 0
      %s55 = sadd.s32 %s54, 1
      %s56 = scalar_select %p53, %s54, %s55
      %p59 = pneg %p53
      %p60 = scmp.eq.s32.totalorder %s23, 1
      %p61 = por %p59, %p60
      %p62 = scmp.ne.s32.totalorder %s54, %s57
      %p63 = scmp.eq.s32.totalorder %s23, 0
      %p64 = por %p62, %p63
      %p65 = scmp.ne.s32.totalorder %s54, %s57
      %p66 = scmp.eq.s32.totalorder %s28, 1
      %p67 = por %p65, %p66
      %p68 = scmp.ne.s32.totalorder %s57, %s58
      %p69 = scmp.eq.s32.totalorder %s28, 0
      %p70 = por %p68, %p69
      %p71 = scmp.ne.s32.totalorder %s57, %s58
      %p72 = scmp.eq.s32.totalorder %s29, 1
      %p73 = por %p71, %p72
      %p75 = scmp.ne.s32.totalorder %s58, %s74
      %p76 = scmp.eq.s32.totalorder %s29, 0
      %p77 = por %p75, %p76
      %s78 = ssub.s32 %s23, %s30
      %p79 = scmp.eq.s32.totalorder %s78, 0
      %s81 = sadd.s32 %s80, 1
      %s82 = scalar_select %p79, %s80, %s81
      %p85 = pneg %p79
      %p86 = scmp.eq.s32.totalorder %s23, 1
      %p87 = por %p85, %p86
      %p88 = scmp.ne.s32.totalorder %s80, %s83
      %p89 = scmp.eq.s32.totalorder %s23, 0
      %p90 = por %p88, %p89
      %p91 = scmp.ne.s32.totalorder %s80, %s83
      %p92 = scmp.eq.s32.totalorder %s28, 1
      %p93 = por %p91, %p92
      %p94 = scmp.ne.s32.totalorder %s83, %s84
      %p95 = scmp.eq.s32.totalorder %s28, 0
      %p96 = por %p94, %p95
      %p97 = scmp.ne.s32.totalorder %s83, %s84
      %p98 = scmp.eq.s32.totalorder %s29, 1
      %p99 = por %p97, %p98
      %p101 = scmp.ne.s32.totalorder %s84, %s100
      %p102 = scmp.eq.s32.totalorder %s29, 0
      %p103 = por %p101, %p102
      %s105 = sadd.s32 %s104, 1
      %p108 = scmp.eq.s32.totalorder %s23, 1
      %p109 = scmp.ne.s32.totalorder %s104, %s106
      %p110 = scmp.eq.s32.totalorder %s23, 0
      %p111 = por %p109, %p110
      %p112 = scmp.ne.s32.totalorder %s104, %s106
      %p113 = scmp.eq.s32.totalorder %s28, 1
      %p114 = por %p112, %p113
      %p115 = scmp.ne.s32.totalorder %s106, %s107
      %p116 = scmp.eq.s32.totalorder %s28, 0
      %p117 = por %p115, %p116
      %p118 = scmp.ne.s32.totalorder %s106, %s107
      %p119 = scmp.eq.s32.totalorder %s29, 1
      %p120 = por %p118, %p119
      %p122 = scmp.ne.s32.totalorder %s107, %s121
      %p123 = scmp.eq.s32.totalorder %s29, 0
      %p124 = por %p122, %p123
      %s126 = sadd.s32 %s125, 1
      %p129 = scmp.eq.s32.totalorder %s23, 1
      %p130 = scmp.ne.s32.totalorder %s125, %s127
      %p131 = scmp.eq.s32.totalorder %s23, 0
      %p132 = por %p130, %p131
      %p133 = scmp.ne.s32.totalorder %s125, %s127
      %p134 = scmp.eq.s32.totalorder %s28, 1
      %p135 = por %p133, %p134
      %p136 = scmp.ne.s32.totalorder %s127, %s128
      %p137 = scmp.eq.s32.totalorder %s28, 0
      %p138 = por %p136, %p137
      %p139 = scmp.ne.s32.totalorder %s127, %s128
      %p140 = scmp.eq.s32.totalorder %s29, 1
      %p141 = por %p139, %p140
      %p143 = scmp.ne.s32.totalorder %s128, %s142
      %p144 = scmp.eq.s32.totalorder %s29, 0
      %p145 = por %p143, %p144
      %s147 = sadd.s32 %s146, 1
      %p150 = scmp.eq.s32.totalorder %s23, 1
      %p151 = scmp.ne.s32.totalorder %s146, %s148
      %p152 = scmp.eq.s32.totalorder %s23, 0
      %p153 = por %p151, %p152
      %p154 = scmp.ne.s32.totalorder %s146, %s148
      %p155 = scmp.eq.s32.totalorder %s28, 1
      %p156 = por %p154, %p155
      %p157 = scmp.ne.s32.totalorder %s148, %s149
      %p158 = scmp.eq.s32.totalorder %s28, 0
      %p159 = por %p157, %p158
      %p160 = scmp.ne.s32.totalorder %s148, %s149
      %p161 = scmp.eq.s32.totalorder %s29, 1
      %p162 = por %p160, %p161
      %p164 = scmp.ne.s32.totalorder %s149, %s163
      %p165 = scmp.eq.s32.totalorder %s29, 0
      %p166 = por %p164, %p165
      %s168 = sadd.s32 %s167, 1
      %p171 = scmp.eq.s32.totalorder %s23, 1
      %p172 = scmp.ne.s32.totalorder %s167, %s169
      %p173 = scmp.eq.s32.totalorder %s23, 0
      %p174 = por %p172, %p173
      %p175 = scmp.ne.s32.totalorder %s167, %s169
      %p176 = scmp.eq.s32.totalorder %s28, 1
      %p177 = por %p175, %p176
      %p178 = scmp.ne.s32.totalorder %s169, %s170
      %p179 = scmp.eq.s32.totalorder %s28, 0
      %p180 = por %p178, %p179
      %p181 = scmp.ne.s32.totalorder %s169, %s170
      %p182 = scmp.eq.s32.totalorder %s29, 1
      %p183 = por %p181, %p182
      %p185 = scmp.ne.s32.totalorder %s170, %s184
      %p186 = scmp.eq.s32.totalorder %s29, 0
      %p187 = por %p185, %p186
      %s189 = sadd.s32 %s188, 1
      %p192 = scmp.eq.s32.totalorder %s23, 1
      %p193 = scmp.ne.s32.totalorder %s188, %s190
      %p194 = scmp.eq.s32.totalorder %s23, 0
      %p195 = por %p193, %p194
      %p196 = scmp.ne.s32.totalorder %s188, %s190
      %p197 = scmp.eq.s32.totalorder %s28, 1
      %p198 = por %p196, %p197
      %p199 = scmp.ne.s32.totalorder %s190, %s191
      %p200 = scmp.eq.s32.totalorder %s28, 0
      %p201 = por %p199, %p200
      %p202 = scmp.ne.s32.totalorder %s190, %s191
      %p203 = scmp.eq.s32.totalorder %s29, 1
      %p204 = por %p202, %p203
      %p206 = scmp.ne.s32.totalorder %s191, %s205
      %p207 = scmp.eq.s32.totalorder %s29, 0
      %p208 = por %p206, %p207
      %s210 = sadd.s32 %s209, 1
      %p213 = scmp.eq.s32.totalorder %s23, 1
      %p214 = scmp.ne.s32.totalorder %s209, %s211
      %p215 = scmp.eq.s32.totalorder %s23, 0
      %p216 = por %p214, %p215
      %p217 = scmp.ne.s32.totalorder %s209, %s211
      %p218 = scmp.eq.s32.totalorder %s28, 1
      %p219 = por %p217, %p218
      %p220 = scmp.ne.s32.totalorder %s211, %s212
      %p221 = scmp.eq.s32.totalorder %s28, 0
      %p222 = por %p220, %p221
      %p223 = scmp.ne.s32.totalorder %s211, %s212
      %p224 = scmp.eq.s32.totalorder %s29, 1
      %p225 = por %p223, %p224
      %p227 = scmp.ne.s32.totalorder %s212, %s226
      %p228 = scmp.eq.s32.totalorder %s29, 0
      %p229 = por %p227, %p228
      %s231 = sadd.s32 %s230, 1
      %p234 = scmp.eq.s32.totalorder %s23, 1
      %p235 = scmp.ne.s32.totalorder %s230, %s232
      %p236 = scmp.eq.s32.totalorder %s23, 0
      %p237 = por %p235, %p236
      %p238 = scmp.ne.s32.totalorder %s230, %s232
      %p239 = scmp.eq.s32.totalorder %s28, 1
      %p240 = por %p238, %p239
      %p241 = scmp.ne.s32.totalorder %s232, %s233
      %p242 = scmp.eq.s32.totalorder %s28, 0
      %p243 = por %p241, %p242
      %p244 = scmp.ne.s32.totalorder %s232, %s233
      %p245 = scmp.eq.s32.totalorder %s29, 1
      %p246 = por %p244, %p245
      %p248 = scmp.ne.s32.totalorder %s233, %s247
      %p249 = scmp.eq.s32.totalorder %s29, 0
      %p250 = por %p248, %p249
      %s251 = ssub.s32 %s23, %s30
      %p252 = scmp.eq.s32.totalorder %s251, 0
      %s254 = sadd.s32 %s253, 1
      %s255 = scalar_select %p252, %s253, %s254
      %p258 = pneg %p252
      %p259 = scmp.eq.s32.totalorder %s23, 1
      %p260 = por %p258, %p259
      %p261 = scmp.ne.s32.totalorder %s253, %s256
      %p262 = scmp.eq.s32.totalorder %s23, 0
      %p263 = por %p261, %p262
      %p264 = scmp.ne.s32.totalorder %s253, %s256
      %p265 = scmp.eq.s32.totalorder %s28, 1
      %p266 = por %p264, %p265
      %p267 = scmp.ne.s32.totalorder %s256, %s257
      %p268 = scmp.eq.s32.totalorder %s28, 0
      %p269 = por %p267, %p268
      %p270 = scmp.ne.s32.totalorder %s256, %s257
      %p271 = scmp.eq.s32.totalorder %s29, 1
      %p272 = por %p270, %p271
      %p274 = scmp.ne.s32.totalorder %s257, %s273
      %p275 = scmp.eq.s32.totalorder %s29, 0
      %p276 = por %p274, %p275
      %p277 = scmp.le.s32.totalorder 1, %s23
      %p278 = scmp.lt.s32.totalorder %s23, 3
      %p279 = pnand %p277, %p278
      %p280 = pneg %p279
      // Predicated region
      $region9: #{tpu_custom_call.1} parent=5 // pred_check
        _
      $region10: #{tpu_custom_call.1} parent=5 // pred_check_branch
        %282 = sbr.rel (%p279) target = $region12
      $region11: #{tpu_custom_call.1} parent=5 // pred_region
        %s283 = ssub.s32 %s23, 1
        // Predicated region
        $region13: #{tpu_custom_call.1} parent=11 // pred_check
          %p284 = pneg %p44
        $region14: #{tpu_custom_call.1} parent=11 // pred_check_branch
          %286 = sbr.rel (%p284) target = $region16
        $region15: #{tpu_custom_call.1} parent=11 // pred_region
          %s288 = ssub.s32 16, 16
          %289 = vsyncadd [#allocation5], %s288
          %s291 = sshll.u32 %s0, 4
          %s292 = int_to_ptr.vmem [resolvable:$true] %s291
          %294 = dma.vmem_to_smem %s292, 16, [#allocation2], [#allocation5]
        $region16: #{tpu_custom_call.1} parent=11 // pred_fallthru
          _
        // Predicated region
        $region17: #{tpu_custom_call.1} parent=11 // pred_check
          %p295 = pneg %p117
        $region18: #{tpu_custom_call.1} parent=11 // pred_check_branch
          %297 = sbr.rel (%p295) target = $region20
        $region19: #{tpu_custom_call.1} parent=11 // pred_region
          _
        $region20: #{tpu_custom_call.1} parent=11 // pred_fallthru
          _
        // Predicated region
        $region21: #{tpu_custom_call.1} parent=11 // pred_check
          %p298 = pneg %p138
        $region22: #{tpu_custom_call.1} parent=11 // pred_check_branch
          %300 = sbr.rel (%p298) target = $region24
        $region23: #{tpu_custom_call.1} parent=11 // pred_region
          _
        $region24: #{tpu_custom_call.1} parent=11 // pred_fallthru
          _
        // Predicated region
        $region25: #{tpu_custom_call.1} parent=11 // pred_check
          %p301 = pneg %p159
        $region26: #{tpu_custom_call.1} parent=11 // pred_check_branch
          %303 = sbr.rel (%p301) target = $region28
        $region27: #{tpu_custom_call.1} parent=11 // pred_region
          _
        $region28: #{tpu_custom_call.1} parent=11 // pred_fallthru
          _
        // Predicated region
        $region29: #{tpu_custom_call.1} parent=11 // pred_check
          %p304 = pneg %p180
        $region30: #{tpu_custom_call.1} parent=11 // pred_check_branch
          %306 = sbr.rel (%p304) target = $region32
        $region31: #{tpu_custom_call.1} parent=11 // pred_region
          _
        $region32: #{tpu_custom_call.1} parent=11 // pred_fallthru
          _
        // Predicated region
        $region33: #{tpu_custom_call.1} parent=11 // pred_check
          %p307 = pneg %p201
        $region34: #{tpu_custom_call.1} parent=11 // pred_check_branch
          %309 = sbr.rel (%p307) target = $region36
        $region35: #{tpu_custom_call.1} parent=11 // pred_region
          _
        $region36: #{tpu_custom_call.1} parent=11 // pred_fallthru
          _
        // Predicated region
        $region37: #{tpu_custom_call.1} parent=11 // pred_check
          %p310 = pneg %p222
        $region38: #{tpu_custom_call.1} parent=11 // pred_check_branch
          %312 = sbr.rel (%p310) target = $region40
        $region39: #{tpu_custom_call.1} parent=11 // pred_region
          _
        $region40: #{tpu_custom_call.1} parent=11 // pred_fallthru
          _
        // Predicated region
        $region41: #{tpu_custom_call.1} parent=11 // pred_check
          %p313 = pneg %p243
        $region42: #{tpu_custom_call.1} parent=11 // pred_check_branch
          %315 = sbr.rel (%p313) target = $region44
        $region43: #{tpu_custom_call.1} parent=11 // pred_region
          _
        $region44: #{tpu_custom_call.1} parent=11 // pred_fallthru
          _
      $region12: #{tpu_custom_call.1} parent=5 // pred_fallthru
        _
      %p316 = scmp.lt.s32.totalorder %s23, 2
      // Predicated region
      $region45: #{tpu_custom_call.1} parent=5 // pred_check
        %p317 = pneg %p316
      $region46: #{tpu_custom_call.1} parent=5 // pred_check_branch
        %319 = sbr.rel (%p317) target = $region48
      $region47: #{tpu_custom_call.1} parent=5 // pred_region
        // Predicated region
        $region49: #{tpu_custom_call.1} parent=47 // pred_check
          %p320 = pneg %p64
        $region50: #{tpu_custom_call.1} parent=47 // pred_check_branch
          %322 = sbr.rel (%p320) target = $region52
        $region51: #{tpu_custom_call.1} parent=47 // pred_region
          %s323 = smul.u32 2, %s23
          %p324 = scmp.lt.s32.totalorder %s323, 3
          %s325 = scalar_select %p324, %s323, 3
          %s326 = smul.addr %s325, 4
          %s327 = scalar_lea.vmem %s1, %s326
          %s328 = smul.u32 2, %s23
        $region52: #{tpu_custom_call.1} parent=47 // pred_fallthru
          _
        // Predicated region
        $region53: #{tpu_custom_call.1} parent=47 // pred_check
          %p329 = pneg %p90
        $region54: #{tpu_custom_call.1} parent=47 // pred_check_branch
          %331 = sbr.rel (%p329) target = $region56
        $region55: #{tpu_custom_call.1} parent=47 // pred_region
          %s332 = sand.u32 %s80, 1
          %s333 = scalar_lea.sflag [#allocation3], %s332
          %s334 = sand.u32 %s80, 1
          %s335 = smul.addr %s334, 64
          %s336 = scalar_lea.vmem [#allocation6], %s335
          %s337 = smul.u32 2, %s23
          %s339 = ssub.s32 1024, 1024
          %340 = vsyncadd %s333, %s339
          %s341 = smul.addr %s337, 64
          %s342 = scalar_lea.hbm %s2, %s341
          %s343 = sshll.u32 %s336, 4
          %s344 = int_to_ptr.vmem [resolvable:$true] %s343
          %349 = dma.hbm_to_vmem [thread:$0]  %s342, 1024, %s344, %s333, 256, 128, 8
        $region56: #{tpu_custom_call.1} parent=47 // pred_fallthru
          _
      $region48: #{tpu_custom_call.1} parent=5 // pred_fallthru
        _
      %p350 = scmp.le.s32.totalorder 1, %s23
      %p351 = scmp.lt.s32.totalorder %s23, 3
      %p352 = pnand %p350, %p351
      %p353 = pneg %p352
      // Predicated region
      $region57: #{tpu_custom_call.1} parent=5 // pred_check
        _
      $region58: #{tpu_custom_call.1} parent=5 // pred_check_branch
        %355 = sbr.rel (%p352) target = $region60
      $region59: #{tpu_custom_call.1} parent=5 // pred_region
        %s356 = ssub.s32 %s23, 1
        // Predicated region
        $region61: #{tpu_custom_call.1} parent=59 // pred_check
          %p357 = pneg %p44
        $region62: #{tpu_custom_call.1} parent=59 // pred_check_branch
          %359 = sbr.rel (%p357) target = $region64
        $region63: #{tpu_custom_call.1} parent=59 // pred_region
          %360 = dma.done [#allocation5], 16
        $region64: #{tpu_custom_call.1} parent=59 // pred_fallthru
          _
        %s361 = sand.u32 %s83, 1
        %s362 = scalar_lea.sflag [#allocation3], %s361
        %s363 = sand.u32 %s83, 1
        %s364 = smul.addr %s363, 64
        %s365 = scalar_lea.vmem [#allocation6], %s364
        // Predicated region
        $region65: #{tpu_custom_call.1} parent=59 // pred_check
          %p366 = pneg %p96
        $region66: #{tpu_custom_call.1} parent=59 // pred_check_branch
          %368 = sbr.rel (%p366) target = $region68
        $region67: #{tpu_custom_call.1} parent=59 // pred_region
          %369 = dma.done %s362, 1024
        $region68: #{tpu_custom_call.1} parent=59 // pred_fallthru
          _
        %370 = sfence
        %p371 = pneg %p44
        %p372 = pneg %p41
        %s373 = smul.u32 2, %s28
        %p374 = scmp.lt.s32.totalorder %s373, 3
        %s375 = scalar_select %p374, %s373, 3
        %s376 = smul.addr %s375, 4
        %s377 = scalar_lea.vmem %s1, %s376
        %p378 = pneg %p70
        %p379 = pneg %p67
        %s380 = sand.u32 %s83, 1
        %s381 = scalar_lea.sflag [#allocation3], %s380
        %s382 = sand.u32 %s83, 1
        %s383 = smul.addr %s382, 64
        %s384 = scalar_lea.vmem [#allocation6], %s383
        %p385 = pneg %p96
        %p386 = pneg %p93
        %p387 = pneg %p117
        %p388 = pneg %p114
        %p389 = pneg %p138
        %p390 = pneg %p135
        %p391 = pneg %p159
        %p392 = pneg %p156
        %p393 = pneg %p180
        %p394 = pneg %p177
        %p395 = pneg %p201
        %p396 = pneg %p198
        %p397 = pneg %p222
        %p398 = pneg %p219
        %p399 = pneg %p243
        %p400 = pneg %p240
        %p401 = pneg %p269
        %p402 = pneg %p266
        %s403 = sand.u32 %s256, 1
        %s404 = scalar_lea.sflag [#allocation4], %s403
        %s405 = sand.u32 %s256, 1
        %s406 = smul.addr %s405, 64
        %s407 = scalar_lea.vmem [#allocation7], %s406
        %s408 = smul.u32 2, %s28
        %p409 = scmp.lt.s32.totalorder %s408, 3
        %s410 = scalar_select %p409, %s408, 3
        %s411 = smul.addr %s410, 4
        %s412 = scalar_lea.vmem %s1, %s411
        %s413 = smul.u32 2, %s28
        %s414 = smul.u32 2, %s28
        %s415 = smul.u32 2, %s28
        %s416 = sld [smem:[#allocation2]]
        %s417 = sld [smem:[#allocation2 + $0x1]]
        %v418 = vld [vmem:[%s3] sm:$0xff]
        %v419 = vld [vmem:[%s412] sm:$0xff]
        %v420 = vld [vmem:[%s4] sm:$0xff]
        %422 = vset.pattern.permute.xlu0 0
        %423 = vperm.xlu0 %422, %v420
        %v424 = vpop.permute.xlu0 %423
        %v427 = vcombine.high %v419, %v419
        %vm428 = vcmask 31744
        %v430 = vsel %vm428, %v418, 0
        %vm432 = vcmask 1043456
        %v433 = vsel %vm432, %v419, 0
        %v435 = vsel %vm432, %v427, 0
        %437 = vmatprep.subr.mxu0 0.0
        %438 = vmatpush1.msra.mxu0 0.0
        %439 = vmatprep.subr.mxu0 0.0
        %440 = vmatpush1.msra.mxu0 0.0
        %441 = vmatprep.subr.mxu0 0.0
        %442 = vmatpush1.msra.mxu0 0.0
        %443 = vmatprep.subr.mxu0 0.0
        %444 = vmatpush1.msra.mxu0 0.0
        %445 = vmatprep.subr.mxu0 0.0
        %446 = vmatpush1.msra.mxu0 0.0
        %447 = vmatprep.subr.mxu0 0.0
        %448 = vmatpush1.msra.mxu0 0.0
        %449 = vmatprep.subr.mxu0 0.0
        %450 = vmatpush1.msra.mxu0 0.0
        %451 = vmatprep.subr.mxu0 0.0
        %452 = vmatpush1.msra.mxu0 0.0
        %453 = vmatprep.subr.mxu0 0.0
        %454 = vmatpush1.msra.mxu0 0.0
        %455 = vmatprep.subr.mxu0 0.0
        %456 = vmatpush1.msra.mxu0 0.0
        %457 = vmatprep.subr.mxu0 0.0
        %458 = vmatpush1.msra.mxu0 0.0
        %459 = vmatprep.subr.mxu0 0.0
        %460 = vmatpush1.msra.mxu0 0.0
        %461 = vmatprep.subr.mxu0 0.0
        %462 = vmatpush1.msra.mxu0 0.0
        %463 = vmatprep.subr.mxu0 0.0
        %464 = vmatpush1.msra.mxu0 0.0
        %465 = vmatprep.subr.mxu0 0.0
        %466 = vmatpush1.msra.mxu0 0.0
        %467 = vmatprep.subr.mxu0 %v435
        %468 = vmatpush1.msra.mxu0 %v433
        %469 = vmatprep.subr.mxu0 0.0
        %470 = vmatpush2.msra.mxu0 0.0
        %471 = vmatprep.subr.mxu0 0.0
        %472 = vmatpush2.msra.mxu0 0.0
        %473 = vmatprep.subr.mxu0 0.0
        %474 = vmatpush2.msra.mxu0 0.0
        %475 = vmatprep.subr.mxu0 0.0
        %476 = vmatpush2.msra.mxu0 0.0
        %477 = vmatprep.subr.mxu0 0.0
        %478 = vmatpush2.msra.mxu0 0.0
        %479 = vmatprep.subr.mxu0 0.0
        %480 = vmatpush2.msra.mxu0 0.0
        %481 = vmatprep.subr.mxu0 0.0
        %482 = vmatpush2.msra.mxu0 0.0
        %483 = vmatprep.subr.mxu0 0.0
        %484 = vmatpush2.msra.mxu0 0.0
        %485 = vmatprep.subr.mxu0 0.0
        %486 = vmatpush2.msra.mxu0 0.0
        %487 = vmatprep.subr.mxu0 0.0
        %488 = vmatpush2.msra.mxu0 0.0
        %489 = vmatprep.subr.mxu0 0.0
        %490 = vmatpush2.msra.mxu0 0.0
        %491 = vmatprep.subr.mxu0 0.0
        %492 = vmatpush2.msra.mxu0 0.0
        %493 = vmatprep.subr.mxu0 0.0
        %494 = vmatpush2.msra.mxu0 0.0
        %495 = vmatprep.subr.mxu0 0.0
        %496 = vmatpush2.msra.mxu0 0.0
        %497 = vmatprep.subr.mxu0 0.0
        %498 = vmatpush2.msra.mxu0 0.0
        %499 = vmatprep.subr.mxu0 0.0
        %500 = vmatpush2.msra.mxu0 0.0
        %501 = vmatprep.mubr.f32.mxu0 0.0
        %502 = vmatmul.mubr.f32.gmra.mxu0 %v430
        %v503 = vpop.f32.mrf.mxu0
        %v504 = vadd.f32 %v424, %v503
        %v505 = vpop.f32.mrf.mxu0
        %v506 = vadd.f32 %v424, %v505
        %507 = vdwg.mxu0
        %v508 = vld [vmem:[%s365] sm:$0xff]
        %v509 = vld [vmem:[%s5] sm:$0xff]
        %v510 = vld [vmem:[%s6] sm:$0xff]
        %512 = vset.pattern.permute.xlu0 0
        %513 = vperm.xlu0 %512, %v510
        %v514 = vpop.permute.xlu0 %513
        %v517 = vcombine.high %v508, %v508
        %v519 = vsel %vm428, %v509, 0
        %v521 = vsel %vm432, %v508, 0
        %v523 = vsel %vm432, %v517, 0
        %525 = vmatprep.subr.mxu0 0.0
        %526 = vmatpush1.msra.mxu0 0.0
        %527 = vmatprep.subr.mxu0 0.0
        %528 = vmatpush1.msra.mxu0 0.0
        %529 = vmatprep.subr.mxu0 0.0
        %530 = vmatpush1.msra.mxu0 0.0
        %531 = vmatprep.subr.mxu0 0.0
        %532 = vmatpush1.msra.mxu0 0.0
        %533 = vmatprep.subr.mxu0 0.0
        %534 = vmatpush1.msra.mxu0 0.0
        %535 = vmatprep.subr.mxu0 0.0
        %536 = vmatpush1.msra.mxu0 0.0
        %537 = vmatprep.subr.mxu0 0.0
        %538 = vmatpush1.msra.mxu0 0.0
        %539 = vmatprep.subr.mxu0 0.0
        %540 = vmatpush1.msra.mxu0 0.0
        %541 = vmatprep.subr.mxu0 0.0
        %542 = vmatpush1.msra.mxu0 0.0
        %543 = vmatprep.subr.mxu0 0.0
        %544 = vmatpush1.msra.mxu0 0.0
        %545 = vmatprep.subr.mxu0 0.0
        %546 = vmatpush1.msra.mxu0 0.0
        %547 = vmatprep.subr.mxu0 0.0
        %548 = vmatpush1.msra.mxu0 0.0
        %549 = vmatprep.subr.mxu0 0.0
        %550 = vmatpush1.msra.mxu0 0.0
        %551 = vmatprep.subr.mxu0 0.0
        %552 = vmatpush1.msra.mxu0 0.0
        %553 = vmatprep.subr.mxu0 0.0
        %554 = vmatpush1.msra.mxu0 0.0
        %555 = vmatprep.subr.mxu0 %v523
        %556 = vmatpush1.msra.mxu0 %v521
        %557 = vmatprep.subr.mxu0 0.0
        %558 = vmatpush2.msra.mxu0 0.0
        %559 = vmatprep.subr.mxu0 0.0
        %560 = vmatpush2.msra.mxu0 0.0
        %561 = vmatprep.subr.mxu0 0.0
        %562 = vmatpush2.msra.mxu0 0.0
        %563 = vmatprep.subr.mxu0 0.0
        %564 = vmatpush2.msra.mxu0 0.0
        %565 = vmatprep.subr.mxu0 0.0
        %566 = vmatpush2.msra.mxu0 0.0
        %567 = vmatprep.subr.mxu0 0.0
        %568 = vmatpush2.msra.mxu0 0.0
        %569 = vmatprep.subr.mxu0 0.0
        %570 = vmatpush2.msra.mxu0 0.0
        %571 = vmatprep.subr.mxu0 0.0
        %572 = vmatpush2.msra.mxu0 0.0
        %573 = vmatprep.subr.mxu0 0.0
        %574 = vmatpush2.msra.mxu0 0.0
        %575 = vmatprep.subr.mxu0 0.0
        %576 = vmatpush2.msra.mxu0 0.0
        %577 = vmatprep.subr.mxu0 0.0
        %578 = vmatpush2.msra.mxu0 0.0
        %579 = vmatprep.subr.mxu0 0.0
        %580 = vmatpush2.msra.mxu0 0.0
        %581 = vmatprep.subr.mxu0 0.0
        %582 = vmatpush2.msra.mxu0 0.0
        %583 = vmatprep.subr.mxu0 0.0
        %584 = vmatpush2.msra.mxu0 0.0
        %585 = vmatprep.subr.mxu0 0.0
        %586 = vmatpush2.msra.mxu0 0.0
        %587 = vmatprep.subr.mxu0 0.0
        %588 = vmatpush2.msra.mxu0 0.0
        %589 = vmatprep.mubr.f32.mxu0 0.0
        %590 = vmatmul.mubr.f32.gmra.mxu0 %v519
        %v591 = vpop.f32.mrf.mxu0
        %v592 = vadd.f32 %v514, %v591
        %v593 = vpop.f32.mrf.mxu0
        %v594 = vadd.f32 %v514, %v593
        %595 = vdwg.mxu0
        %v596 = vadd.f32 %v504, %v592
        %v597 = vadd.f32 %v506, %v594
        %vm598 = vcmp.ge.f32.partialorder %v596, 0.0
        %vm599 = vcmp.ge.f32.partialorder %v597, 0.0
        %v600 = vstv %s416
        %v601 = vmul.f32 %v600, %v596
        %v602 = vmul.f32 %v600, %v597
        %v603 = vsel %vm598, %v596, %v601
        %v604 = vsel %vm599, %v597, %v602
        %v605 = vld [vmem:[%s7] sm:$0x1]
        %v606 = vstv %s417
        %vm607 = vcmask 64512
        %v609 = vsel %vm607, %v605, 0
        %611 = vmatprep.subr.mxu0 0.0
        %612 = vmatpush1.msra.mxu0 0.0
        %613 = vmatprep.subr.mxu0 0.0
        %614 = vmatpush1.msra.mxu0 0.0
        %615 = vmatprep.subr.mxu0 0.0
        %616 = vmatpush1.msra.mxu0 0.0
        %617 = vmatprep.subr.mxu0 0.0
        %618 = vmatpush1.msra.mxu0 0.0
        %619 = vmatprep.subr.mxu0 0.0
        %620 = vmatpush1.msra.mxu0 0.0
        %621 = vmatprep.subr.mxu0 0.0
        %622 = vmatpush1.msra.mxu0 0.0
        %623 = vmatprep.subr.mxu0 0.0
        %624 = vmatpush1.msra.mxu0 0.0
        %625 = vmatprep.subr.mxu0 0.0
        %626 = vmatpush1.msra.mxu0 0.0
        %627 = vmatprep.subr.mxu0 0.0
        %628 = vmatpush1.msra.mxu0 0.0
        %629 = vmatprep.subr.mxu0 0.0
        %630 = vmatpush1.msra.mxu0 0.0
        %631 = vmatprep.subr.mxu0 0.0
        %632 = vmatpush1.msra.mxu0 0.0
        %633 = vmatprep.subr.mxu0 0.0
        %634 = vmatpush1.msra.mxu0 0.0
        %635 = vmatprep.subr.mxu0 0.0
        %636 = vmatpush1.msra.mxu0 0.0
        %637 = vmatprep.subr.mxu0 0.0
        %638 = vmatpush1.msra.mxu0 0.0
        %639 = vmatprep.subr.mxu0 0.0
        %640 = vmatpush1.msra.mxu0 0.0
        %641 = vmatprep.subr.mxu0 %v604
        %642 = vmatpush1.msra.mxu0 %v603
        %643 = vmatprep.subr.mxu0 0.0
        %644 = vmatpush2.msra.mxu0 0.0
        %645 = vmatprep.subr.mxu0 0.0
        %646 = vmatpush2.msra.mxu0 0.0
        %647 = vmatprep.subr.mxu0 0.0
        %648 = vmatpush2.msra.mxu0 0.0
        %649 = vmatprep.subr.mxu0 0.0
        %650 = vmatpush2.msra.mxu0 0.0
        %651 = vmatprep.subr.mxu0 0.0
        %652 = vmatpush2.msra.mxu0 0.0
        %653 = vmatprep.subr.mxu0 0.0
        %654 = vmatpush2.msra.mxu0 0.0
        %655 = vmatprep.subr.mxu0 0.0
        %656 = vmatpush2.msra.mxu0 0.0
        %657 = vmatprep.subr.mxu0 0.0
        %658 = vmatpush2.msra.mxu0 0.0
        %659 = vmatprep.subr.mxu0 0.0
        %660 = vmatpush2.msra.mxu0 0.0
        %661 = vmatprep.subr.mxu0 0.0
        %662 = vmatpush2.msra.mxu0 0.0
        %663 = vmatprep.subr.mxu0 0.0
        %664 = vmatpush2.msra.mxu0 0.0
        %665 = vmatprep.subr.mxu0 0.0
        %666 = vmatpush2.msra.mxu0 0.0
        %667 = vmatprep.subr.mxu0 0.0
        %668 = vmatpush2.msra.mxu0 0.0
        %669 = vmatprep.subr.mxu0 0.0
        %670 = vmatpush2.msra.mxu0 0.0
        %671 = vmatprep.subr.mxu0 0.0
        %672 = vmatpush2.msra.mxu0 0.0
        %673 = vmatprep.subr.mxu0 0.0
        %674 = vmatpush2.msra.mxu0 0.0
        %675 = vmatprep.mubr.f32.mxu0 0.0
        %676 = vmatmul.mubr.f32.gmra.mxu0 %v609
        %v677 = vpop.f32.mrf.mxu0
        %v678 = vadd.f32 %v606, %v677
        %v679 = vpop.f32.mrf.mxu0
        %v680 = vadd.f32 %v606, %v679
        %681 = vdwg.mxu0
        %v682 = vxor.u32 %v678, 2147483648
        %v683 = vxor.u32 %v680, 2147483648
        %v684 = vmul.f32 %v682, 1.442695
        %v685 = vpow.pop %v684
        %v686 = vmul.f32 %v683, 1.442695
        %v687 = vpow.pop %v686
        %v688 = vadd.f32 %v685, 1.0
        %v689 = vadd.f32 %v687, 1.0
        %v690 = vrcp.pop %v688
        %v691 = vmul.f32 1.0, %v690
        %v692 = vrcp.pop %v689
        %v693 = vmul.f32 1.0, %v692
        %v694 = vlaneseq
        %v695 = vshrl.u32 %v694, 7
        %v696 = vsub.s32 0, %v695
        %v697 = vrot.slane %v691, %v696
        %v698 = vlaneseq
        %v699 = vshrl.u32 %v698, 7
        %v700 = vsub.s32 0, %v699
        %v701 = vrot.slane %v693, %v700
        %v704 = vcombine.low %v697, %v701
        %v706 = vmul.f32 %v508, %v704
        %v707 = vld [vmem:[%s8] sm:$0xf]
        %v708 = vld [vmem:[%s9] sm:$0xf]
        %710 = vset.pattern.permute.xlu0 0
        %711 = vperm.xlu0 %710, %v708
        %v712 = vpop.permute.xlu0 %711
        %v715 = vcombine.high %v706, %v706
        %v717 = vsel %vm428, %v707, 0
        %v719 = vsel %vm432, %v706, 0
        %v721 = vsel %vm432, %v715, 0
        %723 = vmatprep.subr.mxu0 0.0
        %724 = vmatpush1.msra.mxu0 0.0
        %725 = vmatprep.subr.mxu0 0.0
        %726 = vmatpush1.msra.mxu0 0.0
        %727 = vmatprep.subr.mxu0 0.0
        %728 = vmatpush1.msra.mxu0 0.0
        %729 = vmatprep.subr.mxu0 0.0
        %730 = vmatpush1.msra.mxu0 0.0
        %731 = vmatprep.subr.mxu0 0.0
        %732 = vmatpush1.msra.mxu0 0.0
        %733 = vmatprep.subr.mxu0 0.0
        %734 = vmatpush1.msra.mxu0 0.0
        %735 = vmatprep.subr.mxu0 0.0
        %736 = vmatpush1.msra.mxu0 0.0
        %737 = vmatprep.subr.mxu0 0.0
        %738 = vmatpush1.msra.mxu0 0.0
        %739 = vmatprep.subr.mxu0 0.0
        %740 = vmatpush1.msra.mxu0 0.0
        %741 = vmatprep.subr.mxu0 0.0
        %742 = vmatpush1.msra.mxu0 0.0
        %743 = vmatprep.subr.mxu0 0.0
        %744 = vmatpush1.msra.mxu0 0.0
        %745 = vmatprep.subr.mxu0 0.0
        %746 = vmatpush1.msra.mxu0 0.0
        %747 = vmatprep.subr.mxu0 0.0
        %748 = vmatpush1.msra.mxu0 0.0
        %749 = vmatprep.subr.mxu0 0.0
        %750 = vmatpush1.msra.mxu0 0.0
        %751 = vmatprep.subr.mxu0 0.0
        %752 = vmatpush1.msra.mxu0 0.0
        %753 = vmatprep.subr.mxu0 %v721
        %754 = vmatpush1.msra.mxu0 %v719
        %755 = vmatprep.subr.mxu0 0.0
        %756 = vmatpush2.msra.mxu0 0.0
        %757 = vmatprep.subr.mxu0 0.0
        %758 = vmatpush2.msra.mxu0 0.0
        %759 = vmatprep.subr.mxu0 0.0
        %760 = vmatpush2.msra.mxu0 0.0
        %761 = vmatprep.subr.mxu0 0.0
        %762 = vmatpush2.msra.mxu0 0.0
        %763 = vmatprep.subr.mxu0 0.0
        %764 = vmatpush2.msra.mxu0 0.0
        %765 = vmatprep.subr.mxu0 0.0
        %766 = vmatpush2.msra.mxu0 0.0
        %767 = vmatprep.subr.mxu0 0.0
        %768 = vmatpush2.msra.mxu0 0.0
        %769 = vmatprep.subr.mxu0 0.0
        %770 = vmatpush2.msra.mxu0 0.0
        %771 = vmatprep.subr.mxu0 0.0
        %772 = vmatpush2.msra.mxu0 0.0
        %773 = vmatprep.subr.mxu0 0.0
        %774 = vmatpush2.msra.mxu0 0.0
        %775 = vmatprep.subr.mxu0 0.0
        %776 = vmatpush2.msra.mxu0 0.0
        %777 = vmatprep.subr.mxu0 0.0
        %778 = vmatpush2.msra.mxu0 0.0
        %779 = vmatprep.subr.mxu0 0.0
        %780 = vmatpush2.msra.mxu0 0.0
        %781 = vmatprep.subr.mxu0 0.0
        %782 = vmatpush2.msra.mxu0 0.0
        %783 = vmatprep.subr.mxu0 0.0
        %784 = vmatpush2.msra.mxu0 0.0
        %785 = vmatprep.subr.mxu0 0.0
        %786 = vmatpush2.msra.mxu0 0.0
        %787 = vmatprep.mubr.f32.mxu0 0.0
        %788 = vmatmul.mubr.f32.gmra.mxu0 %v717
        %v789 = vpop.f32.mrf.mxu0
        %v790 = vadd.f32 %v712, %v789
        %v791 = vpop.f32.mrf.mxu0
        %v792 = vadd.f32 %v712, %v791
        %793 = vdwg.mxu0
        %v796 = vcombine.low %v790, %v792
        %798 = vst [vmem:[%s407] sm:$0xff] %v796
        %s799 = scalar_lea.vmem %s365, 8 [#allocation6]
        %v800 = vld [vmem:[%s799] sm:$0xff]
        %v801 = vld [vmem:[%s5] sm:$0xff]
        %v802 = vld [vmem:[%s6] sm:$0xff]
        %804 = vset.pattern.permute.xlu0 0
        %805 = vperm.xlu0 %804, %v802
        %v806 = vpop.permute.xlu0 %805
        %v809 = vcombine.high %v800, %v800
        %v811 = vsel %vm428, %v801, 0
        %v813 = vsel %vm432, %v800, 0
        %v815 = vsel %vm432, %v809, 0
        %817 = vmatprep.subr.mxu0 0.0
        %818 = vmatpush1.msra.mxu0 0.0
        %819 = vmatprep.subr.mxu0 0.0
        %820 = vmatpush1.msra.mxu0 0.0
        %821 = vmatprep.subr.mxu0 0.0
        %822 = vmatpush1.msra.mxu0 0.0
        %823 = vmatprep.subr.mxu0 0.0
        %824 = vmatpush1.msra.mxu0 0.0
        %825 = vmatprep.subr.mxu0 0.0
        %826 = vmatpush1.msra.mxu0 0.0
        %827 = vmatprep.subr.mxu0 0.0
        %828 = vmatpush1.msra.mxu0 0.0
        %829 = vmatprep.subr.mxu0 0.0
        %830 = vmatpush1.msra.mxu0 0.0
        %831 = vmatprep.subr.mxu0 0.0
        %832 = vmatpush1.msra.mxu0 0.0
        %833 = vmatprep.subr.mxu0 0.0
        %834 = vmatpush1.msra.mxu0 0.0
        %835 = vmatprep.subr.mxu0 0.0
        %836 = vmatpush1.msra.mxu0 0.0
        %837 = vmatprep.subr.mxu0 0.0
        %838 = vmatpush1.msra.mxu0 0.0
        %839 = vmatprep.subr.mxu0 0.0
        %840 = vmatpush1.msra.mxu0 0.0
        %841 = vmatprep.subr.mxu0 0.0
        %842 = vmatpush1.msra.mxu0 0.0
        %843 = vmatprep.subr.mxu0 0.0
        %844 = vmatpush1.msra.mxu0 0.0
        %845 = vmatprep.subr.mxu0 0.0
        %846 = vmatpush1.msra.mxu0 0.0
        %847 = vmatprep.subr.mxu0 %v815
        %848 = vmatpush1.msra.mxu0 %v813
        %849 = vmatprep.subr.mxu0 0.0
        %850 = vmatpush2.msra.mxu0 0.0
        %851 = vmatprep.subr.mxu0 0.0
        %852 = vmatpush2.msra.mxu0 0.0
        %853 = vmatprep.subr.mxu0 0.0
        %854 = vmatpush2.msra.mxu0 0.0
        %855 = vmatprep.subr.mxu0 0.0
        %856 = vmatpush2.msra.mxu0 0.0
        %857 = vmatprep.subr.mxu0 0.0
        %858 = vmatpush2.msra.mxu0 0.0
        %859 = vmatprep.subr.mxu0 0.0
        %860 = vmatpush2.msra.mxu0 0.0
        %861 = vmatprep.subr.mxu0 0.0
        %862 = vmatpush2.msra.mxu0 0.0
        %863 = vmatprep.subr.mxu0 0.0
        %864 = vmatpush2.msra.mxu0 0.0
        %865 = vmatprep.subr.mxu0 0.0
        %866 = vmatpush2.msra.mxu0 0.0
        %867 = vmatprep.subr.mxu0 0.0
        %868 = vmatpush2.msra.mxu0 0.0
        %869 = vmatprep.subr.mxu0 0.0
        %870 = vmatpush2.msra.mxu0 0.0
        %871 = vmatprep.subr.mxu0 0.0
        %872 = vmatpush2.msra.mxu0 0.0
        %873 = vmatprep.subr.mxu0 0.0
        %874 = vmatpush2.msra.mxu0 0.0
        %875 = vmatprep.subr.mxu0 0.0
        %876 = vmatpush2.msra.mxu0 0.0
        %877 = vmatprep.subr.mxu0 0.0
        %878 = vmatpush2.msra.mxu0 0.0
        %879 = vmatprep.subr.mxu0 0.0
        %880 = vmatpush2.msra.mxu0 0.0
        %881 = vmatprep.mubr.f32.mxu0 0.0
        %882 = vmatmul.mubr.f32.gmra.mxu0 %v811
        %v883 = vpop.f32.mrf.mxu0
        %v884 = vadd.f32 %v806, %v883
        %v885 = vpop.f32.mrf.mxu0
        %v886 = vadd.f32 %v806, %v885
        %887 = vdwg.mxu0
        %v888 = vadd.f32 %v504, %v884
        %v889 = vadd.f32 %v506, %v886
        %vm890 = vcmp.ge.f32.partialorder %v888, 0.0
        %vm891 = vcmp.ge.f32.partialorder %v889, 0.0
        %v892 = vmul.f32 %v600, %v888
        %v893 = vmul.f32 %v600, %v889
        %v894 = vsel %vm890, %v888, %v892
        %v895 = vsel %vm891, %v889, %v893
        %v896 = vld [vmem:[%s7] sm:$0x1]
        %v898 = vsel %vm607, %v896, 0
        %900 = vmatprep.subr.mxu0 0.0
        %901 = vmatpush1.msra.mxu0 0.0
        %902 = vmatprep.subr.mxu0 0.0
        %903 = vmatpush1.msra.mxu0 0.0
        %904 = vmatprep.subr.mxu0 0.0
        %905 = vmatpush1.msra.mxu0 0.0
        %906 = vmatprep.subr.mxu0 0.0
        %907 = vmatpush1.msra.mxu0 0.0
        %908 = vmatprep.subr.mxu0 0.0
        %909 = vmatpush1.msra.mxu0 0.0
        %910 = vmatprep.subr.mxu0 0.0
        %911 = vmatpush1.msra.mxu0 0.0
        %912 = vmatprep.subr.mxu0 0.0
        %913 = vmatpush1.msra.mxu0 0.0
        %914 = vmatprep.subr.mxu0 0.0
        %915 = vmatpush1.msra.mxu0 0.0
        %916 = vmatprep.subr.mxu0 0.0
        %917 = vmatpush1.msra.mxu0 0.0
        %918 = vmatprep.subr.mxu0 0.0
        %919 = vmatpush1.msra.mxu0 0.0
        %920 = vmatprep.subr.mxu0 0.0
        %921 = vmatpush1.msra.mxu0 0.0
        %922 = vmatprep.subr.mxu0 0.0
        %923 = vmatpush1.msra.mxu0 0.0
        %924 = vmatprep.subr.mxu0 0.0
        %925 = vmatpush1.msra.mxu0 0.0
        %926 = vmatprep.subr.mxu0 0.0
        %927 = vmatpush1.msra.mxu0 0.0
        %928 = vmatprep.subr.mxu0 0.0
        %929 = vmatpush1.msra.mxu0 0.0
        %930 = vmatprep.subr.mxu0 %v895
        %931 = vmatpush1.msra.mxu0 %v894
        %932 = vmatprep.subr.mxu0 0.0
        %933 = vmatpush2.msra.mxu0 0.0
        %934 = vmatprep.subr.mxu0 0.0
        %935 = vmatpush2.msra.mxu0 0.0
        %936 = vmatprep.subr.mxu0 0.0
        %937 = vmatpush2.msra.mxu0 0.0
        %938 = vmatprep.subr.mxu0 0.0
        %939 = vmatpush2.msra.mxu0 0.0
        %940 = vmatprep.subr.mxu0 0.0
        %941 = vmatpush2.msra.mxu0 0.0
        %942 = vmatprep.subr.mxu0 0.0
        %943 = vmatpush2.msra.mxu0 0.0
        %944 = vmatprep.subr.mxu0 0.0
        %945 = vmatpush2.msra.mxu0 0.0
        %946 = vmatprep.subr.mxu0 0.0
        %947 = vmatpush2.msra.mxu0 0.0
        %948 = vmatprep.subr.mxu0 0.0
        %949 = vmatpush2.msra.mxu0 0.0
        %950 = vmatprep.subr.mxu0 0.0
        %951 = vmatpush2.msra.mxu0 0.0
        %952 = vmatprep.subr.mxu0 0.0
        %953 = vmatpush2.msra.mxu0 0.0
        %954 = vmatprep.subr.mxu0 0.0
        %955 = vmatpush2.msra.mxu0 0.0
        %956 = vmatprep.subr.mxu0 0.0
        %957 = vmatpush2.msra.mxu0 0.0
        %958 = vmatprep.subr.mxu0 0.0
        %959 = vmatpush2.msra.mxu0 0.0
        %960 = vmatprep.subr.mxu0 0.0
        %961 = vmatpush2.msra.mxu0 0.0
        %962 = vmatprep.subr.mxu0 0.0
        %963 = vmatpush2.msra.mxu0 0.0
        %964 = vmatprep.mubr.f32.mxu0 0.0
        %965 = vmatmul.mubr.f32.gmra.mxu0 %v898
        %v966 = vpop.f32.mrf.mxu0
        %v967 = vadd.f32 %v606, %v966
        %v968 = vpop.f32.mrf.mxu0
        %v969 = vadd.f32 %v606, %v968
        %970 = vdwg.mxu0
        %v971 = vxor.u32 %v967, 2147483648
        %v972 = vxor.u32 %v969, 2147483648
        %v973 = vmul.f32 %v971, 1.442695
        %v974 = vpow.pop %v973
        %v975 = vmul.f32 %v972, 1.442695
        %v976 = vpow.pop %v975
        %v977 = vadd.f32 %v974, 1.0
        %v978 = vadd.f32 %v976, 1.0
        %v979 = vrcp.pop %v977
        %v980 = vmul.f32 1.0, %v979
        %v981 = vrcp.pop %v978
        %v982 = vmul.f32 1.0, %v981
        %v983 = vlaneseq
        %v984 = vshrl.u32 %v983, 7
        %v985 = vsub.s32 0, %v984
        %v986 = vrot.slane %v980, %v985
        %v987 = vlaneseq
        %v988 = vshrl.u32 %v987, 7
        %v989 = vsub.s32 0, %v988
        %v990 = vrot.slane %v982, %v989
        %v993 = vcombine.low %v986, %v990
        %v995 = vmul.f32 %v800, %v993
        %v996 = vld [vmem:[%s8] sm:$0xf]
        %v997 = vld [vmem:[%s9] sm:$0xf]
        %999 = vset.pattern.permute.xlu0 0
        %1000 = vperm.xlu0 %999, %v997
        %v1001 = vpop.permute.xlu0 %1000
        %v1004 = vcombine.high %v995, %v995
        %v1006 = vsel %vm428, %v996, 0
        %v1008 = vsel %vm432, %v995, 0
        %v1010 = vsel %vm432, %v1004, 0
        %1012 = vmatprep.subr.mxu0 0.0
        %1013 = vmatpush1.msra.mxu0 0.0
        %1014 = vmatprep.subr.mxu0 0.0
        %1015 = vmatpush1.msra.mxu0 0.0
        %1016 = vmatprep.subr.mxu0 0.0
        %1017 = vmatpush1.msra.mxu0 0.0
        %1018 = vmatprep.subr.mxu0 0.0
        %1019 = vmatpush1.msra.mxu0 0.0
        %1020 = vmatprep.subr.mxu0 0.0
        %1021 = vmatpush1.msra.mxu0 0.0
        %1022 = vmatprep.subr.mxu0 0.0
        %1023 = vmatpush1.msra.mxu0 0.0
        %1024 = vmatprep.subr.mxu0 0.0
        %1025 = vmatpush1.msra.mxu0 0.0
        %1026 = vmatprep.subr.mxu0 0.0
        %1027 = vmatpush1.msra.mxu0 0.0
        %1028 = vmatprep.subr.mxu0 0.0
        %1029 = vmatpush1.msra.mxu0 0.0
        %1030 = vmatprep.subr.mxu0 0.0
        %1031 = vmatpush1.msra.mxu0 0.0
        %1032 = vmatprep.subr.mxu0 0.0
        %1033 = vmatpush1.msra.mxu0 0.0
        %1034 = vmatprep.subr.mxu0 0.0
        %1035 = vmatpush1.msra.mxu0 0.0
        %1036 = vmatprep.subr.mxu0 0.0
        %1037 = vmatpush1.msra.mxu0 0.0
        %1038 = vmatprep.subr.mxu0 0.0
        %1039 = vmatpush1.msra.mxu0 0.0
        %1040 = vmatprep.subr.mxu0 0.0
        %1041 = vmatpush1.msra.mxu0 0.0
        %1042 = vmatprep.subr.mxu0 %v1010
        %1043 = vmatpush1.msra.mxu0 %v1008
        %1044 = vmatprep.subr.mxu0 0.0
        %1045 = vmatpush2.msra.mxu0 0.0
        %1046 = vmatprep.subr.mxu0 0.0
        %1047 = vmatpush2.msra.mxu0 0.0
        %1048 = vmatprep.subr.mxu0 0.0
        %1049 = vmatpush2.msra.mxu0 0.0
        %1050 = vmatprep.subr.mxu0 0.0
        %1051 = vmatpush2.msra.mxu0 0.0
        %1052 = vmatprep.subr.mxu0 0.0
        %1053 = vmatpush2.msra.mxu0 0.0
        %1054 = vmatprep.subr.mxu0 0.0
        %1055 = vmatpush2.msra.mxu0 0.0
        %1056 = vmatprep.subr.mxu0 0.0
        %1057 = vmatpush2.msra.mxu0 0.0
        %1058 = vmatprep.subr.mxu0 0.0
        %1059 = vmatpush2.msra.mxu0 0.0
        %1060 = vmatprep.subr.mxu0 0.0
        %1061 = vmatpush2.msra.mxu0 0.0
        %1062 = vmatprep.subr.mxu0 0.0
        %1063 = vmatpush2.msra.mxu0 0.0
        %1064 = vmatprep.subr.mxu0 0.0
        %1065 = vmatpush2.msra.mxu0 0.0
        %1066 = vmatprep.subr.mxu0 0.0
        %1067 = vmatpush2.msra.mxu0 0.0
        %1068 = vmatprep.subr.mxu0 0.0
        %1069 = vmatpush2.msra.mxu0 0.0
        %1070 = vmatprep.subr.mxu0 0.0
        %1071 = vmatpush2.msra.mxu0 0.0
        %1072 = vmatprep.subr.mxu0 0.0
        %1073 = vmatpush2.msra.mxu0 0.0
        %1074 = vmatprep.subr.mxu0 0.0
        %1075 = vmatpush2.msra.mxu0 0.0
        %1076 = vmatprep.mubr.f32.mxu0 0.0
        %1077 = vmatmul.mubr.f32.gmra.mxu0 %v1006
        %v1078 = vpop.f32.mrf.mxu0
        %v1079 = vadd.f32 %v1001, %v1078
        %v1080 = vpop.f32.mrf.mxu0
        %v1081 = vadd.f32 %v1001, %v1080
        %1082 = vdwg.mxu0
        %v1085 = vcombine.low %v1079, %v1081
        %s1087 = scalar_lea.vmem %s407, 8 [#allocation7]
        %1088 = vst [vmem:[%s1087] sm:$0xff] %v1085
        %s1089 = scalar_lea.vmem %s365, 16 [#allocation6]
        %v1090 = vld [vmem:[%s1089] sm:$0xff]
        %v1091 = vld [vmem:[%s5] sm:$0xff]
        %v1092 = vld [vmem:[%s6] sm:$0xff]
        %1094 = vset.pattern.permute.xlu0 0
        %1095 = vperm.xlu0 %1094, %v1092
        %v1096 = vpop.permute.xlu0 %1095
        %v1099 = vcombine.high %v1090, %v1090
        %v1101 = vsel %vm428, %v1091, 0
        %v1103 = vsel %vm432, %v1090, 0
        %v1105 = vsel %vm432, %v1099, 0
        %1107 = vmatprep.subr.mxu0 0.0
        %1108 = vmatpush1.msra.mxu0 0.0
        %1109 = vmatprep.subr.mxu0 0.0
        %1110 = vmatpush1.msra.mxu0 0.0
        %1111 = vmatprep.subr.mxu0 0.0
        %1112 = vmatpush1.msra.mxu0 0.0
        %1113 = vmatprep.subr.mxu0 0.0
        %1114 = vmatpush1.msra.mxu0 0.0
        %1115 = vmatprep.subr.mxu0 0.0
        %1116 = vmatpush1.msra.mxu0 0.0
        %1117 = vmatprep.subr.mxu0 0.0
        %1118 = vmatpush1.msra.mxu0 0.0
        %1119 = vmatprep.subr.mxu0 0.0
        %1120 = vmatpush1.msra.mxu0 0.0
        %1121 = vmatprep.subr.mxu0 0.0
        %1122 = vmatpush1.msra.mxu0 0.0
        %1123 = vmatprep.subr.mxu0 0.0
        %1124 = vmatpush1.msra.mxu0 0.0
        %1125 = vmatprep.subr.mxu0 0.0
        %1126 = vmatpush1.msra.mxu0 0.0
        %1127 = vmatprep.subr.mxu0 0.0
        %1128 = vmatpush1.msra.mxu0 0.0
        %1129 = vmatprep.subr.mxu0 0.0
        %1130 = vmatpush1.msra.mxu0 0.0
        %1131 = vmatprep.subr.mxu0 0.0
        %1132 = vmatpush1.msra.mxu0 0.0
        %1133 = vmatprep.subr.mxu0 0.0
        %1134 = vmatpush1.msra.mxu0 0.0
        %1135 = vmatprep.subr.mxu0 0.0
        %1136 = vmatpush1.msra.mxu0 0.0
        %1137 = vmatprep.subr.mxu0 %v1105
        %1138 = vmatpush1.msra.mxu0 %v1103
        %1139 = vmatprep.subr.mxu0 0.0
        %1140 = vmatpush2.msra.mxu0 0.0
        %1141 = vmatprep.subr.mxu0 0.0
        %1142 = vmatpush2.msra.mxu0 0.0
        %1143 = vmatprep.subr.mxu0 0.0
        %1144 = vmatpush2.msra.mxu0 0.0
        %1145 = vmatprep.subr.mxu0 0.0
        %1146 = vmatpush2.msra.mxu0 0.0
        %1147 = vmatprep.subr.mxu0 0.0
        %1148 = vmatpush2.msra.mxu0 0.0
        %1149 = vmatprep.subr.mxu0 0.0
        %1150 = vmatpush2.msra.mxu0 0.0
        %1151 = vmatprep.subr.mxu0 0.0
        %1152 = vmatpush2.msra.mxu0 0.0
        %1153 = vmatprep.subr.mxu0 0.0
        %1154 = vmatpush2.msra.mxu0 0.0
        %1155 = vmatprep.subr.mxu0 0.0
        %1156 = vmatpush2.msra.mxu0 0.0
        %1157 = vmatprep.subr.mxu0 0.0
        %1158 = vmatpush2.msra.mxu0 0.0
        %1159 = vmatprep.subr.mxu0 0.0
        %1160 = vmatpush2.msra.mxu0 0.0
        %1161 = vmatprep.subr.mxu0 0.0
        %1162 = vmatpush2.msra.mxu0 0.0
        %1163 = vmatprep.subr.mxu0 0.0
        %1164 = vmatpush2.msra.mxu0 0.0
        %1165 = vmatprep.subr.mxu0 0.0
        %1166 = vmatpush2.msra.mxu0 0.0
        %1167 = vmatprep.subr.mxu0 0.0
        %1168 = vmatpush2.msra.mxu0 0.0
        %1169 = vmatprep.subr.mxu0 0.0
        %1170 = vmatpush2.msra.mxu0 0.0
        %1171 = vmatprep.mubr.f32.mxu0 0.0
        %1172 = vmatmul.mubr.f32.gmra.mxu0 %v1101
        %v1173 = vpop.f32.mrf.mxu0
        %v1174 = vadd.f32 %v1096, %v1173
        %v1175 = vpop.f32.mrf.mxu0
        %v1176 = vadd.f32 %v1096, %v1175
        %1177 = vdwg.mxu0
        %v1178 = vadd.f32 %v504, %v1174
        %v1179 = vadd.f32 %v506, %v1176
        %vm1180 = vcmp.ge.f32.partialorder %v1178, 0.0
        %vm1181 = vcmp.ge.f32.partialorder %v1179, 0.0
        %v1182 = vmul.f32 %v600, %v1178
        %v1183 = vmul.f32 %v600, %v1179
        %v1184 = vsel %vm1180, %v1178, %v1182
        %v1185 = vsel %vm1181, %v1179, %v1183
        %v1186 = vld [vmem:[%s7] sm:$0x1]
        %v1188 = vsel %vm607, %v1186, 0
        %1190 = vmatprep.subr.mxu0 0.0
        %1191 = vmatpush1.msra.mxu0 0.0
        %1192 = vmatprep.subr.mxu0 0.0
        %1193 = vmatpush1.msra.mxu0 0.0
        %1194 = vmatprep.subr.mxu0 0.0
        %1195 = vmatpush1.msra.mxu0 0.0
        %1196 = vmatprep.subr.mxu0 0.0
        %1197 = vmatpush1.msra.mxu0 0.0
        %1198 = vmatprep.subr.mxu0 0.0
        %1199 = vmatpush1.msra.mxu0 0.0
        %1200 = vmatprep.subr.mxu0 0.0
        %1201 = vmatpush1.msra.mxu0 0.0
        %1202 = vmatprep.subr.mxu0 0.0
        %1203 = vmatpush1.msra.mxu0 0.0
        %1204 = vmatprep.subr.mxu0 0.0
        %1205 = vmatpush1.msra.mxu0 0.0
        %1206 = vmatprep.subr.mxu0 0.0
        %1207 = vmatpush1.msra.mxu0 0.0
        %1208 = vmatprep.subr.mxu0 0.0
        %1209 = vmatpush1.msra.mxu0 0.0
        %1210 = vmatprep.subr.mxu0 0.0
        %1211 = vmatpush1.msra.mxu0 0.0
        %1212 = vmatprep.subr.mxu0 0.0
        %1213 = vmatpush1.msra.mxu0 0.0
        %1214 = vmatprep.subr.mxu0 0.0
        %1215 = vmatpush1.msra.mxu0 0.0
        %1216 = vmatprep.subr.mxu0 0.0
        %1217 = vmatpush1.msra.mxu0 0.0
        %1218 = vmatprep.subr.mxu0 0.0
        %1219 = vmatpush1.msra.mxu0 0.0
        %1220 = vmatprep.subr.mxu0 %v1185
        %1221 = vmatpush1.msra.mxu0 %v1184
        %1222 = vmatprep.subr.mxu0 0.0
        %1223 = vmatpush2.msra.mxu0 0.0
        %1224 = vmatprep.subr.mxu0 0.0
        %1225 = vmatpush2.msra.mxu0 0.0
        %1226 = vmatprep.subr.mxu0 0.0
        %1227 = vmatpush2.msra.mxu0 0.0
        %1228 = vmatprep.subr.mxu0 0.0
        %1229 = vmatpush2.msra.mxu0 0.0
        %1230 = vmatprep.subr.mxu0 0.0
        %1231 = vmatpush2.msra.mxu0 0.0
        %1232 = vmatprep.subr.mxu0 0.0
        %1233 = vmatpush2.msra.mxu0 0.0
        %1234 = vmatprep.subr.mxu0 0.0
        %1235 = vmatpush2.msra.mxu0 0.0
        %1236 = vmatprep.subr.mxu0 0.0
        %1237 = vmatpush2.msra.mxu0 0.0
        %1238 = vmatprep.subr.mxu0 0.0
        %1239 = vmatpush2.msra.mxu0 0.0
        %1240 = vmatprep.subr.mxu0 0.0
        %1241 = vmatpush2.msra.mxu0 0.0
        %1242 = vmatprep.subr.mxu0 0.0
        %1243 = vmatpush2.msra.mxu0 0.0
        %1244 = vmatprep.subr.mxu0 0.0
        %1245 = vmatpush2.msra.mxu0 0.0
        %1246 = vmatprep.subr.mxu0 0.0
        %1247 = vmatpush2.msra.mxu0 0.0
        %1248 = vmatprep.subr.mxu0 0.0
        %1249 = vmatpush2.msra.mxu0 0.0
        %1250 = vmatprep.subr.mxu0 0.0
        %1251 = vmatpush2.msra.mxu0 0.0
        %1252 = vmatprep.subr.mxu0 0.0
        %1253 = vmatpush2.msra.mxu0 0.0
        %1254 = vmatprep.mubr.f32.mxu0 0.0
        %1255 = vmatmul.mubr.f32.gmra.mxu0 %v1188
        %v1256 = vpop.f32.mrf.mxu0
        %v1257 = vadd.f32 %v606, %v1256
        %v1258 = vpop.f32.mrf.mxu0
        %v1259 = vadd.f32 %v606, %v1258
        %1260 = vdwg.mxu0
        %v1261 = vxor.u32 %v1257, 2147483648
        %v1262 = vxor.u32 %v1259, 2147483648
        %v1263 = vmul.f32 %v1261, 1.442695
        %v1264 = vpow.pop %v1263
        %v1265 = vmul.f32 %v1262, 1.442695
        %v1266 = vpow.pop %v1265
        %v1267 = vadd.f32 %v1264, 1.0
        %v1268 = vadd.f32 %v1266, 1.0
        %v1269 = vrcp.pop %v1267
        %v1270 = vmul.f32 1.0, %v1269
        %v1271 = vrcp.pop %v1268
        %v1272 = vmul.f32 1.0, %v1271
        %v1273 = vlaneseq
        %v1274 = vshrl.u32 %v1273, 7
        %v1275 = vsub.s32 0, %v1274
        %v1276 = vrot.slane %v1270, %v1275
        %v1277 = vlaneseq
        %v1278 = vshrl.u32 %v1277, 7
        %v1279 = vsub.s32 0, %v1278
        %v1280 = vrot.slane %v1272, %v1279
        %v1283 = vcombine.low %v1276, %v1280
        %v1285 = vmul.f32 %v1090, %v1283
        %v1286 = vld [vmem:[%s8] sm:$0xf]
        %v1287 = vld [vmem:[%s9] sm:$0xf]
        %1289 = vset.pattern.permute.xlu0 0
        %1290 = vperm.xlu0 %1289, %v1287
        %v1291 = vpop.permute.xlu0 %1290
        %v1294 = vcombine.high %v1285, %v1285
        %v1296 = vsel %vm428, %v1286, 0
        %v1298 = vsel %vm432, %v1285, 0
        %v1300 = vsel %vm432, %v1294, 0
        %1302 = vmatprep.subr.mxu0 0.0
        %1303 = vmatpush1.msra.mxu0 0.0
        %1304 = vmatprep.subr.mxu0 0.0
        %1305 = vmatpush1.msra.mxu0 0.0
        %1306 = vmatprep.subr.mxu0 0.0
        %1307 = vmatpush1.msra.mxu0 0.0
        %1308 = vmatprep.subr.mxu0 0.0
        %1309 = vmatpush1.msra.mxu0 0.0
        %1310 = vmatprep.subr.mxu0 0.0
        %1311 = vmatpush1.msra.mxu0 0.0
        %1312 = vmatprep.subr.mxu0 0.0
        %1313 = vmatpush1.msra.mxu0 0.0
        %1314 = vmatprep.subr.mxu0 0.0
        %1315 = vmatpush1.msra.mxu0 0.0
        %1316 = vmatprep.subr.mxu0 0.0
        %1317 = vmatpush1.msra.mxu0 0.0
        %1318 = vmatprep.subr.mxu0 0.0
        %1319 = vmatpush1.msra.mxu0 0.0
        %1320 = vmatprep.subr.mxu0 0.0
        %1321 = vmatpush1.msra.mxu0 0.0
        %1322 = vmatprep.subr.mxu0 0.0
        %1323 = vmatpush1.msra.mxu0 0.0
        %1324 = vmatprep.subr.mxu0 0.0
        %1325 = vmatpush1.msra.mxu0 0.0
        %1326 = vmatprep.subr.mxu0 0.0
        %1327 = vmatpush1.msra.mxu0 0.0
        %1328 = vmatprep.subr.mxu0 0.0
        %1329 = vmatpush1.msra.mxu0 0.0
        %1330 = vmatprep.subr.mxu0 0.0
        %1331 = vmatpush1.msra.mxu0 0.0
        %1332 = vmatprep.subr.mxu0 %v1300
        %1333 = vmatpush1.msra.mxu0 %v1298
        %1334 = vmatprep.subr.mxu0 0.0
        %1335 = vmatpush2.msra.mxu0 0.0
        %1336 = vmatprep.subr.mxu0 0.0
        %1337 = vmatpush2.msra.mxu0 0.0
        %1338 = vmatprep.subr.mxu0 0.0
        %1339 = vmatpush2.msra.mxu0 0.0
        %1340 = vmatprep.subr.mxu0 0.0
        %1341 = vmatpush2.msra.mxu0 0.0
        %1342 = vmatprep.subr.mxu0 0.0
        %1343 = vmatpush2.msra.mxu0 0.0
        %1344 = vmatprep.subr.mxu0 0.0
        %1345 = vmatpush2.msra.mxu0 0.0
        %1346 = vmatprep.subr.mxu0 0.0
        %1347 = vmatpush2.msra.mxu0 0.0
        %1348 = vmatprep.subr.mxu0 0.0
        %1349 = vmatpush2.msra.mxu0 0.0
        %1350 = vmatprep.subr.mxu0 0.0
        %1351 = vmatpush2.msra.mxu0 0.0
        %1352 = vmatprep.subr.mxu0 0.0
        %1353 = vmatpush2.msra.mxu0 0.0
        %1354 = vmatprep.subr.mxu0 0.0
        %1355 = vmatpush2.msra.mxu0 0.0
        %1356 = vmatprep.subr.mxu0 0.0
        %1357 = vmatpush2.msra.mxu0 0.0
        %1358 = vmatprep.subr.mxu0 0.0
        %1359 = vmatpush2.msra.mxu0 0.0
        %1360 = vmatprep.subr.mxu0 0.0
        %1361 = vmatpush2.msra.mxu0 0.0
        %1362 = vmatprep.subr.mxu0 0.0
        %1363 = vmatpush2.msra.mxu0 0.0
        %1364 = vmatprep.subr.mxu0 0.0
        %1365 = vmatpush2.msra.mxu0 0.0
        %1366 = vmatprep.mubr.f32.mxu0 0.0
        %1367 = vmatmul.mubr.f32.gmra.mxu0 %v1296
        %v1368 = vpop.f32.mrf.mxu0
        %v1369 = vadd.f32 %v1291, %v1368
        %v1370 = vpop.f32.mrf.mxu0
        %v1371 = vadd.f32 %v1291, %v1370
        %1372 = vdwg.mxu0
        %v1375 = vcombine.low %v1369, %v1371
        %s1377 = scalar_lea.vmem %s407, 16 [#allocation7]
        %1378 = vst [vmem:[%s1377] sm:$0xff] %v1375
        %s1379 = scalar_lea.vmem %s365, 24 [#allocation6]
        %v1380 = vld [vmem:[%s1379] sm:$0xff]
        %v1381 = vld [vmem:[%s5] sm:$0xff]
        %v1382 = vld [vmem:[%s6] sm:$0xff]
        %1384 = vset.pattern.permute.xlu0 0
        %1385 = vperm.xlu0 %1384, %v1382
        %v1386 = vpop.permute.xlu0 %1385
        %v1389 = vcombine.high %v1380, %v1380
        %v1391 = vsel %vm428, %v1381, 0
        %v1393 = vsel %vm432, %v1380, 0
        %v1395 = vsel %vm432, %v1389, 0
        %1397 = vmatprep.subr.mxu0 0.0
        %1398 = vmatpush1.msra.mxu0 0.0
        %1399 = vmatprep.subr.mxu0 0.0
        %1400 = vmatpush1.msra.mxu0 0.0
        %1401 = vmatprep.subr.mxu0 0.0
        %1402 = vmatpush1.msra.mxu0 0.0
        %1403 = vmatprep.subr.mxu0 0.0
        %1404 = vmatpush1.msra.mxu0 0.0
        %1405 = vmatprep.subr.mxu0 0.0
        %1406 = vmatpush1.msra.mxu0 0.0
        %1407 = vmatprep.subr.mxu0 0.0
        %1408 = vmatpush1.msra.mxu0 0.0
        %1409 = vmatprep.subr.mxu0 0.0
        %1410 = vmatpush1.msra.mxu0 0.0
        %1411 = vmatprep.subr.mxu0 0.0
        %1412 = vmatpush1.msra.mxu0 0.0
        %1413 = vmatprep.subr.mxu0 0.0
        %1414 = vmatpush1.msra.mxu0 0.0
        %1415 = vmatprep.subr.mxu0 0.0
        %1416 = vmatpush1.msra.mxu0 0.0
        %1417 = vmatprep.subr.mxu0 0.0
        %1418 = vmatpush1.msra.mxu0 0.0
        %1419 = vmatprep.subr.mxu0 0.0
        %1420 = vmatpush1.msra.mxu0 0.0
        %1421 = vmatprep.subr.mxu0 0.0
        %1422 = vmatpush1.msra.mxu0 0.0
        %1423 = vmatprep.subr.mxu0 0.0
        %1424 = vmatpush1.msra.mxu0 0.0
        %1425 = vmatprep.subr.mxu0 0.0
        %1426 = vmatpush1.msra.mxu0 0.0
        %1427 = vmatprep.subr.mxu0 %v1395
        %1428 = vmatpush1.msra.mxu0 %v1393
        %1429 = vmatprep.subr.mxu0 0.0
        %1430 = vmatpush2.msra.mxu0 0.0
        %1431 = vmatprep.subr.mxu0 0.0
        %1432 = vmatpush2.msra.mxu0 0.0
        %1433 = vmatprep.subr.mxu0 0.0
        %1434 = vmatpush2.msra.mxu0 0.0
        %1435 = vmatprep.subr.mxu0 0.0
        %1436 = vmatpush2.msra.mxu0 0.0
        %1437 = vmatprep.subr.mxu0 0.0
        %1438 = vmatpush2.msra.mxu0 0.0
        %1439 = vmatprep.subr.mxu0 0.0
        %1440 = vmatpush2.msra.mxu0 0.0
        %1441 = vmatprep.subr.mxu0 0.0
        %1442 = vmatpush2.msra.mxu0 0.0
        %1443 = vmatprep.subr.mxu0 0.0
        %1444 = vmatpush2.msra.mxu0 0.0
        %1445 = vmatprep.subr.mxu0 0.0
        %1446 = vmatpush2.msra.mxu0 0.0
        %1447 = vmatprep.subr.mxu0 0.0
        %1448 = vmatpush2.msra.mxu0 0.0
        %1449 = vmatprep.subr.mxu0 0.0
        %1450 = vmatpush2.msra.mxu0 0.0
        %1451 = vmatprep.subr.mxu0 0.0
        %1452 = vmatpush2.msra.mxu0 0.0
        %1453 = vmatprep.subr.mxu0 0.0
        %1454 = vmatpush2.msra.mxu0 0.0
        %1455 = vmatprep.subr.mxu0 0.0
        %1456 = vmatpush2.msra.mxu0 0.0
        %1457 = vmatprep.subr.mxu0 0.0
        %1458 = vmatpush2.msra.mxu0 0.0
        %1459 = vmatprep.subr.mxu0 0.0
        %1460 = vmatpush2.msra.mxu0 0.0
        %1461 = vmatprep.mubr.f32.mxu0 0.0
        %1462 = vmatmul.mubr.f32.gmra.mxu0 %v1391
        %v1463 = vpop.f32.mrf.mxu0
        %v1464 = vadd.f32 %v1386, %v1463
        %v1465 = vpop.f32.mrf.mxu0
        %v1466 = vadd.f32 %v1386, %v1465
        %1467 = vdwg.mxu0
        %v1468 = vadd.f32 %v504, %v1464
        %v1469 = vadd.f32 %v506, %v1466
        %vm1470 = vcmp.ge.f32.partialorder %v1468, 0.0
        %vm1471 = vcmp.ge.f32.partialorder %v1469, 0.0
        %v1472 = vmul.f32 %v600, %v1468
        %v1473 = vmul.f32 %v600, %v1469
        %v1474 = vsel %vm1470, %v1468, %v1472
        %v1475 = vsel %vm1471, %v1469, %v1473
        %v1476 = vld [vmem:[%s7] sm:$0x1]
        %v1478 = vsel %vm607, %v1476, 0
        %1480 = vmatprep.subr.mxu0 0.0
        %1481 = vmatpush1.msra.mxu0 0.0
        %1482 = vmatprep.subr.mxu0 0.0
        %1483 = vmatpush1.msra.mxu0 0.0
        %1484 = vmatprep.subr.mxu0 0.0
        %1485 = vmatpush1.msra.mxu0 0.0
        %1486 = vmatprep.subr.mxu0 0.0
        %1487 = vmatpush1.msra.mxu0 0.0
        %1488 = vmatprep.subr.mxu0 0.0
        %1489 = vmatpush1.msra.mxu0 0.0
        %1490 = vmatprep.subr.mxu0 0.0
        %1491 = vmatpush1.msra.mxu0 0.0
        %1492 = vmatprep.subr.mxu0 0.0
        %1493 = vmatpush1.msra.mxu0 0.0
        %1494 = vmatprep.subr.mxu0 0.0
        %1495 = vmatpush1.msra.mxu0 0.0
        %1496 = vmatprep.subr.mxu0 0.0
        %1497 = vmatpush1.msra.mxu0 0.0
        %1498 = vmatprep.subr.mxu0 0.0
        %1499 = vmatpush1.msra.mxu0 0.0
        %1500 = vmatprep.subr.mxu0 0.0
        %1501 = vmatpush1.msra.mxu0 0.0
        %1502 = vmatprep.subr.mxu0 0.0
        %1503 = vmatpush1.msra.mxu0 0.0
        %1504 = vmatprep.subr.mxu0 0.0
        %1505 = vmatpush1.msra.mxu0 0.0
        %1506 = vmatprep.subr.mxu0 0.0
        %1507 = vmatpush1.msra.mxu0 0.0
        %1508 = vmatprep.subr.mxu0 0.0
        %1509 = vmatpush1.msra.mxu0 0.0
        %1510 = vmatprep.subr.mxu0 %v1475
        %1511 = vmatpush1.msra.mxu0 %v1474
        %1512 = vmatprep.subr.mxu0 0.0
        %1513 = vmatpush2.msra.mxu0 0.0
        %1514 = vmatprep.subr.mxu0 0.0
        %1515 = vmatpush2.msra.mxu0 0.0
        %1516 = vmatprep.subr.mxu0 0.0
        %1517 = vmatpush2.msra.mxu0 0.0
        %1518 = vmatprep.subr.mxu0 0.0
        %1519 = vmatpush2.msra.mxu0 0.0
        %1520 = vmatprep.subr.mxu0 0.0
        %1521 = vmatpush2.msra.mxu0 0.0
        %1522 = vmatprep.subr.mxu0 0.0
        %1523 = vmatpush2.msra.mxu0 0.0
        %1524 = vmatprep.subr.mxu0 0.0
        %1525 = vmatpush2.msra.mxu0 0.0
        %1526 = vmatprep.subr.mxu0 0.0
        %1527 = vmatpush2.msra.mxu0 0.0
        %1528 = vmatprep.subr.mxu0 0.0
        %1529 = vmatpush2.msra.mxu0 0.0
        %1530 = vmatprep.subr.mxu0 0.0
        %1531 = vmatpush2.msra.mxu0 0.0
        %1532 = vmatprep.subr.mxu0 0.0
        %1533 = vmatpush2.msra.mxu0 0.0
        %1534 = vmatprep.subr.mxu0 0.0
        %1535 = vmatpush2.msra.mxu0 0.0
        %1536 = vmatprep.subr.mxu0 0.0
        %1537 = vmatpush2.msra.mxu0 0.0
        %1538 = vmatprep.subr.mxu0 0.0
        %1539 = vmatpush2.msra.mxu0 0.0
        %1540 = vmatprep.subr.mxu0 0.0
        %1541 = vmatpush2.msra.mxu0 0.0
        %1542 = vmatprep.subr.mxu0 0.0
        %1543 = vmatpush2.msra.mxu0 0.0
        %1544 = vmatprep.mubr.f32.mxu0 0.0
        %1545 = vmatmul.mubr.f32.gmra.mxu0 %v1478
        %v1546 = vpop.f32.mrf.mxu0
        %v1547 = vadd.f32 %v606, %v1546
        %v1548 = vpop.f32.mrf.mxu0
        %v1549 = vadd.f32 %v606, %v1548
        %1550 = vdwg.mxu0
        %v1551 = vxor.u32 %v1547, 2147483648
        %v1552 = vxor.u32 %v1549, 2147483648
        %v1553 = vmul.f32 %v1551, 1.442695
        %v1554 = vpow.pop %v1553
        %v1555 = vmul.f32 %v1552, 1.442695
        %v1556 = vpow.pop %v1555
        %v1557 = vadd.f32 %v1554, 1.0
        %v1558 = vadd.f32 %v1556, 1.0
        %v1559 = vrcp.pop %v1557
        %v1560 = vmul.f32 1.0, %v1559
        %v1561 = vrcp.pop %v1558
        %v1562 = vmul.f32 1.0, %v1561
        %v1563 = vlaneseq
        %v1564 = vshrl.u32 %v1563, 7
        %v1565 = vsub.s32 0, %v1564
        %v1566 = vrot.slane %v1560, %v1565
        %v1567 = vlaneseq
        %v1568 = vshrl.u32 %v1567, 7
        %v1569 = vsub.s32 0, %v1568
        %v1570 = vrot.slane %v1562, %v1569
        %v1573 = vcombine.low %v1566, %v1570
        %v1575 = vmul.f32 %v1380, %v1573
        %v1576 = vld [vmem:[%s8] sm:$0xf]
        %v1577 = vld [vmem:[%s9] sm:$0xf]
        %1579 = vset.pattern.permute.xlu0 0
        %1580 = vperm.xlu0 %1579, %v1577
        %v1581 = vpop.permute.xlu0 %1580
        %v1584 = vcombine.high %v1575, %v1575
        %v1586 = vsel %vm428, %v1576, 0
        %v1588 = vsel %vm432, %v1575, 0
        %v1590 = vsel %vm432, %v1584, 0
        %1592 = vmatprep.subr.mxu0 0.0
        %1593 = vmatpush1.msra.mxu0 0.0
        %1594 = vmatprep.subr.mxu0 0.0
        %1595 = vmatpush1.msra.mxu0 0.0
        %1596 = vmatprep.subr.mxu0 0.0
        %1597 = vmatpush1.msra.mxu0 0.0
        %1598 = vmatprep.subr.mxu0 0.0
        %1599 = vmatpush1.msra.mxu0 0.0
        %1600 = vmatprep.subr.mxu0 0.0
        %1601 = vmatpush1.msra.mxu0 0.0
        %1602 = vmatprep.subr.mxu0 0.0
        %1603 = vmatpush1.msra.mxu0 0.0
        %1604 = vmatprep.subr.mxu0 0.0
        %1605 = vmatpush1.msra.mxu0 0.0
        %1606 = vmatprep.subr.mxu0 0.0
        %1607 = vmatpush1.msra.mxu0 0.0
        %1608 = vmatprep.subr.mxu0 0.0
        %1609 = vmatpush1.msra.mxu0 0.0
        %1610 = vmatprep.subr.mxu0 0.0
        %1611 = vmatpush1.msra.mxu0 0.0
        %1612 = vmatprep.subr.mxu0 0.0
        %1613 = vmatpush1.msra.mxu0 0.0
        %1614 = vmatprep.subr.mxu0 0.0
        %1615 = vmatpush1.msra.mxu0 0.0
        %1616 = vmatprep.subr.mxu0 0.0
        %1617 = vmatpush1.msra.mxu0 0.0
        %1618 = vmatprep.subr.mxu0 0.0
        %1619 = vmatpush1.msra.mxu0 0.0
        %1620 = vmatprep.subr.mxu0 0.0
        %1621 = vmatpush1.msra.mxu0 0.0
        %1622 = vmatprep.subr.mxu0 %v1590
        %1623 = vmatpush1.msra.mxu0 %v1588
        %1624 = vmatprep.subr.mxu0 0.0
        %1625 = vmatpush2.msra.mxu0 0.0
        %1626 = vmatprep.subr.mxu0 0.0
        %1627 = vmatpush2.msra.mxu0 0.0
        %1628 = vmatprep.subr.mxu0 0.0
        %1629 = vmatpush2.msra.mxu0 0.0
        %1630 = vmatprep.subr.mxu0 0.0
        %1631 = vmatpush2.msra.mxu0 0.0
        %1632 = vmatprep.subr.mxu0 0.0
        %1633 = vmatpush2.msra.mxu0 0.0
        %1634 = vmatprep.subr.mxu0 0.0
        %1635 = vmatpush2.msra.mxu0 0.0
        %1636 = vmatprep.subr.mxu0 0.0
        %1637 = vmatpush2.msra.mxu0 0.0
        %1638 = vmatprep.subr.mxu0 0.0
        %1639 = vmatpush2.msra.mxu0 0.0
        %1640 = vmatprep.subr.mxu0 0.0
        %1641 = vmatpush2.msra.mxu0 0.0
        %1642 = vmatprep.subr.mxu0 0.0
        %1643 = vmatpush2.msra.mxu0 0.0
        %1644 = vmatprep.subr.mxu0 0.0
        %1645 = vmatpush2.msra.mxu0 0.0
        %1646 = vmatprep.subr.mxu0 0.0
        %1647 = vmatpush2.msra.mxu0 0.0
        %1648 = vmatprep.subr.mxu0 0.0
        %1649 = vmatpush2.msra.mxu0 0.0
        %1650 = vmatprep.subr.mxu0 0.0
        %1651 = vmatpush2.msra.mxu0 0.0
        %1652 = vmatprep.subr.mxu0 0.0
        %1653 = vmatpush2.msra.mxu0 0.0
        %1654 = vmatprep.subr.mxu0 0.0
        %1655 = vmatpush2.msra.mxu0 0.0
        %1656 = vmatprep.mubr.f32.mxu0 0.0
        %1657 = vmatmul.mubr.f32.gmra.mxu0 %v1586
        %v1658 = vpop.f32.mrf.mxu0
        %v1659 = vadd.f32 %v1581, %v1658
        %v1660 = vpop.f32.mrf.mxu0
        %v1661 = vadd.f32 %v1581, %v1660
        %1662 = vdwg.mxu0
        %v1665 = vcombine.low %v1659, %v1661
        %s1667 = scalar_lea.vmem %s407, 24 [#allocation7]
        %1668 = vst [vmem:[%s1667] sm:$0xff] %v1665
        %s1669 = scalar_lea.vmem %s365, 32 [#allocation6]
        %v1670 = vld [vmem:[%s1669] sm:$0xff]
        %v1671 = vld [vmem:[%s5] sm:$0xff]
        %v1672 = vld [vmem:[%s6] sm:$0xff]
        %1674 = vset.pattern.permute.xlu0 0
        %1675 = vperm.xlu0 %1674, %v1672
        %v1676 = vpop.permute.xlu0 %1675
        %v1679 = vcombine.high %v1670, %v1670
        %v1681 = vsel %vm428, %v1671, 0
        %v1683 = vsel %vm432, %v1670, 0
        %v1685 = vsel %vm432, %v1679, 0
        %1687 = vmatprep.subr.mxu0 0.0
        %1688 = vmatpush1.msra.mxu0 0.0
        %1689 = vmatprep.subr.mxu0 0.0
        %1690 = vmatpush1.msra.mxu0 0.0
        %1691 = vmatprep.subr.mxu0 0.0
        %1692 = vmatpush1.msra.mxu0 0.0
        %1693 = vmatprep.subr.mxu0 0.0
        %1694 = vmatpush1.msra.mxu0 0.0
        %1695 = vmatprep.subr.mxu0 0.0
        %1696 = vmatpush1.msra.mxu0 0.0
        %1697 = vmatprep.subr.mxu0 0.0
        %1698 = vmatpush1.msra.mxu0 0.0
        %1699 = vmatprep.subr.mxu0 0.0
        %1700 = vmatpush1.msra.mxu0 0.0
        %1701 = vmatprep.subr.mxu0 0.0
        %1702 = vmatpush1.msra.mxu0 0.0
        %1703 = vmatprep.subr.mxu0 0.0
        %1704 = vmatpush1.msra.mxu0 0.0
        %1705 = vmatprep.subr.mxu0 0.0
        %1706 = vmatpush1.msra.mxu0 0.0
        %1707 = vmatprep.subr.mxu0 0.0
        %1708 = vmatpush1.msra.mxu0 0.0
        %1709 = vmatprep.subr.mxu0 0.0
        %1710 = vmatpush1.msra.mxu0 0.0
        %1711 = vmatprep.subr.mxu0 0.0
        %1712 = vmatpush1.msra.mxu0 0.0
        %1713 = vmatprep.subr.mxu0 0.0
        %1714 = vmatpush1.msra.mxu0 0.0
        %1715 = vmatprep.subr.mxu0 0.0
        %1716 = vmatpush1.msra.mxu0 0.0
        %1717 = vmatprep.subr.mxu0 %v1685
        %1718 = vmatpush1.msra.mxu0 %v1683
        %1719 = vmatprep.subr.mxu0 0.0
        %1720 = vmatpush2.msra.mxu0 0.0
        %1721 = vmatprep.subr.mxu0 0.0
        %1722 = vmatpush2.msra.mxu0 0.0
        %1723 = vmatprep.subr.mxu0 0.0
        %1724 = vmatpush2.msra.mxu0 0.0
        %1725 = vmatprep.subr.mxu0 0.0
        %1726 = vmatpush2.msra.mxu0 0.0
        %1727 = vmatprep.subr.mxu0 0.0
        %1728 = vmatpush2.msra.mxu0 0.0
        %1729 = vmatprep.subr.mxu0 0.0
        %1730 = vmatpush2.msra.mxu0 0.0
        %1731 = vmatprep.subr.mxu0 0.0
        %1732 = vmatpush2.msra.mxu0 0.0
        %1733 = vmatprep.subr.mxu0 0.0
        %1734 = vmatpush2.msra.mxu0 0.0
        %1735 = vmatprep.subr.mxu0 0.0
        %1736 = vmatpush2.msra.mxu0 0.0
        %1737 = vmatprep.subr.mxu0 0.0
        %1738 = vmatpush2.msra.mxu0 0.0
        %1739 = vmatprep.subr.mxu0 0.0
        %1740 = vmatpush2.msra.mxu0 0.0
        %1741 = vmatprep.subr.mxu0 0.0
        %1742 = vmatpush2.msra.mxu0 0.0
        %1743 = vmatprep.subr.mxu0 0.0
        %1744 = vmatpush2.msra.mxu0 0.0
        %1745 = vmatprep.subr.mxu0 0.0
        %1746 = vmatpush2.msra.mxu0 0.0
        %1747 = vmatprep.subr.mxu0 0.0
        %1748 = vmatpush2.msra.mxu0 0.0
        %1749 = vmatprep.subr.mxu0 0.0
        %1750 = vmatpush2.msra.mxu0 0.0
        %1751 = vmatprep.mubr.f32.mxu0 0.0
        %1752 = vmatmul.mubr.f32.gmra.mxu0 %v1681
        %v1753 = vpop.f32.mrf.mxu0
        %v1754 = vadd.f32 %v1676, %v1753
        %v1755 = vpop.f32.mrf.mxu0
        %v1756 = vadd.f32 %v1676, %v1755
        %1757 = vdwg.mxu0
        %v1758 = vadd.f32 %v504, %v1754
        %v1759 = vadd.f32 %v506, %v1756
        %vm1760 = vcmp.ge.f32.partialorder %v1758, 0.0
        %vm1761 = vcmp.ge.f32.partialorder %v1759, 0.0
        %v1762 = vmul.f32 %v600, %v1758
        %v1763 = vmul.f32 %v600, %v1759
        %v1764 = vsel %vm1760, %v1758, %v1762
        %v1765 = vsel %vm1761, %v1759, %v1763
        %v1766 = vld [vmem:[%s7] sm:$0x1]
        %v1768 = vsel %vm607, %v1766, 0
        %1770 = vmatprep.subr.mxu0 0.0
        %1771 = vmatpush1.msra.mxu0 0.0
        %1772 = vmatprep.subr.mxu0 0.0
        %1773 = vmatpush1.msra.mxu0 0.0
        %1774 = vmatprep.subr.mxu0 0.0
        %1775 = vmatpush1.msra.mxu0 0.0
        %1776 = vmatprep.subr.mxu0 0.0
        %1777 = vmatpush1.msra.mxu0 0.0
        %1778 = vmatprep.subr.mxu0 0.0
        %1779 = vmatpush1.msra.mxu0 0.0
        %1780 = vmatprep.subr.mxu0 0.0
        %1781 = vmatpush1.msra.mxu0 0.0
        %1782 = vmatprep.subr.mxu0 0.0
        %1783 = vmatpush1.msra.mxu0 0.0
        %1784 = vmatprep.subr.mxu0 0.0
        %1785 = vmatpush1.msra.mxu0 0.0
        %1786 = vmatprep.subr.mxu0 0.0
        %1787 = vmatpush1.msra.mxu0 0.0
        %1788 = vmatprep.subr.mxu0 0.0
        %1789 = vmatpush1.msra.mxu0 0.0
        %1790 = vmatprep.subr.mxu0 0.0
        %1791 = vmatpush1.msra.mxu0 0.0
        %1792 = vmatprep.subr.mxu0 0.0
        %1793 = vmatpush1.msra.mxu0 0.0
        %1794 = vmatprep.subr.mxu0 0.0
        %1795 = vmatpush1.msra.mxu0 0.0
        %1796 = vmatprep.subr.mxu0 0.0
        %1797 = vmatpush1.msra.mxu0 0.0
        %1798 = vmatprep.subr.mxu0 0.0
        %1799 = vmatpush1.msra.mxu0 0.0
        %1800 = vmatprep.subr.mxu0 %v1765
        %1801 = vmatpush1.msra.mxu0 %v1764
        %1802 = vmatprep.subr.mxu0 0.0
        %1803 = vmatpush2.msra.mxu0 0.0
        %1804 = vmatprep.subr.mxu0 0.0
        %1805 = vmatpush2.msra.mxu0 0.0
        %1806 = vmatprep.subr.mxu0 0.0
        %1807 = vmatpush2.msra.mxu0 0.0
        %1808 = vmatprep.subr.mxu0 0.0
        %1809 = vmatpush2.msra.mxu0 0.0
        %1810 = vmatprep.subr.mxu0 0.0
        %1811 = vmatpush2.msra.mxu0 0.0
        %1812 = vmatprep.subr.mxu0 0.0
        %1813 = vmatpush2.msra.mxu0 0.0
        %1814 = vmatprep.subr.mxu0 0.0
        %1815 = vmatpush2.msra.mxu0 0.0
        %1816 = vmatprep.subr.mxu0 0.0
        %1817 = vmatpush2.msra.mxu0 0.0
        %1818 = vmatprep.subr.mxu0 0.0
        %1819 = vmatpush2.msra.mxu0 0.0
        %1820 = vmatprep.subr.mxu0 0.0
        %1821 = vmatpush2.msra.mxu0 0.0
        %1822 = vmatprep.subr.mxu0 0.0
        %1823 = vmatpush2.msra.mxu0 0.0
        %1824 = vmatprep.subr.mxu0 0.0
        %1825 = vmatpush2.msra.mxu0 0.0
        %1826 = vmatprep.subr.mxu0 0.0
        %1827 = vmatpush2.msra.mxu0 0.0
        %1828 = vmatprep.subr.mxu0 0.0
        %1829 = vmatpush2.msra.mxu0 0.0
        %1830 = vmatprep.subr.mxu0 0.0
        %1831 = vmatpush2.msra.mxu0 0.0
        %1832 = vmatprep.subr.mxu0 0.0
        %1833 = vmatpush2.msra.mxu0 0.0
        %1834 = vmatprep.mubr.f32.mxu0 0.0
        %1835 = vmatmul.mubr.f32.gmra.mxu0 %v1768
        %v1836 = vpop.f32.mrf.mxu0
        %v1837 = vadd.f32 %v606, %v1836
        %v1838 = vpop.f32.mrf.mxu0
        %v1839 = vadd.f32 %v606, %v1838
        %1840 = vdwg.mxu0
        %v1841 = vxor.u32 %v1837, 2147483648
        %v1842 = vxor.u32 %v1839, 2147483648
        %v1843 = vmul.f32 %v1841, 1.442695
        %v1844 = vpow.pop %v1843
        %v1845 = vmul.f32 %v1842, 1.442695
        %v1846 = vpow.pop %v1845
        %v1847 = vadd.f32 %v1844, 1.0
        %v1848 = vadd.f32 %v1846, 1.0
        %v1849 = vrcp.pop %v1847
        %v1850 = vmul.f32 1.0, %v1849
        %v1851 = vrcp.pop %v1848
        %v1852 = vmul.f32 1.0, %v1851
        %v1853 = vlaneseq
        %v1854 = vshrl.u32 %v1853, 7
        %v1855 = vsub.s32 0, %v1854
        %v1856 = vrot.slane %v1850, %v1855
        %v1857 = vlaneseq
        %v1858 = vshrl.u32 %v1857, 7
        %v1859 = vsub.s32 0, %v1858
        %v1860 = vrot.slane %v1852, %v1859
        %v1863 = vcombine.low %v1856, %v1860
        %v1865 = vmul.f32 %v1670, %v1863
        %v1866 = vld [vmem:[%s8] sm:$0xf]
        %v1867 = vld [vmem:[%s9] sm:$0xf]
        %1869 = vset.pattern.permute.xlu0 0
        %1870 = vperm.xlu0 %1869, %v1867
        %v1871 = vpop.permute.xlu0 %1870
        %v1874 = vcombine.high %v1865, %v1865
        %v1876 = vsel %vm428, %v1866, 0
        %v1878 = vsel %vm432, %v1865, 0
        %v1880 = vsel %vm432, %v1874, 0
        %1882 = vmatprep.subr.mxu0 0.0
        %1883 = vmatpush1.msra.mxu0 0.0
        %1884 = vmatprep.subr.mxu0 0.0
        %1885 = vmatpush1.msra.mxu0 0.0
        %1886 = vmatprep.subr.mxu0 0.0
        %1887 = vmatpush1.msra.mxu0 0.0
        %1888 = vmatprep.subr.mxu0 0.0
        %1889 = vmatpush1.msra.mxu0 0.0
        %1890 = vmatprep.subr.mxu0 0.0
        %1891 = vmatpush1.msra.mxu0 0.0
        %1892 = vmatprep.subr.mxu0 0.0
        %1893 = vmatpush1.msra.mxu0 0.0
        %1894 = vmatprep.subr.mxu0 0.0
        %1895 = vmatpush1.msra.mxu0 0.0
        %1896 = vmatprep.subr.mxu0 0.0
        %1897 = vmatpush1.msra.mxu0 0.0
        %1898 = vmatprep.subr.mxu0 0.0
        %1899 = vmatpush1.msra.mxu0 0.0
        %1900 = vmatprep.subr.mxu0 0.0
        %1901 = vmatpush1.msra.mxu0 0.0
        %1902 = vmatprep.subr.mxu0 0.0
        %1903 = vmatpush1.msra.mxu0 0.0
        %1904 = vmatprep.subr.mxu0 0.0
        %1905 = vmatpush1.msra.mxu0 0.0
        %1906 = vmatprep.subr.mxu0 0.0
        %1907 = vmatpush1.msra.mxu0 0.0
        %1908 = vmatprep.subr.mxu0 0.0
        %1909 = vmatpush1.msra.mxu0 0.0
        %1910 = vmatprep.subr.mxu0 0.0
        %1911 = vmatpush1.msra.mxu0 0.0
        %1912 = vmatprep.subr.mxu0 %v1880
        %1913 = vmatpush1.msra.mxu0 %v1878
        %1914 = vmatprep.subr.mxu0 0.0
        %1915 = vmatpush2.msra.mxu0 0.0
        %1916 = vmatprep.subr.mxu0 0.0
        %1917 = vmatpush2.msra.mxu0 0.0
        %1918 = vmatprep.subr.mxu0 0.0
        %1919 = vmatpush2.msra.mxu0 0.0
        %1920 = vmatprep.subr.mxu0 0.0
        %1921 = vmatpush2.msra.mxu0 0.0
        %1922 = vmatprep.subr.mxu0 0.0
        %1923 = vmatpush2.msra.mxu0 0.0
        %1924 = vmatprep.subr.mxu0 0.0
        %1925 = vmatpush2.msra.mxu0 0.0
        %1926 = vmatprep.subr.mxu0 0.0
        %1927 = vmatpush2.msra.mxu0 0.0
        %1928 = vmatprep.subr.mxu0 0.0
        %1929 = vmatpush2.msra.mxu0 0.0
        %1930 = vmatprep.subr.mxu0 0.0
        %1931 = vmatpush2.msra.mxu0 0.0
        %1932 = vmatprep.subr.mxu0 0.0
        %1933 = vmatpush2.msra.mxu0 0.0
        %1934 = vmatprep.subr.mxu0 0.0
        %1935 = vmatpush2.msra.mxu0 0.0
        %1936 = vmatprep.subr.mxu0 0.0
        %1937 = vmatpush2.msra.mxu0 0.0
        %1938 = vmatprep.subr.mxu0 0.0
        %1939 = vmatpush2.msra.mxu0 0.0
        %1940 = vmatprep.subr.mxu0 0.0
        %1941 = vmatpush2.msra.mxu0 0.0
        %1942 = vmatprep.subr.mxu0 0.0
        %1943 = vmatpush2.msra.mxu0 0.0
        %1944 = vmatprep.subr.mxu0 0.0
        %1945 = vmatpush2.msra.mxu0 0.0
        %1946 = vmatprep.mubr.f32.mxu0 0.0
        %1947 = vmatmul.mubr.f32.gmra.mxu0 %v1876
        %v1948 = vpop.f32.mrf.mxu0
        %v1949 = vadd.f32 %v1871, %v1948
        %v1950 = vpop.f32.mrf.mxu0
        %v1951 = vadd.f32 %v1871, %v1950
        %1952 = vdwg.mxu0
        %v1955 = vcombine.low %v1949, %v1951
        %s1957 = scalar_lea.vmem %s407, 32 [#allocation7]
        %1958 = vst [vmem:[%s1957] sm:$0xff] %v1955
        %s1959 = scalar_lea.vmem %s365, 40 [#allocation6]
        %v1960 = vld [vmem:[%s1959] sm:$0xff]
        %v1961 = vld [vmem:[%s5] sm:$0xff]
        %v1962 = vld [vmem:[%s6] sm:$0xff]
        %1964 = vset.pattern.permute.xlu0 0
        %1965 = vperm.xlu0 %1964, %v1962
        %v1966 = vpop.permute.xlu0 %1965
        %v1969 = vcombine.high %v1960, %v1960
        %v1971 = vsel %vm428, %v1961, 0
        %v1973 = vsel %vm432, %v1960, 0
        %v1975 = vsel %vm432, %v1969, 0
        %1977 = vmatprep.subr.mxu0 0.0
        %1978 = vmatpush1.msra.mxu0 0.0
        %1979 = vmatprep.subr.mxu0 0.0
        %1980 = vmatpush1.msra.mxu0 0.0
        %1981 = vmatprep.subr.mxu0 0.0
        %1982 = vmatpush1.msra.mxu0 0.0
        %1983 = vmatprep.subr.mxu0 0.0
        %1984 = vmatpush1.msra.mxu0 0.0
        %1985 = vmatprep.subr.mxu0 0.0
        %1986 = vmatpush1.msra.mxu0 0.0
        %1987 = vmatprep.subr.mxu0 0.0
        %1988 = vmatpush1.msra.mxu0 0.0
        %1989 = vmatprep.subr.mxu0 0.0
        %1990 = vmatpush1.msra.mxu0 0.0
        %1991 = vmatprep.subr.mxu0 0.0
        %1992 = vmatpush1.msra.mxu0 0.0
        %1993 = vmatprep.subr.mxu0 0.0
        %1994 = vmatpush1.msra.mxu0 0.0
        %1995 = vmatprep.subr.mxu0 0.0
        %1996 = vmatpush1.msra.mxu0 0.0
        %1997 = vmatprep.subr.mxu0 0.0
        %1998 = vmatpush1.msra.mxu0 0.0
        %1999 = vmatprep.subr.mxu0 0.0
        %2000 = vmatpush1.msra.mxu0 0.0
        %2001 = vmatprep.subr.mxu0 0.0
        %2002 = vmatpush1.msra.mxu0 0.0
        %2003 = vmatprep.subr.mxu0 0.0
        %2004 = vmatpush1.msra.mxu0 0.0
        %2005 = vmatprep.subr.mxu0 0.0
        %2006 = vmatpush1.msra.mxu0 0.0
        %2007 = vmatprep.subr.mxu0 %v1975
        %2008 = vmatpush1.msra.mxu0 %v1973
        %2009 = vmatprep.subr.mxu0 0.0
        %2010 = vmatpush2.msra.mxu0 0.0
        %2011 = vmatprep.subr.mxu0 0.0
        %2012 = vmatpush2.msra.mxu0 0.0
        %2013 = vmatprep.subr.mxu0 0.0
        %2014 = vmatpush2.msra.mxu0 0.0
        %2015 = vmatprep.subr.mxu0 0.0
        %2016 = vmatpush2.msra.mxu0 0.0
        %2017 = vmatprep.subr.mxu0 0.0
        %2018 = vmatpush2.msra.mxu0 0.0
        %2019 = vmatprep.subr.mxu0 0.0
        %2020 = vmatpush2.msra.mxu0 0.0
        %2021 = vmatprep.subr.mxu0 0.0
        %2022 = vmatpush2.msra.mxu0 0.0
        %2023 = vmatprep.subr.mxu0 0.0
        %2024 = vmatpush2.msra.mxu0 0.0
        %2025 = vmatprep.subr.mxu0 0.0
        %2026 = vmatpush2.msra.mxu0 0.0
        %2027 = vmatprep.subr.mxu0 0.0
        %2028 = vmatpush2.msra.mxu0 0.0
        %2029 = vmatprep.subr.mxu0 0.0
        %2030 = vmatpush2.msra.mxu0 0.0
        %2031 = vmatprep.subr.mxu0 0.0
        %2032 = vmatpush2.msra.mxu0 0.0
        %2033 = vmatprep.subr.mxu0 0.0
        %2034 = vmatpush2.msra.mxu0 0.0
        %2035 = vmatprep.subr.mxu0 0.0
        %2036 = vmatpush2.msra.mxu0 0.0
        %2037 = vmatprep.subr.mxu0 0.0
        %2038 = vmatpush2.msra.mxu0 0.0
        %2039 = vmatprep.subr.mxu0 0.0
        %2040 = vmatpush2.msra.mxu0 0.0
        %2041 = vmatprep.mubr.f32.mxu0 0.0
        %2042 = vmatmul.mubr.f32.gmra.mxu0 %v1971
        %v2043 = vpop.f32.mrf.mxu0
        %v2044 = vadd.f32 %v1966, %v2043
        %v2045 = vpop.f32.mrf.mxu0
        %v2046 = vadd.f32 %v1966, %v2045
        %2047 = vdwg.mxu0
        %v2048 = vadd.f32 %v504, %v2044
        %v2049 = vadd.f32 %v506, %v2046
        %vm2050 = vcmp.ge.f32.partialorder %v2048, 0.0
        %vm2051 = vcmp.ge.f32.partialorder %v2049, 0.0
        %v2052 = vmul.f32 %v600, %v2048
        %v2053 = vmul.f32 %v600, %v2049
        %v2054 = vsel %vm2050, %v2048, %v2052
        %v2055 = vsel %vm2051, %v2049, %v2053
        %v2056 = vld [vmem:[%s7] sm:$0x1]
        %v2058 = vsel %vm607, %v2056, 0
        %2060 = vmatprep.subr.mxu0 0.0
        %2061 = vmatpush1.msra.mxu0 0.0
        %2062 = vmatprep.subr.mxu0 0.0
        %2063 = vmatpush1.msra.mxu0 0.0
        %2064 = vmatprep.subr.mxu0 0.0
        %2065 = vmatpush1.msra.mxu0 0.0
        %2066 = vmatprep.subr.mxu0 0.0
        %2067 = vmatpush1.msra.mxu0 0.0
        %2068 = vmatprep.subr.mxu0 0.0
        %2069 = vmatpush1.msra.mxu0 0.0
        %2070 = vmatprep.subr.mxu0 0.0
        %2071 = vmatpush1.msra.mxu0 0.0
        %2072 = vmatprep.subr.mxu0 0.0
        %2073 = vmatpush1.msra.mxu0 0.0
        %2074 = vmatprep.subr.mxu0 0.0
        %2075 = vmatpush1.msra.mxu0 0.0
        %2076 = vmatprep.subr.mxu0 0.0
        %2077 = vmatpush1.msra.mxu0 0.0
        %2078 = vmatprep.subr.mxu0 0.0
        %2079 = vmatpush1.msra.mxu0 0.0
        %2080 = vmatprep.subr.mxu0 0.0
        %2081 = vmatpush1.msra.mxu0 0.0
        %2082 = vmatprep.subr.mxu0 0.0
        %2083 = vmatpush1.msra.mxu0 0.0
        %2084 = vmatprep.subr.mxu0 0.0
        %2085 = vmatpush1.msra.mxu0 0.0
        %2086 = vmatprep.subr.mxu0 0.0
        %2087 = vmatpush1.msra.mxu0 0.0
        %2088 = vmatprep.subr.mxu0 0.0
        %2089 = vmatpush1.msra.mxu0 0.0
        %2090 = vmatprep.subr.mxu0 %v2055
        %2091 = vmatpush1.msra.mxu0 %v2054
        %2092 = vmatprep.subr.mxu0 0.0
        %2093 = vmatpush2.msra.mxu0 0.0
        %2094 = vmatprep.subr.mxu0 0.0
        %2095 = vmatpush2.msra.mxu0 0.0
        %2096 = vmatprep.subr.mxu0 0.0
        %2097 = vmatpush2.msra.mxu0 0.0
        %2098 = vmatprep.subr.mxu0 0.0
        %2099 = vmatpush2.msra.mxu0 0.0
        %2100 = vmatprep.subr.mxu0 0.0
        %2101 = vmatpush2.msra.mxu0 0.0
        %2102 = vmatprep.subr.mxu0 0.0
        %2103 = vmatpush2.msra.mxu0 0.0
        %2104 = vmatprep.subr.mxu0 0.0
        %2105 = vmatpush2.msra.mxu0 0.0
        %2106 = vmatprep.subr.mxu0 0.0
        %2107 = vmatpush2.msra.mxu0 0.0
        %2108 = vmatprep.subr.mxu0 0.0
        %2109 = vmatpush2.msra.mxu0 0.0
        %2110 = vmatprep.subr.mxu0 0.0
        %2111 = vmatpush2.msra.mxu0 0.0
        %2112 = vmatprep.subr.mxu0 0.0
        %2113 = vmatpush2.msra.mxu0 0.0
        %2114 = vmatprep.subr.mxu0 0.0
        %2115 = vmatpush2.msra.mxu0 0.0
        %2116 = vmatprep.subr.mxu0 0.0
        %2117 = vmatpush2.msra.mxu0 0.0
        %2118 = vmatprep.subr.mxu0 0.0
        %2119 = vmatpush2.msra.mxu0 0.0
        %2120 = vmatprep.subr.mxu0 0.0
        %2121 = vmatpush2.msra.mxu0 0.0
        %2122 = vmatprep.subr.mxu0 0.0
        %2123 = vmatpush2.msra.mxu0 0.0
        %2124 = vmatprep.mubr.f32.mxu0 0.0
        %2125 = vmatmul.mubr.f32.gmra.mxu0 %v2058
        %v2126 = vpop.f32.mrf.mxu0
        %v2127 = vadd.f32 %v606, %v2126
        %v2128 = vpop.f32.mrf.mxu0
        %v2129 = vadd.f32 %v606, %v2128
        %2130 = vdwg.mxu0
        %v2131 = vxor.u32 %v2127, 2147483648
        %v2132 = vxor.u32 %v2129, 2147483648
        %v2133 = vmul.f32 %v2131, 1.442695
        %v2134 = vpow.pop %v2133
        %v2135 = vmul.f32 %v2132, 1.442695
        %v2136 = vpow.pop %v2135
        %v2137 = vadd.f32 %v2134, 1.0
        %v2138 = vadd.f32 %v2136, 1.0
        %v2139 = vrcp.pop %v2137
        %v2140 = vmul.f32 1.0, %v2139
        %v2141 = vrcp.pop %v2138
        %v2142 = vmul.f32 1.0, %v2141
        %v2143 = vlaneseq
        %v2144 = vshrl.u32 %v2143, 7
        %v2145 = vsub.s32 0, %v2144
        %v2146 = vrot.slane %v2140, %v2145
        %v2147 = vlaneseq
        %v2148 = vshrl.u32 %v2147, 7
        %v2149 = vsub.s32 0, %v2148
        %v2150 = vrot.slane %v2142, %v2149
        %v2153 = vcombine.low %v2146, %v2150
        %v2155 = vmul.f32 %v1960, %v2153
        %v2156 = vld [vmem:[%s8] sm:$0xf]
        %v2157 = vld [vmem:[%s9] sm:$0xf]
        %2159 = vset.pattern.permute.xlu0 0
        %2160 = vperm.xlu0 %2159, %v2157
        %v2161 = vpop.permute.xlu0 %2160
        %v2164 = vcombine.high %v2155, %v2155
        %v2166 = vsel %vm428, %v2156, 0
        %v2168 = vsel %vm432, %v2155, 0
        %v2170 = vsel %vm432, %v2164, 0
        %2172 = vmatprep.subr.mxu0 0.0
        %2173 = vmatpush1.msra.mxu0 0.0
        %2174 = vmatprep.subr.mxu0 0.0
        %2175 = vmatpush1.msra.mxu0 0.0
        %2176 = vmatprep.subr.mxu0 0.0
        %2177 = vmatpush1.msra.mxu0 0.0
        %2178 = vmatprep.subr.mxu0 0.0
        %2179 = vmatpush1.msra.mxu0 0.0
        %2180 = vmatprep.subr.mxu0 0.0
        %2181 = vmatpush1.msra.mxu0 0.0
        %2182 = vmatprep.subr.mxu0 0.0
        %2183 = vmatpush1.msra.mxu0 0.0
        %2184 = vmatprep.subr.mxu0 0.0
        %2185 = vmatpush1.msra.mxu0 0.0
        %2186 = vmatprep.subr.mxu0 0.0
        %2187 = vmatpush1.msra.mxu0 0.0
        %2188 = vmatprep.subr.mxu0 0.0
        %2189 = vmatpush1.msra.mxu0 0.0
        %2190 = vmatprep.subr.mxu0 0.0
        %2191 = vmatpush1.msra.mxu0 0.0
        %2192 = vmatprep.subr.mxu0 0.0
        %2193 = vmatpush1.msra.mxu0 0.0
        %2194 = vmatprep.subr.mxu0 0.0
        %2195 = vmatpush1.msra.mxu0 0.0
        %2196 = vmatprep.subr.mxu0 0.0
        %2197 = vmatpush1.msra.mxu0 0.0
        %2198 = vmatprep.subr.mxu0 0.0
        %2199 = vmatpush1.msra.mxu0 0.0
        %2200 = vmatprep.subr.mxu0 0.0
        %2201 = vmatpush1.msra.mxu0 0.0
        %2202 = vmatprep.subr.mxu0 %v2170
        %2203 = vmatpush1.msra.mxu0 %v2168
        %2204 = vmatprep.subr.mxu0 0.0
        %2205 = vmatpush2.msra.mxu0 0.0
        %2206 = vmatprep.subr.mxu0 0.0
        %2207 = vmatpush2.msra.mxu0 0.0
        %2208 = vmatprep.subr.mxu0 0.0
        %2209 = vmatpush2.msra.mxu0 0.0
        %2210 = vmatprep.subr.mxu0 0.0
        %2211 = vmatpush2.msra.mxu0 0.0
        %2212 = vmatprep.subr.mxu0 0.0
        %2213 = vmatpush2.msra.mxu0 0.0
        %2214 = vmatprep.subr.mxu0 0.0
        %2215 = vmatpush2.msra.mxu0 0.0
        %2216 = vmatprep.subr.mxu0 0.0
        %2217 = vmatpush2.msra.mxu0 0.0
        %2218 = vmatprep.subr.mxu0 0.0
        %2219 = vmatpush2.msra.mxu0 0.0
        %2220 = vmatprep.subr.mxu0 0.0
        %2221 = vmatpush2.msra.mxu0 0.0
        %2222 = vmatprep.subr.mxu0 0.0
        %2223 = vmatpush2.msra.mxu0 0.0
        %2224 = vmatprep.subr.mxu0 0.0
        %2225 = vmatpush2.msra.mxu0 0.0
        %2226 = vmatprep.subr.mxu0 0.0
        %2227 = vmatpush2.msra.mxu0 0.0
        %2228 = vmatprep.subr.mxu0 0.0
        %2229 = vmatpush2.msra.mxu0 0.0
        %2230 = vmatprep.subr.mxu0 0.0
        %2231 = vmatpush2.msra.mxu0 0.0
        %2232 = vmatprep.subr.mxu0 0.0
        %2233 = vmatpush2.msra.mxu0 0.0
        %2234 = vmatprep.subr.mxu0 0.0
        %2235 = vmatpush2.msra.mxu0 0.0
        %2236 = vmatprep.mubr.f32.mxu0 0.0
        %2237 = vmatmul.mubr.f32.gmra.mxu0 %v2166
        %v2238 = vpop.f32.mrf.mxu0
        %v2239 = vadd.f32 %v2161, %v2238
        %v2240 = vpop.f32.mrf.mxu0
        %v2241 = vadd.f32 %v2161, %v2240
        %2242 = vdwg.mxu0
        %v2245 = vcombine.low %v2239, %v2241
        %s2247 = scalar_lea.vmem %s407, 40 [#allocation7]
        %2248 = vst [vmem:[%s2247] sm:$0xff] %v2245
        %s2249 = scalar_lea.vmem %s365, 48 [#allocation6]
        %v2250 = vld [vmem:[%s2249] sm:$0xff]
        %v2251 = vld [vmem:[%s5] sm:$0xff]
        %v2252 = vld [vmem:[%s6] sm:$0xff]
        %2254 = vset.pattern.permute.xlu0 0
        %2255 = vperm.xlu0 %2254, %v2252
        %v2256 = vpop.permute.xlu0 %2255
        %v2259 = vcombine.high %v2250, %v2250
        %v2261 = vsel %vm428, %v2251, 0
        %v2263 = vsel %vm432, %v2250, 0
        %v2265 = vsel %vm432, %v2259, 0
        %2267 = vmatprep.subr.mxu0 0.0
        %2268 = vmatpush1.msra.mxu0 0.0
        %2269 = vmatprep.subr.mxu0 0.0
        %2270 = vmatpush1.msra.mxu0 0.0
        %2271 = vmatprep.subr.mxu0 0.0
        %2272 = vmatpush1.msra.mxu0 0.0
        %2273 = vmatprep.subr.mxu0 0.0
        %2274 = vmatpush1.msra.mxu0 0.0
        %2275 = vmatprep.subr.mxu0 0.0
        %2276 = vmatpush1.msra.mxu0 0.0
        %2277 = vmatprep.subr.mxu0 0.0
        %2278 = vmatpush1.msra.mxu0 0.0
        %2279 = vmatprep.subr.mxu0 0.0
        %2280 = vmatpush1.msra.mxu0 0.0
        %2281 = vmatprep.subr.mxu0 0.0
        %2282 = vmatpush1.msra.mxu0 0.0
        %2283 = vmatprep.subr.mxu0 0.0
        %2284 = vmatpush1.msra.mxu0 0.0
        %2285 = vmatprep.subr.mxu0 0.0
        %2286 = vmatpush1.msra.mxu0 0.0
        %2287 = vmatprep.subr.mxu0 0.0
        %2288 = vmatpush1.msra.mxu0 0.0
        %2289 = vmatprep.subr.mxu0 0.0
        %2290 = vmatpush1.msra.mxu0 0.0
        %2291 = vmatprep.subr.mxu0 0.0
        %2292 = vmatpush1.msra.mxu0 0.0
        %2293 = vmatprep.subr.mxu0 0.0
        %2294 = vmatpush1.msra.mxu0 0.0
        %2295 = vmatprep.subr.mxu0 0.0
        %2296 = vmatpush1.msra.mxu0 0.0
        %2297 = vmatprep.subr.mxu0 %v2265
        %2298 = vmatpush1.msra.mxu0 %v2263
        %2299 = vmatprep.subr.mxu0 0.0
        %2300 = vmatpush2.msra.mxu0 0.0
        %2301 = vmatprep.subr.mxu0 0.0
        %2302 = vmatpush2.msra.mxu0 0.0
        %2303 = vmatprep.subr.mxu0 0.0
        %2304 = vmatpush2.msra.mxu0 0.0
        %2305 = vmatprep.subr.mxu0 0.0
        %2306 = vmatpush2.msra.mxu0 0.0
        %2307 = vmatprep.subr.mxu0 0.0
        %2308 = vmatpush2.msra.mxu0 0.0
        %2309 = vmatprep.subr.mxu0 0.0
        %2310 = vmatpush2.msra.mxu0 0.0
        %2311 = vmatprep.subr.mxu0 0.0
        %2312 = vmatpush2.msra.mxu0 0.0
        %2313 = vmatprep.subr.mxu0 0.0
        %2314 = vmatpush2.msra.mxu0 0.0
        %2315 = vmatprep.subr.mxu0 0.0
        %2316 = vmatpush2.msra.mxu0 0.0
        %2317 = vmatprep.subr.mxu0 0.0
        %2318 = vmatpush2.msra.mxu0 0.0
        %2319 = vmatprep.subr.mxu0 0.0
        %2320 = vmatpush2.msra.mxu0 0.0
        %2321 = vmatprep.subr.mxu0 0.0
        %2322 = vmatpush2.msra.mxu0 0.0
        %2323 = vmatprep.subr.mxu0 0.0
        %2324 = vmatpush2.msra.mxu0 0.0
        %2325 = vmatprep.subr.mxu0 0.0
        %2326 = vmatpush2.msra.mxu0 0.0
        %2327 = vmatprep.subr.mxu0 0.0
        %2328 = vmatpush2.msra.mxu0 0.0
        %2329 = vmatprep.subr.mxu0 0.0
        %2330 = vmatpush2.msra.mxu0 0.0
        %2331 = vmatprep.mubr.f32.mxu0 0.0
        %2332 = vmatmul.mubr.f32.gmra.mxu0 %v2261
        %v2333 = vpop.f32.mrf.mxu0
        %v2334 = vadd.f32 %v2256, %v2333
        %v2335 = vpop.f32.mrf.mxu0
        %v2336 = vadd.f32 %v2256, %v2335
        %2337 = vdwg.mxu0
        %v2338 = vadd.f32 %v504, %v2334
        %v2339 = vadd.f32 %v506, %v2336
        %vm2340 = vcmp.ge.f32.partialorder %v2338, 0.0
        %vm2341 = vcmp.ge.f32.partialorder %v2339, 0.0
        %v2342 = vmul.f32 %v600, %v2338
        %v2343 = vmul.f32 %v600, %v2339
        %v2344 = vsel %vm2340, %v2338, %v2342
        %v2345 = vsel %vm2341, %v2339, %v2343
        %v2346 = vld [vmem:[%s7] sm:$0x1]
        %v2348 = vsel %vm607, %v2346, 0
        %2350 = vmatprep.subr.mxu0 0.0
        %2351 = vmatpush1.msra.mxu0 0.0
        %2352 = vmatprep.subr.mxu0 0.0
        %2353 = vmatpush1.msra.mxu0 0.0
        %2354 = vmatprep.subr.mxu0 0.0
        %2355 = vmatpush1.msra.mxu0 0.0
        %2356 = vmatprep.subr.mxu0 0.0
        %2357 = vmatpush1.msra.mxu0 0.0
        %2358 = vmatprep.subr.mxu0 0.0
        %2359 = vmatpush1.msra.mxu0 0.0
        %2360 = vmatprep.subr.mxu0 0.0
        %2361 = vmatpush1.msra.mxu0 0.0
        %2362 = vmatprep.subr.mxu0 0.0
        %2363 = vmatpush1.msra.mxu0 0.0
        %2364 = vmatprep.subr.mxu0 0.0
        %2365 = vmatpush1.msra.mxu0 0.0
        %2366 = vmatprep.subr.mxu0 0.0
        %2367 = vmatpush1.msra.mxu0 0.0
        %2368 = vmatprep.subr.mxu0 0.0
        %2369 = vmatpush1.msra.mxu0 0.0
        %2370 = vmatprep.subr.mxu0 0.0
        %2371 = vmatpush1.msra.mxu0 0.0
        %2372 = vmatprep.subr.mxu0 0.0
        %2373 = vmatpush1.msra.mxu0 0.0
        %2374 = vmatprep.subr.mxu0 0.0
        %2375 = vmatpush1.msra.mxu0 0.0
        %2376 = vmatprep.subr.mxu0 0.0
        %2377 = vmatpush1.msra.mxu0 0.0
        %2378 = vmatprep.subr.mxu0 0.0
        %2379 = vmatpush1.msra.mxu0 0.0
        %2380 = vmatprep.subr.mxu0 %v2345
        %2381 = vmatpush1.msra.mxu0 %v2344
        %2382 = vmatprep.subr.mxu0 0.0
        %2383 = vmatpush2.msra.mxu0 0.0
        %2384 = vmatprep.subr.mxu0 0.0
        %2385 = vmatpush2.msra.mxu0 0.0
        %2386 = vmatprep.subr.mxu0 0.0
        %2387 = vmatpush2.msra.mxu0 0.0
        %2388 = vmatprep.subr.mxu0 0.0
        %2389 = vmatpush2.msra.mxu0 0.0
        %2390 = vmatprep.subr.mxu0 0.0
        %2391 = vmatpush2.msra.mxu0 0.0
        %2392 = vmatprep.subr.mxu0 0.0
        %2393 = vmatpush2.msra.mxu0 0.0
        %2394 = vmatprep.subr.mxu0 0.0
        %2395 = vmatpush2.msra.mxu0 0.0
        %2396 = vmatprep.subr.mxu0 0.0
        %2397 = vmatpush2.msra.mxu0 0.0
        %2398 = vmatprep.subr.mxu0 0.0
        %2399 = vmatpush2.msra.mxu0 0.0
        %2400 = vmatprep.subr.mxu0 0.0
        %2401 = vmatpush2.msra.mxu0 0.0
        %2402 = vmatprep.subr.mxu0 0.0
        %2403 = vmatpush2.msra.mxu0 0.0
        %2404 = vmatprep.subr.mxu0 0.0
        %2405 = vmatpush2.msra.mxu0 0.0
        %2406 = vmatprep.subr.mxu0 0.0
        %2407 = vmatpush2.msra.mxu0 0.0
        %2408 = vmatprep.subr.mxu0 0.0
        %2409 = vmatpush2.msra.mxu0 0.0
        %2410 = vmatprep.subr.mxu0 0.0
        %2411 = vmatpush2.msra.mxu0 0.0
        %2412 = vmatprep.subr.mxu0 0.0
        %2413 = vmatpush2.msra.mxu0 0.0
        %2414 = vmatprep.mubr.f32.mxu0 0.0
        %2415 = vmatmul.mubr.f32.gmra.mxu0 %v2348
        %v2416 = vpop.f32.mrf.mxu0
        %v2417 = vadd.f32 %v606, %v2416
        %v2418 = vpop.f32.mrf.mxu0
        %v2419 = vadd.f32 %v606, %v2418
        %2420 = vdwg.mxu0
        %v2421 = vxor.u32 %v2417, 2147483648
        %v2422 = vxor.u32 %v2419, 2147483648
        %v2423 = vmul.f32 %v2421, 1.442695
        %v2424 = vpow.pop %v2423
        %v2425 = vmul.f32 %v2422, 1.442695
        %v2426 = vpow.pop %v2425
        %v2427 = vadd.f32 %v2424, 1.0
        %v2428 = vadd.f32 %v2426, 1.0
        %v2429 = vrcp.pop %v2427
        %v2430 = vmul.f32 1.0, %v2429
        %v2431 = vrcp.pop %v2428
        %v2432 = vmul.f32 1.0, %v2431
        %v2433 = vlaneseq
        %v2434 = vshrl.u32 %v2433, 7
        %v2435 = vsub.s32 0, %v2434
        %v2436 = vrot.slane %v2430, %v2435
        %v2437 = vlaneseq
        %v2438 = vshrl.u32 %v2437, 7
        %v2439 = vsub.s32 0, %v2438
        %v2440 = vrot.slane %v2432, %v2439
        %v2443 = vcombine.low %v2436, %v2440
        %v2445 = vmul.f32 %v2250, %v2443
        %v2446 = vld [vmem:[%s8] sm:$0xf]
        %v2447 = vld [vmem:[%s9] sm:$0xf]
        %2449 = vset.pattern.permute.xlu0 0
        %2450 = vperm.xlu0 %2449, %v2447
        %v2451 = vpop.permute.xlu0 %2450
        %v2454 = vcombine.high %v2445, %v2445
        %v2456 = vsel %vm428, %v2446, 0
        %v2458 = vsel %vm432, %v2445, 0
        %v2460 = vsel %vm432, %v2454, 0
        %2462 = vmatprep.subr.mxu0 0.0
        %2463 = vmatpush1.msra.mxu0 0.0
        %2464 = vmatprep.subr.mxu0 0.0
        %2465 = vmatpush1.msra.mxu0 0.0
        %2466 = vmatprep.subr.mxu0 0.0
        %2467 = vmatpush1.msra.mxu0 0.0
        %2468 = vmatprep.subr.mxu0 0.0
        %2469 = vmatpush1.msra.mxu0 0.0
        %2470 = vmatprep.subr.mxu0 0.0
        %2471 = vmatpush1.msra.mxu0 0.0
        %2472 = vmatprep.subr.mxu0 0.0
        %2473 = vmatpush1.msra.mxu0 0.0
        %2474 = vmatprep.subr.mxu0 0.0
        %2475 = vmatpush1.msra.mxu0 0.0
        %2476 = vmatprep.subr.mxu0 0.0
        %2477 = vmatpush1.msra.mxu0 0.0
        %2478 = vmatprep.subr.mxu0 0.0
        %2479 = vmatpush1.msra.mxu0 0.0
        %2480 = vmatprep.subr.mxu0 0.0
        %2481 = vmatpush1.msra.mxu0 0.0
        %2482 = vmatprep.subr.mxu0 0.0
        %2483 = vmatpush1.msra.mxu0 0.0
        %2484 = vmatprep.subr.mxu0 0.0
        %2485 = vmatpush1.msra.mxu0 0.0
        %2486 = vmatprep.subr.mxu0 0.0
        %2487 = vmatpush1.msra.mxu0 0.0
        %2488 = vmatprep.subr.mxu0 0.0
        %2489 = vmatpush1.msra.mxu0 0.0
        %2490 = vmatprep.subr.mxu0 0.0
        %2491 = vmatpush1.msra.mxu0 0.0
        %2492 = vmatprep.subr.mxu0 %v2460
        %2493 = vmatpush1.msra.mxu0 %v2458
        %2494 = vmatprep.subr.mxu0 0.0
        %2495 = vmatpush2.msra.mxu0 0.0
        %2496 = vmatprep.subr.mxu0 0.0
        %2497 = vmatpush2.msra.mxu0 0.0
        %2498 = vmatprep.subr.mxu0 0.0
        %2499 = vmatpush2.msra.mxu0 0.0
        %2500 = vmatprep.subr.mxu0 0.0
        %2501 = vmatpush2.msra.mxu0 0.0
        %2502 = vmatprep.subr.mxu0 0.0
        %2503 = vmatpush2.msra.mxu0 0.0
        %2504 = vmatprep.subr.mxu0 0.0
        %2505 = vmatpush2.msra.mxu0 0.0
        %2506 = vmatprep.subr.mxu0 0.0
        %2507 = vmatpush2.msra.mxu0 0.0
        %2508 = vmatprep.subr.mxu0 0.0
        %2509 = vmatpush2.msra.mxu0 0.0
        %2510 = vmatprep.subr.mxu0 0.0
        %2511 = vmatpush2.msra.mxu0 0.0
        %2512 = vmatprep.subr.mxu0 0.0
        %2513 = vmatpush2.msra.mxu0 0.0
        %2514 = vmatprep.subr.mxu0 0.0
        %2515 = vmatpush2.msra.mxu0 0.0
        %2516 = vmatprep.subr.mxu0 0.0
        %2517 = vmatpush2.msra.mxu0 0.0
        %2518 = vmatprep.subr.mxu0 0.0
        %2519 = vmatpush2.msra.mxu0 0.0
        %2520 = vmatprep.subr.mxu0 0.0
        %2521 = vmatpush2.msra.mxu0 0.0
        %2522 = vmatprep.subr.mxu0 0.0
        %2523 = vmatpush2.msra.mxu0 0.0
        %2524 = vmatprep.subr.mxu0 0.0
        %2525 = vmatpush2.msra.mxu0 0.0
        %2526 = vmatprep.mubr.f32.mxu0 0.0
        %2527 = vmatmul.mubr.f32.gmra.mxu0 %v2456
        %v2528 = vpop.f32.mrf.mxu0
        %v2529 = vadd.f32 %v2451, %v2528
        %v2530 = vpop.f32.mrf.mxu0
        %v2531 = vadd.f32 %v2451, %v2530
        %2532 = vdwg.mxu0
        %v2535 = vcombine.low %v2529, %v2531
        %s2537 = scalar_lea.vmem %s407, 48 [#allocation7]
        %2538 = vst [vmem:[%s2537] sm:$0xff] %v2535
        %s2539 = scalar_lea.vmem %s365, 56 [#allocation6]
        %v2540 = vld [vmem:[%s2539] sm:$0xff]
        %v2541 = vld [vmem:[%s5] sm:$0xff]
        %v2542 = vld [vmem:[%s6] sm:$0xff]
        %2544 = vset.pattern.permute.xlu0 0
        %2545 = vperm.xlu0 %2544, %v2542
        %v2546 = vpop.permute.xlu0 %2545
        %v2549 = vcombine.high %v2540, %v2540
        %v2551 = vsel %vm428, %v2541, 0
        %v2553 = vsel %vm432, %v2540, 0
        %v2555 = vsel %vm432, %v2549, 0
        %2557 = vmatprep.subr.mxu0 0.0
        %2558 = vmatpush1.msra.mxu0 0.0
        %2559 = vmatprep.subr.mxu0 0.0
        %2560 = vmatpush1.msra.mxu0 0.0
        %2561 = vmatprep.subr.mxu0 0.0
        %2562 = vmatpush1.msra.mxu0 0.0
        %2563 = vmatprep.subr.mxu0 0.0
        %2564 = vmatpush1.msra.mxu0 0.0
        %2565 = vmatprep.subr.mxu0 0.0
        %2566 = vmatpush1.msra.mxu0 0.0
        %2567 = vmatprep.subr.mxu0 0.0
        %2568 = vmatpush1.msra.mxu0 0.0
        %2569 = vmatprep.subr.mxu0 0.0
        %2570 = vmatpush1.msra.mxu0 0.0
        %2571 = vmatprep.subr.mxu0 0.0
        %2572 = vmatpush1.msra.mxu0 0.0
        %2573 = vmatprep.subr.mxu0 0.0
        %2574 = vmatpush1.msra.mxu0 0.0
        %2575 = vmatprep.subr.mxu0 0.0
        %2576 = vmatpush1.msra.mxu0 0.0
        %2577 = vmatprep.subr.mxu0 0.0
        %2578 = vmatpush1.msra.mxu0 0.0
        %2579 = vmatprep.subr.mxu0 0.0
        %2580 = vmatpush1.msra.mxu0 0.0
        %2581 = vmatprep.subr.mxu0 0.0
        %2582 = vmatpush1.msra.mxu0 0.0
        %2583 = vmatprep.subr.mxu0 0.0
        %2584 = vmatpush1.msra.mxu0 0.0
        %2585 = vmatprep.subr.mxu0 0.0
        %2586 = vmatpush1.msra.mxu0 0.0
        %2587 = vmatprep.subr.mxu0 %v2555
        %2588 = vmatpush1.msra.mxu0 %v2553
        %2589 = vmatprep.subr.mxu0 0.0
        %2590 = vmatpush2.msra.mxu0 0.0
        %2591 = vmatprep.subr.mxu0 0.0
        %2592 = vmatpush2.msra.mxu0 0.0
        %2593 = vmatprep.subr.mxu0 0.0
        %2594 = vmatpush2.msra.mxu0 0.0
        %2595 = vmatprep.subr.mxu0 0.0
        %2596 = vmatpush2.msra.mxu0 0.0
        %2597 = vmatprep.subr.mxu0 0.0
        %2598 = vmatpush2.msra.mxu0 0.0
        %2599 = vmatprep.subr.mxu0 0.0
        %2600 = vmatpush2.msra.mxu0 0.0
        %2601 = vmatprep.subr.mxu0 0.0
        %2602 = vmatpush2.msra.mxu0 0.0
        %2603 = vmatprep.subr.mxu0 0.0
        %2604 = vmatpush2.msra.mxu0 0.0
        %2605 = vmatprep.subr.mxu0 0.0
        %2606 = vmatpush2.msra.mxu0 0.0
        %2607 = vmatprep.subr.mxu0 0.0
        %2608 = vmatpush2.msra.mxu0 0.0
        %2609 = vmatprep.subr.mxu0 0.0
        %2610 = vmatpush2.msra.mxu0 0.0
        %2611 = vmatprep.subr.mxu0 0.0
        %2612 = vmatpush2.msra.mxu0 0.0
        %2613 = vmatprep.subr.mxu0 0.0
        %2614 = vmatpush2.msra.mxu0 0.0
        %2615 = vmatprep.subr.mxu0 0.0
        %2616 = vmatpush2.msra.mxu0 0.0
        %2617 = vmatprep.subr.mxu0 0.0
        %2618 = vmatpush2.msra.mxu0 0.0
        %2619 = vmatprep.subr.mxu0 0.0
        %2620 = vmatpush2.msra.mxu0 0.0
        %2621 = vmatprep.mubr.f32.mxu0 0.0
        %2622 = vmatmul.mubr.f32.gmra.mxu0 %v2551
        %v2623 = vpop.f32.mrf.mxu0
        %v2624 = vadd.f32 %v2546, %v2623
        %v2625 = vpop.f32.mrf.mxu0
        %v2626 = vadd.f32 %v2546, %v2625
        %2627 = vdwg.mxu0
        %v2628 = vadd.f32 %v504, %v2624
        %v2629 = vadd.f32 %v506, %v2626
        %vm2630 = vcmp.ge.f32.partialorder %v2628, 0.0
        %vm2631 = vcmp.ge.f32.partialorder %v2629, 0.0
        %v2632 = vmul.f32 %v600, %v2628
        %v2633 = vmul.f32 %v600, %v2629
        %v2634 = vsel %vm2630, %v2628, %v2632
        %v2635 = vsel %vm2631, %v2629, %v2633
        %v2636 = vld [vmem:[%s7] sm:$0x1]
        %v2638 = vsel %vm607, %v2636, 0
        %2640 = vmatprep.subr.mxu0 0.0
        %2641 = vmatpush1.msra.mxu0 0.0
        %2642 = vmatprep.subr.mxu0 0.0
        %2643 = vmatpush1.msra.mxu0 0.0
        %2644 = vmatprep.subr.mxu0 0.0
        %2645 = vmatpush1.msra.mxu0 0.0
        %2646 = vmatprep.subr.mxu0 0.0
        %2647 = vmatpush1.msra.mxu0 0.0
        %2648 = vmatprep.subr.mxu0 0.0
        %2649 = vmatpush1.msra.mxu0 0.0
        %2650 = vmatprep.subr.mxu0 0.0
        %2651 = vmatpush1.msra.mxu0 0.0
        %2652 = vmatprep.subr.mxu0 0.0
        %2653 = vmatpush1.msra.mxu0 0.0
        %2654 = vmatprep.subr.mxu0 0.0
        %2655 = vmatpush1.msra.mxu0 0.0
        %2656 = vmatprep.subr.mxu0 0.0
        %2657 = vmatpush1.msra.mxu0 0.0
        %2658 = vmatprep.subr.mxu0 0.0
        %2659 = vmatpush1.msra.mxu0 0.0
        %2660 = vmatprep.subr.mxu0 0.0
        %2661 = vmatpush1.msra.mxu0 0.0
        %2662 = vmatprep.subr.mxu0 0.0
        %2663 = vmatpush1.msra.mxu0 0.0
        %2664 = vmatprep.subr.mxu0 0.0
        %2665 = vmatpush1.msra.mxu0 0.0
        %2666 = vmatprep.subr.mxu0 0.0
        %2667 = vmatpush1.msra.mxu0 0.0
        %2668 = vmatprep.subr.mxu0 0.0
        %2669 = vmatpush1.msra.mxu0 0.0
        %2670 = vmatprep.subr.mxu0 %v2635
        %2671 = vmatpush1.msra.mxu0 %v2634
        %2672 = vmatprep.subr.mxu0 0.0
        %2673 = vmatpush2.msra.mxu0 0.0
        %2674 = vmatprep.subr.mxu0 0.0
        %2675 = vmatpush2.msra.mxu0 0.0
        %2676 = vmatprep.subr.mxu0 0.0
        %2677 = vmatpush2.msra.mxu0 0.0
        %2678 = vmatprep.subr.mxu0 0.0
        %2679 = vmatpush2.msra.mxu0 0.0
        %2680 = vmatprep.subr.mxu0 0.0
        %2681 = vmatpush2.msra.mxu0 0.0
        %2682 = vmatprep.subr.mxu0 0.0
        %2683 = vmatpush2.msra.mxu0 0.0
        %2684 = vmatprep.subr.mxu0 0.0
        %2685 = vmatpush2.msra.mxu0 0.0
        %2686 = vmatprep.subr.mxu0 0.0
        %2687 = vmatpush2.msra.mxu0 0.0
        %2688 = vmatprep.subr.mxu0 0.0
        %2689 = vmatpush2.msra.mxu0 0.0
        %2690 = vmatprep.subr.mxu0 0.0
        %2691 = vmatpush2.msra.mxu0 0.0
        %2692 = vmatprep.subr.mxu0 0.0
        %2693 = vmatpush2.msra.mxu0 0.0
        %2694 = vmatprep.subr.mxu0 0.0
        %2695 = vmatpush2.msra.mxu0 0.0
        %2696 = vmatprep.subr.mxu0 0.0
        %2697 = vmatpush2.msra.mxu0 0.0
        %2698 = vmatprep.subr.mxu0 0.0
        %2699 = vmatpush2.msra.mxu0 0.0
        %2700 = vmatprep.subr.mxu0 0.0
        %2701 = vmatpush2.msra.mxu0 0.0
        %2702 = vmatprep.subr.mxu0 0.0
        %2703 = vmatpush2.msra.mxu0 0.0
        %2704 = vmatprep.mubr.f32.mxu0 0.0
        %2705 = vmatmul.mubr.f32.gmra.mxu0 %v2638
        %v2706 = vpop.f32.mrf.mxu0
        %v2707 = vadd.f32 %v606, %v2706
        %v2708 = vpop.f32.mrf.mxu0
        %v2709 = vadd.f32 %v606, %v2708
        %2710 = vdwg.mxu0
        %v2711 = vxor.u32 %v2707, 2147483648
        %v2712 = vxor.u32 %v2709, 2147483648
        %v2713 = vmul.f32 %v2711, 1.442695
        %v2714 = vpow.pop %v2713
        %v2715 = vmul.f32 %v2712, 1.442695
        %v2716 = vpow.pop %v2715
        %v2717 = vadd.f32 %v2714, 1.0
        %v2718 = vadd.f32 %v2716, 1.0
        %v2719 = vrcp.pop %v2717
        %v2720 = vmul.f32 1.0, %v2719
        %v2721 = vrcp.pop %v2718
        %v2722 = vmul.f32 1.0, %v2721
        %v2723 = vlaneseq
        %v2724 = vshrl.u32 %v2723, 7
        %v2725 = vsub.s32 0, %v2724
        %v2726 = vrot.slane %v2720, %v2725
        %v2727 = vlaneseq
        %v2728 = vshrl.u32 %v2727, 7
        %v2729 = vsub.s32 0, %v2728
        %v2730 = vrot.slane %v2722, %v2729
        %v2733 = vcombine.low %v2726, %v2730
        %v2735 = vmul.f32 %v2540, %v2733
        %v2736 = vld [vmem:[%s8] sm:$0xf]
        %v2737 = vld [vmem:[%s9] sm:$0xf]
        %2739 = vset.pattern.permute.xlu0 0
        %2740 = vperm.xlu0 %2739, %v2737
        %v2741 = vpop.permute.xlu0 %2740
        %v2744 = vcombine.high %v2735, %v2735
        %v2746 = vsel %vm428, %v2736, 0
        %v2748 = vsel %vm432, %v2735, 0
        %v2750 = vsel %vm432, %v2744, 0
        %2752 = vmatprep.subr.mxu0 0.0
        %2753 = vmatpush1.msra.mxu0 0.0
        %2754 = vmatprep.subr.mxu0 0.0
        %2755 = vmatpush1.msra.mxu0 0.0
        %2756 = vmatprep.subr.mxu0 0.0
        %2757 = vmatpush1.msra.mxu0 0.0
        %2758 = vmatprep.subr.mxu0 0.0
        %2759 = vmatpush1.msra.mxu0 0.0
        %2760 = vmatprep.subr.mxu0 0.0
        %2761 = vmatpush1.msra.mxu0 0.0
        %2762 = vmatprep.subr.mxu0 0.0
        %2763 = vmatpush1.msra.mxu0 0.0
        %2764 = vmatprep.subr.mxu0 0.0
        %2765 = vmatpush1.msra.mxu0 0.0
        %2766 = vmatprep.subr.mxu0 0.0
        %2767 = vmatpush1.msra.mxu0 0.0
        %2768 = vmatprep.subr.mxu0 0.0
        %2769 = vmatpush1.msra.mxu0 0.0
        %2770 = vmatprep.subr.mxu0 0.0
        %2771 = vmatpush1.msra.mxu0 0.0
        %2772 = vmatprep.subr.mxu0 0.0
        %2773 = vmatpush1.msra.mxu0 0.0
        %2774 = vmatprep.subr.mxu0 0.0
        %2775 = vmatpush1.msra.mxu0 0.0
        %2776 = vmatprep.subr.mxu0 0.0
        %2777 = vmatpush1.msra.mxu0 0.0
        %2778 = vmatprep.subr.mxu0 0.0
        %2779 = vmatpush1.msra.mxu0 0.0
        %2780 = vmatprep.subr.mxu0 0.0
        %2781 = vmatpush1.msra.mxu0 0.0
        %2782 = vmatprep.subr.mxu0 %v2750
        %2783 = vmatpush1.msra.mxu0 %v2748
        %2784 = vmatprep.subr.mxu0 0.0
        %2785 = vmatpush2.msra.mxu0 0.0
        %2786 = vmatprep.subr.mxu0 0.0
        %2787 = vmatpush2.msra.mxu0 0.0
        %2788 = vmatprep.subr.mxu0 0.0
        %2789 = vmatpush2.msra.mxu0 0.0
        %2790 = vmatprep.subr.mxu0 0.0
        %2791 = vmatpush2.msra.mxu0 0.0
        %2792 = vmatprep.subr.mxu0 0.0
        %2793 = vmatpush2.msra.mxu0 0.0
        %2794 = vmatprep.subr.mxu0 0.0
        %2795 = vmatpush2.msra.mxu0 0.0
        %2796 = vmatprep.subr.mxu0 0.0
        %2797 = vmatpush2.msra.mxu0 0.0
        %2798 = vmatprep.subr.mxu0 0.0
        %2799 = vmatpush2.msra.mxu0 0.0
        %2800 = vmatprep.subr.mxu0 0.0
        %2801 = vmatpush2.msra.mxu0 0.0
        %2802 = vmatprep.subr.mxu0 0.0
        %2803 = vmatpush2.msra.mxu0 0.0
        %2804 = vmatprep.subr.mxu0 0.0
        %2805 = vmatpush2.msra.mxu0 0.0
        %2806 = vmatprep.subr.mxu0 0.0
        %2807 = vmatpush2.msra.mxu0 0.0
        %2808 = vmatprep.subr.mxu0 0.0
        %2809 = vmatpush2.msra.mxu0 0.0
        %2810 = vmatprep.subr.mxu0 0.0
        %2811 = vmatpush2.msra.mxu0 0.0
        %2812 = vmatprep.subr.mxu0 0.0
        %2813 = vmatpush2.msra.mxu0 0.0
        %2814 = vmatprep.subr.mxu0 0.0
        %2815 = vmatpush2.msra.mxu0 0.0
        %2816 = vmatprep.mubr.f32.mxu0 0.0
        %2817 = vmatmul.mubr.f32.gmra.mxu0 %v2746
        %v2818 = vpop.f32.mrf.mxu0
        %v2819 = vadd.f32 %v2741, %v2818
        %v2820 = vpop.f32.mrf.mxu0
        %v2821 = vadd.f32 %v2741, %v2820
        %2822 = vdwg.mxu0
        %v2825 = vcombine.low %v2819, %v2821
        %s2827 = scalar_lea.vmem %s407, 56 [#allocation7]
        %2828 = vst [vmem:[%s2827] sm:$0xff] %v2825
        %s2829 = sand.u32 %s256, 1
        %s2830 = scalar_lea.sflag [#allocation4], %s2829
        %s2831 = sand.u32 %s256, 1
        %s2832 = smul.addr %s2831, 64
        %s2833 = scalar_lea.vmem [#allocation7], %s2832
        // Predicated region
        $region69: #{tpu_custom_call.1} parent=59 // pred_check
          %p2834 = pneg %p266
        $region70: #{tpu_custom_call.1} parent=59 // pred_check_branch
          %2836 = sbr.rel (%p2834) target = $region72
        $region71: #{tpu_custom_call.1} parent=59 // pred_region
          %s2837 = smul.u32 2, %s28
          %s2839 = ssub.s32 1024, 1024
          %2840 = vsyncadd %s2830, %s2839
          %s2841 = smul.addr %s2837, 64
          %s2842 = scalar_lea.hbm %s10, %s2841
          %s2843 = sshll.u32 %s2833, 4
          %s2844 = int_to_ptr.vmem [resolvable:$true] %s2843
          %2849 = dma.vmem_to_hbm [thread:$0]  %s2844, 1024, %s2842, %s2830, 128, 256, 8
        $region72: #{tpu_custom_call.1} parent=59 // pred_fallthru
          _
      $region60: #{tpu_custom_call.1} parent=5 // pred_fallthru
        _
      %p2850 = scmp.le.s32.totalorder 2, %s23
      // Predicated region
      $region73: #{tpu_custom_call.1} parent=5 // pred_check
        %p2851 = pneg %p2850
      $region74: #{tpu_custom_call.1} parent=5 // pred_check_branch
        %2853 = sbr.rel (%p2851) target = $region76
      $region75: #{tpu_custom_call.1} parent=5 // pred_region
        %s2854 = ssub.s32 %s23, 2
        // Predicated region
        $region77: #{tpu_custom_call.1} parent=75 // pred_check
          %p2855 = pneg %p272
        $region78: #{tpu_custom_call.1} parent=75 // pred_check_branch
          %2857 = sbr.rel (%p2855) target = $region80
        $region79: #{tpu_custom_call.1} parent=75 // pred_region
          %s2858 = sand.u32 %s257, 1
          %s2859 = scalar_lea.sflag [#allocation4], %s2858
          %s2860 = sand.u32 %s257, 1
          %s2861 = smul.addr %s2860, 64
          %s2862 = scalar_lea.vmem [#allocation7], %s2861
          %2863 = dma.done %s2859, 1024
        $region80: #{tpu_custom_call.1} parent=75 // pred_fallthru
          _
      $region76: #{tpu_custom_call.1} parent=5 // pred_fallthru
        _
    $region6: #{tpu_custom_call.1} parent=1 // loop_footer
      %s27 = sadd.s32 1, %s23
    $region7: #{tpu_custom_call.1} parent=1 // loop_footer_branch
      %22 = sbr.rel target = $region3
    $region8: #{tpu_custom_call.1} parent=1 // loop_exit
      _
    %2864 = vsyncpa [#allocation3], 1
    %s2865 = scalar_lea.sflag [#allocation3], 1
    %2866 = vsyncpa %s2865, 1
    %2867 = vsyncpa [#allocation4], 1
    %s2868 = scalar_lea.sflag [#allocation4], 1
    %2869 = vsyncpa %s2868, 1
    %2870 = vsyncpa [#allocation5], 1
    %s2871 = scalar_lea.sflag [#allocation5], 1
    %2872 = vsyncpa %s2871, 1

</llo_original>
